<compile_context>
chip_gen: v7x
topology: tpu7x:2x2x1
jax: 0.10.0
libtpu: 0.0.40
codegen_flags: <defaults>
</compile_context>

<pallas_src>
import functools

import jax
import jax.numpy as jnp
import numpy as np
from jax.experimental import pallas as pl
from jax.experimental.pallas import tpu as pltpu


def _round_up(x, m):
    return ((x + m - 1) // m) * m


@functools.lru_cache(maxsize=1)
def _vmem_limit_bytes():
    """Generation-aware scoped-VMEM limit: ~75% of physical per-core VMEM."""
    phys = 64 * 1024 * 1024          # conservative default (v7x per-TC VMEM)
    try:
        phys = int(pltpu.get_tpu_info().vmem_capacity_bytes)
    except Exception:
        pass
    return int(phys * 3 // 4)


# ----------------------------------------------------------------------------
# Kernel 1: fused conv (shifted-slice matmul over taps) + optional residual
# projection + per-image partial BN statistics (from the f32 accumulator).
# Grid axis: one step per image, fully "parallel".
# ----------------------------------------------------------------------------
def _fused_conv_kernel(*refs, k, dil, Wp, Lsp, center_off, with_res):
    if with_res:
        (x_ref, w_ref, mask_ref, wr_ref,
         y_ref, yr_ref, sy_ref, syy_ref, sr_ref, srr_ref) = refs
    else:
        x_ref, w_ref, mask_ref, y_ref, sy_ref, syy_ref = refs

    cout_p = y_ref.shape[1]
    acc = jnp.zeros((cout_p, Lsp), jnp.float32)
    for t in range(k * k):
        kh, kw = divmod(t, k)
        off = kh * dil * Wp + kw * dil
        xt = x_ref[0, :, pl.ds(off, Lsp)]                 # (Cin, Lsp) bf16
        acc = acc + jnp.dot(w_ref[t], xt, preferred_element_type=jnp.float32)
    y_ref[0] = acc.astype(y_ref.dtype)                    # bf16 intermediate

    mask = mask_ref[...]                                  # (1, Lsp) f32
    accm = acc * mask                                     # zero invalid columns
    sy_ref[0] = jnp.sum(accm, axis=1, keepdims=True)      # (Cout_p, 1)
    syy_ref[0] = jnp.sum(accm * acc, axis=1, keepdims=True)

    if with_res:
        xc = x_ref[0, :, pl.ds(center_off, Lsp)]          # residual input slice
        accr = jnp.dot(wr_ref[...], xc, preferred_element_type=jnp.float32)
        yr_ref[0] = accr.astype(yr_ref.dtype)
        accrm = accr * mask
        sr_ref[0] = jnp.sum(accrm, axis=1, keepdims=True)
        srr_ref[0] = jnp.sum(accrm * accr, axis=1, keepdims=True)


# ----------------------------------------------------------------------------
# Kernel 2: fused BN affine + residual + activation (channel-major layout).
#   no residual : out = act(y*scale + shift)
#   residual    : out = act(y*scale + shift + yr*rscale + rshift)
#                 (identity residual uses rscale=1, rshift=0)
# ----------------------------------------------------------------------------
def _bn_res_act_kernel(*refs, activation, with_res):
    if with_res:
        y_ref, yr_ref, sc_ref, sh_ref, rsc_ref, rsh_ref, o_ref = refs
    else:
        y_ref, sc_ref, sh_ref, o_ref = refs

    out = y_ref[0].astype(jnp.float32) * sc_ref[...] + sh_ref[...]
    if with_res:
        out = out + yr_ref[0].astype(jnp.float32) * rsc_ref[...] + rsh_ref[...]

    if activation == "LeakyReLU":
        out = jnp.where(out > 0, out, 0.2 * out)
    elif activation == "Sigmoid":
        out = jax.nn.sigmoid(out)
    elif activation == "Tanh":
        out = jnp.tanh(out)
    o_ref[0] = out


# ----------------------------------------------------------------------------
# pallas_call wrappers
# ----------------------------------------------------------------------------
def _fused_conv(x_flat, w_taps, mask, w_res, *, k, dil, Wp, Lsp, center_off):
    N, Cin, Lflat = x_flat.shape
    kk, Cout_p, _ = w_taps.shape
    with_res = w_res is not None

    in_specs = [
        pl.BlockSpec((1, Cin, Lflat), lambda i: (i, 0, 0)),
        pl.BlockSpec((kk, Cout_p, Cin), lambda i: (0, 0, 0)),
        pl.BlockSpec((1, Lsp), lambda i: (0, 0)),
    ]
    inputs = [x_flat, w_taps, mask]
    if with_res:
        in_specs.append(pl.BlockSpec((Cout_p, Cin), lambda i: (0, 0)))
        inputs.append(w_res)

    out_shapes = [jax.ShapeDtypeStruct((N, Cout_p, Lsp), jnp.bfloat16)]
    out_specs = [pl.BlockSpec((1, Cout_p, Lsp), lambda i: (i, 0, 0))]
    if with_res:
        out_shapes.append(jax.ShapeDtypeStruct((N, Cout_p, Lsp), jnp.bfloat16))
        out_specs.append(pl.BlockSpec((1, Cout_p, Lsp), lambda i: (i, 0, 0)))
    n_stats = 4 if with_res else 2
    for _ in range(n_stats):
        out_shapes.append(jax.ShapeDtypeStruct((N, Cout_p, 1), jnp.float32))
        out_specs.append(pl.BlockSpec((1, Cout_p, 1), lambda i: (i, 0, 0)))

    kernel = functools.partial(_fused_conv_kernel, k=k, dil=dil, Wp=Wp,
                               Lsp=Lsp, center_off=center_off, with_res=with_res)
    return pl.pallas_call(
        kernel,
        out_shape=tuple(out_shapes),
        grid_spec=pltpu.PrefetchScalarGridSpec(
            num_scalar_prefetch=0,
            grid=(N,),
            in_specs=in_specs,
            out_specs=tuple(out_specs)),
        compiler_params=pltpu.CompilerParams(
            dimension_semantics=("parallel",),
            vmem_limit_bytes=_vmem_limit_bytes()),
    )(*inputs)


def _bn_res_act(y, scale, shift, *, activation, yr=None, rscale=None, rshift=None):
    N, Cout_p, Lsp = y.shape
    with_res = yr is not None
    row = pl.BlockSpec((1, Cout_p, Lsp), lambda i: (i, 0, 0))
    vec = pl.BlockSpec((Cout_p, 1), lambda i: (0, 0))

    if with_res:
        inputs = (y, yr, scale, shift, rscale, rshift)
        in_specs = [row, row, vec, vec, vec, vec]
    else:
        inputs = (y, scale, shift)
        in_specs = [row, vec, vec]

    kernel = functools.partial(_bn_res_act_kernel, activation=activation,
                               with_res=with_res)
    return pl.pallas_call(
        kernel,
        out_shape=jax.ShapeDtypeStruct((N, Cout_p, Lsp), jnp.float32),
        grid_spec=pltpu.PrefetchScalarGridSpec(
            num_scalar_prefetch=0,
            grid=(N,),
            in_specs=in_specs,
            out_specs=row),
        compiler_params=pltpu.CompilerParams(
            dimension_semantics=("parallel",),
            vmem_limit_bytes=_vmem_limit_bytes()),
    )(*inputs)


def _fused_vmem_estimate(Cin, Lflat, Cout_p, Lsp, k, with_res):
    """Rough per-grid-step working set (double-buffered I/O + f32 accumulators)."""
    n_out = 2 if with_res else 1
    return (2 * Cin * Lflat * 2                 # input image (bf16, 2 buffers)
            + 2 * k * k * Cout_p * Cin * 2      # tap weights
            + 2 * Cout_p * Cin * 2              # residual weight
            + 2 * Lsp * 4                       # mask
            + 2 * n_out * Cout_p * Lsp * 2      # y / yr bf16 outputs
            + n_out * Cout_p * Lsp * 4          # f32 accumulators
            + k * Cin * Lsp * 2)                # shifted-slice temporaries (rough)


# ----------------------------------------------------------------------------
# Conv_block forward
# ----------------------------------------------------------------------------
def conv_block_forward(x, params, *, kernel_size, stride, dilation,
                       residual=True, bn=True, activation="LeakyReLU", eps=1e-5):
    N, Cin, H, W = x.shape
    Cout = params["conv_w"].shape[0]
    k, s, d = kernel_size, stride, dilation
    pad = d * (k - 1) // 2

    Hp, Wp = H + 2 * pad, W + 2 * pad
    Hd, Wd = Hp - d * (k - 1), Wp - d * (k - 1)      # dense (stride-1) output plane
    Ho, Wo = (Hd - 1) // s + 1, (Wd - 1) // s + 1    # actual strided output size
    Cout_p = _round_up(Cout, 128)                    # lane-dense output channels
    Lsp = _round_up(Hd * Wp, 128)                    # lane-dense dense-plane length
    max_off = (k - 1) * d * (Wp + 1)                 # largest tap offset
    Lflat = _round_up(max_off + Lsp, 128)
    center_off = pad * Wp + pad                      # offset of the unshifted pixel

    use_res = bool(residual)
    is_proj = use_res and not (Cin == Cout and s == 1)

    if _fused_vmem_estimate(Cin, Lflat, Cout_p, Lsp, k, use_res) > _vmem_limit_bytes():
        # TODO(synk): spatial band tiling for very large images.
        raise NotImplementedError("Conv_block fused kernel: image too large for VMEM")

    # --- inputs / weights (single pad+cast pass each) ---
    x_pad = jnp.pad(x, ((0, 0), (0, 0), (pad, pad), (pad, pad)))
    x_flat = x_pad.reshape(N, Cin, Hp * Wp)
    x_flat = jnp.pad(x_flat, ((0, 0), (0, 0), (0, Lflat - Hp * Wp))).astype(jnp.bfloat16)

    w_taps = params["conv_w"].transpose(2, 3, 0, 1).reshape(k * k, Cout, Cin)
    w_taps = jnp.pad(w_taps, ((0, 0), (0, Cout_p - Cout), (0, 0))).astype(jnp.bfloat16)

    if not use_res:
        w_res = None
    elif is_proj:
        w_res = params["res_w"].reshape(Cout, Cin)
        w_res = jnp.pad(w_res, ((0, Cout_p - Cout), (0, 0))).astype(jnp.bfloat16)
    else:  # identity residual as a zero-padded identity projection
        w_res = jnp.pad(jnp.eye(Cin, dtype=jnp.bfloat16),
                        ((0, Cout_p - Cin), (0, 0)))

    # validity mask over the dense plane (selects the strided output positions)
    m2 = np.zeros((Hd, Wp), np.float32)
    m2[0:(Ho - 1) * s + 1:s, 0:(Wo - 1) * s + 1:s] = 1.0
    mask_np = np.zeros((1, Lsp), np.float32)
    mask_np[0, :Hd * Wp] = m2.reshape(-1)
    mask = jnp.asarray(mask_np)
    count = float(N * Ho * Wo)

    # --- kernel 1: conv (+ residual projection) + partial BN stats ---
    outs = _fused_conv(x_flat, w_taps, mask, w_res,
                       k=k, dil=d, Wp=Wp, Lsp=Lsp, center_off=center_off)
    if use_res:
        y, yr, s_y, ss_y, s_r, ss_r = outs
    else:
        y, s_y, ss_y = outs

    # --- BN affine for the main branch (conv bias cancels under training BN) ---
    if bn:
        sy = s_y.sum(axis=0)[:, 0]
        syy = ss_y.sum(axis=0)[:, 0]
        mean = sy / count
        var = jnp.maximum(syy / count - mean * mean, 0.0)
        gamma = jnp.pad(params["bn_gamma"], (0, Cout_p - Cout))
        beta = jnp.pad(params["bn_beta"], (0, Cout_p - Cout))
        scale = gamma * jax.lax.rsqrt(var + eps)
        shift = beta - mean * scale
    else:
        scale = jnp.ones((Cout_p,), jnp.float32)
        shift = jnp.pad(params["conv_b"], (0, Cout_p - Cout)).astype(jnp.float32)

    # --- kernel 2: BN affine + residual + activation ---
    if use_res:
        if is_proj:
            sr = s_r.sum(axis=0)[:, 0]
            srr = ss_r.sum(axis=0)[:, 0]
            mr = sr / count
            vr = jnp.maximum(srr / count - mr * mr, 0.0)
            g_r = jnp.pad(params["res_gamma"], (0, Cout_p - Cout))
            b_r = jnp.pad(params["res_beta"], (0, Cout_p - Cout))
            rscale = g_r * jax.lax.rsqrt(vr + eps)
            rshift = b_r - mr * rscale
        else:
            rscale = jnp.ones((Cout_p,), jnp.float32)
            rshift = jnp.zeros((Cout_p,), jnp.float32)
        out = _bn_res_act(y, scale.reshape(Cout_p, 1), shift.reshape(Cout_p, 1),
                          activation=activation, yr=yr,
                          rscale=rscale.reshape(Cout_p, 1),
                          rshift=rshift.reshape(Cout_p, 1))
    else:
        out = _bn_res_act(y, scale.reshape(Cout_p, 1), shift.reshape(Cout_p, 1),
                          activation=activation)

    # --- NCHW extraction: channel-major layout means no full-tensor transpose ---
    out = out[:, :Cout, :Hd * Wp].reshape(N, Cout, Hd, Wp)
    out = out[:, :, 0:(Ho - 1) * s + 1:s, 0:(Wo - 1) * s + 1:s]
    return out


# ----------------------------------------------------------------------------
# Pure-JAX reference (lax conv) for correctness check
# ----------------------------------------------------------------------------
def reference_forward(x, params, *, kernel_size, stride, dilation,
                      residual=True, bn=True, activation="LeakyReLU", eps=1e-5):
    padding = dilation * (kernel_size - 1) // 2
    Cin = x.shape[1]
    Cout = params["conv_w"].shape[0]
    y = jax.lax.conv_general_dilated(
        x, params["conv_w"], (stride, stride),
        padding=[(padding, padding), (padding, padding)],
        rhs_dilation=(dilation, dilation),
        dimension_numbers=("NCHW", "OIHW", "NCHW"))
    y = y + params["conv_b"][None, :, None, None]
    if bn:
        mean = y.mean(axis=(0, 2, 3))
        var = y.var(axis=(0, 2, 3))           # biased, as BN uses for normalization
        y = (y - mean[None, :, None, None]) / jnp.sqrt(var + eps)[None, :, None, None]
        y = (y * params["bn_gamma"][None, :, None, None]
             + params["bn_beta"][None, :, None, None])

    if not residual:
        res = 0.0
    elif Cin == Cout and stride == 1:
        res = x
    else:
        r = jax.lax.conv_general_dilated(
            x, params["res_w"], (stride, stride), padding=[(0, 0), (0, 0)],
            dimension_numbers=("NCHW", "OIHW", "NCHW"))
        r = r + params["res_b"][None, :, None, None]
        mr = r.mean(axis=(0, 2, 3))
        vr = r.var(axis=(0, 2, 3))
        r = (r - mr[None, :, None, None]) / jnp.sqrt(vr + eps)[None, :, None, None]
        res = (r * params["res_gamma"][None, :, None, None]
               + params["res_beta"][None, :, None, None])

    y = y + res
    if activation == "LeakyReLU":
        y = jnp.where(y > 0, y, 0.2 * y)
    elif activation == "Sigmoid":
        y = jax.nn.sigmoid(y)
    elif activation == "Tanh":
        y = jnp.tanh(y)
    return y


if __name__ == "__main__":
    key = jax.random.PRNGKey(0)
    ks = jax.random.split(key, 12)

    # --- test 1: identity residual (Cin == Cout, stride 1), BN + LeakyReLU ---
    N, Cin, Cout, H, W = 2, 4, 4, 16, 16
    k, s, d = 3, 1, 1
    params = {
        "conv_w": 0.1 * jax.random.normal(ks[0], (Cout, Cin, k, k), jnp.float32),
        "conv_b": 0.1 * jax.random.normal(ks[1], (Cout,), jnp.float32),
        "bn_gamma": 1.0 + 0.1 * jax.random.normal(ks[2], (Cout,), jnp.float32),
        "bn_beta": 0.1 * jax.random.normal(ks[3], (Cout,), jnp.float32),
    }
    x = jax.random.normal(ks[4], (N, Cin, H, W), jnp.float32)
    out = conv_block_forward(x, params, kernel_size=k, stride=s, dilation=d,
                             residual=True, bn=True, activation="LeakyReLU")
    out = jax.block_until_ready(out)
    ref = reference_forward(x, params, kernel_size=k, stride=s, dilation=d,
                            residual=True, bn=True, activation="LeakyReLU")
    np.testing.assert_allclose(np.asarray(out), np.asarray(ref), rtol=2e-2, atol=3e-2)

    # --- test 2: projection residual (Cout != Cin, stride 2), BN + Tanh ---
    N2, Cin2, Cout2, H2, W2 = 2, 4, 8, 16, 16
    k2, s2, d2 = 3, 2, 1
    params2 = {
        "conv_w": 0.1 * jax.random.normal(ks[5], (Cout2, Cin2, k2, k2), jnp.float32),
        "conv_b": 0.1 * jax.random.normal(ks[6], (Cout2,), jnp.float32),
        "bn_gamma": 1.0 + 0.1 * jax.random.normal(ks[7], (Cout2,), jnp.float32),
        "bn_beta": 0.1 * jax.random.normal(ks[8], (Cout2,), jnp.float32),
        "res_w": 0.1 * jax.random.normal(ks[9], (Cout2, Cin2, 1, 1), jnp.float32),
        "res_b": 0.1 * jax.random.normal(ks[10], (Cout2,), jnp.float32),
        "res_gamma": 1.0 + 0.1 * jax.random.normal(ks[11], (Cout2,), jnp.float32),
        "res_beta": jnp.zeros((Cout2,), jnp.float32),
    }
    x2 = jax.random.normal(jax.random.PRNGKey(1), (N2, Cin2, H2, W2), jnp.float32)
    out2 = conv_block_forward(x2, params2, kernel_size=k2, stride=s2, dilation=d2,
                              residual=True, bn=True, activation="Tanh")
    out2 = jax.block_until_ready(out2)
    ref2 = reference_forward(x2, params2, kernel_size=k2, stride=s2, dilation=d2,
                             residual=True, bn=True, activation="Tanh")
    np.testing.assert_allclose(np.asarray(out2), np.asarray(ref2), rtol=2e-2, atol=3e-2)

    # --- test 3: no residual, no BN (bias folded into shift), Sigmoid ---
    out3 = conv_block_forward(x, params, kernel_size=k, stride=s, dilation=d,
                              residual=False, bn=False, activation="Sigmoid")
    out3 = jax.block_until_ready(out3)
    ref3 = reference_forward(x, params, kernel_size=k, stride=s, dilation=d,
                             residual=False, bn=False, activation="Sigmoid")
    np.testing.assert_allclose(np.asarray(out3), np.asarray(ref3), rtol=2e-2, atol=3e-2)

    print("KERNEL_OK")
</pallas_src>

<mosaic_0001>
module attributes {stable_mosaic.version = 11 : i64} {
  func.func @_fused_conv_kernel(%arg0: i32, %arg1: memref<1x4x512xbf16, #tpu.memory_space<vmem>>, %arg2: memref<9x128x4xbf16, #tpu.memory_space<vmem>>, %arg3: memref<1x384xf32, #tpu.memory_space<vmem>>, %arg4: memref<128x4xbf16, #tpu.memory_space<vmem>>, %arg5: memref<1x128x384xbf16, #tpu.memory_space<vmem>>, %arg6: memref<1x128x384xbf16, #tpu.memory_space<vmem>>, %arg7: memref<1x128x1xf32, #tpu.memory_space<vmem>>, %arg8: memref<1x128x1xf32, #tpu.memory_space<vmem>>, %arg9: memref<1x128x1xf32, #tpu.memory_space<vmem>>, %arg10: memref<1x128x1xf32, #tpu.memory_space<vmem>>) attributes {dimension_semantics = [#tpu.dimension_semantics<parallel>], iteration_bounds = array<i64: 2>, scalar_prefetch = 0 : i64, scratch_operands = 0 : i64, tpu.core_type = #tpu.core_type<tc>, window_params = [{transform_indices = @transform_0, window_bounds = array<i64: 1, 4, 512>}, {pipeline_mode = #tpu.pipeline_mode<synchronous>, transform_indices = @transform_1, window_bounds = array<i64: 9, 128, 4>}, {pipeline_mode = #tpu.pipeline_mode<synchronous>, transform_indices = @transform_2, window_bounds = array<i64: 1, 384>}, {pipeline_mode = #tpu.pipeline_mode<synchronous>, transform_indices = @transform_3, window_bounds = array<i64: 128, 4>}, {transform_indices = @transform_4, window_bounds = array<i64: 1, 128, 384>}, {transform_indices = @transform_5, window_bounds = array<i64: 1, 128, 384>}, {transform_indices = @transform_6, window_bounds = array<i64: 1, 128, 1>}, {transform_indices = @transform_7, window_bounds = array<i64: 1, 128, 1>}, {transform_indices = @transform_8, window_bounds = array<i64: 1, 128, 1>}, {transform_indices = @transform_9, window_bounds = array<i64: 1, 128, 1>}]} {
    %cst = arith.constant 0.000000e+00 : f32
    %0 = vector.broadcast %cst : f32 to vector<128x384xf32>
    %c0 = arith.constant 0 : index
    %c0_0 = arith.constant 0 : index
    %c0_1 = arith.constant 0 : index
    %1 = vector.load %arg1[%c0, %c0_0, %c0_1] : memref<1x4x512xbf16, #tpu.memory_space<vmem>>, vector<1x4x384xbf16>
    %2 = vector.shape_cast %1 : vector<1x4x384xbf16> to vector<4x384xbf16>
    %c0_2 = arith.constant 0 : index
    %c0_3 = arith.constant 0 : index
    %c0_4 = arith.constant 0 : index
    %3 = vector.load %arg2[%c0_2, %c0_3, %c0_4] : memref<9x128x4xbf16, #tpu.memory_space<vmem>>, vector<1x128x4xbf16>
    %4 = vector.shape_cast %3 : vector<1x128x4xbf16> to vector<128x4xbf16>
    %cst_5 = arith.constant dense<0.000000e+00> : vector<128x384xf32>
    %5 = tpu.matmul %4, %2, %cst_5 {dimension_numbers = #tpu.dot_dimension_numbers<[1], [0], [0], [1], [0, 0, 1, 1], [], []>} : vector<128x4xbf16>, vector<4x384xbf16>, vector<128x384xf32> -> vector<128x384xf32>
    %6 = arith.addf %0, %5 : vector<128x384xf32>
    %c0_6 = arith.constant 0 : index
    %c0_7 = arith.constant 0 : index
    %c1 = arith.constant 1 : index
    %7 = vector.load %arg1[%c0_6, %c0_7, %c1] : memref<1x4x512xbf16, #tpu.memory_space<vmem>>, vector<1x4x384xbf16>
    %8 = vector.shape_cast %7 : vector<1x4x384xbf16> to vector<4x384xbf16>
    %c1_8 = arith.constant 1 : index
    %c0_9 = arith.constant 0 : index
    %c0_10 = arith.constant 0 : index
    %9 = vector.load %arg2[%c1_8, %c0_9, %c0_10] : memref<9x128x4xbf16, #tpu.memory_space<vmem>>, vector<1x128x4xbf16>
    %10 = vector.shape_cast %9 : vector<1x128x4xbf16> to vector<128x4xbf16>
    %cst_11 = arith.constant dense<0.000000e+00> : vector<128x384xf32>
    %11 = tpu.matmul %10, %8, %cst_11 {dimension_numbers = #tpu.dot_dimension_numbers<[1], [0], [0], [1], [0, 0, 1, 1], [], []>} : vector<128x4xbf16>, vector<4x384xbf16>, vector<128x384xf32> -> vector<128x384xf32>
    %12 = arith.addf %6, %11 : vector<128x384xf32>
    %c0_12 = arith.constant 0 : index
    %c0_13 = arith.constant 0 : index
    %c2 = arith.constant 2 : index
    %13 = vector.load %arg1[%c0_12, %c0_13, %c2] : memref<1x4x512xbf16, #tpu.memory_space<vmem>>, vector<1x4x384xbf16>
    %14 = vector.shape_cast %13 : vector<1x4x384xbf16> to vector<4x384xbf16>
    %c2_14 = arith.constant 2 : index
    %c0_15 = arith.constant 0 : index
    %c0_16 = arith.constant 0 : index
    %15 = vector.load %arg2[%c2_14, %c0_15, %c0_16] : memref<9x128x4xbf16, #tpu.memory_space<vmem>>, vector<1x128x4xbf16>
    %16 = vector.shape_cast %15 : vector<1x128x4xbf16> to vector<128x4xbf16>
    %cst_17 = arith.constant dense<0.000000e+00> : vector<128x384xf32>
    %17 = tpu.matmul %16, %14, %cst_17 {dimension_numbers = #tpu.dot_dimension_numbers<[1], [0], [0], [1], [0, 0, 1, 1], [], []>} : vector<128x4xbf16>, vector<4x384xbf16>, vector<128x384xf32> -> vector<128x384xf32>
    %18 = arith.addf %12, %17 : vector<128x384xf32>
    %c0_18 = arith.constant 0 : index
    %c0_19 = arith.constant 0 : index
    %c18 = arith.constant 18 : index
    %19 = vector.load %arg1[%c0_18, %c0_19, %c18] : memref<1x4x512xbf16, #tpu.memory_space<vmem>>, vector<1x4x384xbf16>
    %20 = vector.shape_cast %19 : vector<1x4x384xbf16> to vector<4x384xbf16>
    %c3 = arith.constant 3 : index
    %c0_20 = arith.constant 0 : index
    %c0_21 = arith.constant 0 : index
    %21 = vector.load %arg2[%c3, %c0_20, %c0_21] : memref<9x128x4xbf16, #tpu.memory_space<vmem>>, vector<1x128x4xbf16>
    %22 = vector.shape_cast %21 : vector<1x128x4xbf16> to vector<128x4xbf16>
    %cst_22 = arith.constant dense<0.000000e+00> : vector<128x384xf32>
    %23 = tpu.matmul %22, %20, %cst_22 {dimension_numbers = #tpu.dot_dimension_numbers<[1], [0], [0], [1], [0, 0, 1, 1], [], []>} : vector<128x4xbf16>, vector<4x384xbf16>, vector<128x384xf32> -> vector<128x384xf32>
    %24 = arith.addf %18, %23 : vector<128x384xf32>
    %c0_23 = arith.constant 0 : index
    %c0_24 = arith.constant 0 : index
    %c19 = arith.constant 19 : index
    %25 = vector.load %arg1[%c0_23, %c0_24, %c19] : memref<1x4x512xbf16, #tpu.memory_space<vmem>>, vector<1x4x384xbf16>
    %26 = vector.shape_cast %25 : vector<1x4x384xbf16> to vector<4x384xbf16>
    %c4 = arith.constant 4 : index
    %c0_25 = arith.constant 0 : index
    %c0_26 = arith.constant 0 : index
    %27 = vector.load %arg2[%c4, %c0_25, %c0_26] : memref<9x128x4xbf16, #tpu.memory_space<vmem>>, vector<1x128x4xbf16>
    %28 = vector.shape_cast %27 : vector<1x128x4xbf16> to vector<128x4xbf16>
    %cst_27 = arith.constant dense<0.000000e+00> : vector<128x384xf32>
    %29 = tpu.matmul %28, %26, %cst_27 {dimension_numbers = #tpu.dot_dimension_numbers<[1], [0], [0], [1], [0, 0, 1, 1], [], []>} : vector<128x4xbf16>, vector<4x384xbf16>, vector<128x384xf32> -> vector<128x384xf32>
    %30 = arith.addf %24, %29 : vector<128x384xf32>
    %c0_28 = arith.constant 0 : index
    %c0_29 = arith.constant 0 : index
    %c20 = arith.constant 20 : index
    %31 = vector.load %arg1[%c0_28, %c0_29, %c20] : memref<1x4x512xbf16, #tpu.memory_space<vmem>>, vector<1x4x384xbf16>
    %32 = vector.shape_cast %31 : vector<1x4x384xbf16> to vector<4x384xbf16>
    %c5 = arith.constant 5 : index
    %c0_30 = arith.constant 0 : index
    %c0_31 = arith.constant 0 : index
    %33 = vector.load %arg2[%c5, %c0_30, %c0_31] : memref<9x128x4xbf16, #tpu.memory_space<vmem>>, vector<1x128x4xbf16>
    %34 = vector.shape_cast %33 : vector<1x128x4xbf16> to vector<128x4xbf16>
    %cst_32 = arith.constant dense<0.000000e+00> : vector<128x384xf32>
    %35 = tpu.matmul %34, %32, %cst_32 {dimension_numbers = #tpu.dot_dimension_numbers<[1], [0], [0], [1], [0, 0, 1, 1], [], []>} : vector<128x4xbf16>, vector<4x384xbf16>, vector<128x384xf32> -> vector<128x384xf32>
    %36 = arith.addf %30, %35 : vector<128x384xf32>
    %c0_33 = arith.constant 0 : index
    %c0_34 = arith.constant 0 : index
    %c36 = arith.constant 36 : index
    %37 = vector.load %arg1[%c0_33, %c0_34, %c36] : memref<1x4x512xbf16, #tpu.memory_space<vmem>>, vector<1x4x384xbf16>
    %38 = vector.shape_cast %37 : vector<1x4x384xbf16> to vector<4x384xbf16>
    %c6 = arith.constant 6 : index
    %c0_35 = arith.constant 0 : index
    %c0_36 = arith.constant 0 : index
    %39 = vector.load %arg2[%c6, %c0_35, %c0_36] : memref<9x128x4xbf16, #tpu.memory_space<vmem>>, vector<1x128x4xbf16>
    %40 = vector.shape_cast %39 : vector<1x128x4xbf16> to vector<128x4xbf16>
    %cst_37 = arith.constant dense<0.000000e+00> : vector<128x384xf32>
    %41 = tpu.matmul %40, %38, %cst_37 {dimension_numbers = #tpu.dot_dimension_numbers<[1], [0], [0], [1], [0, 0, 1, 1], [], []>} : vector<128x4xbf16>, vector<4x384xbf16>, vector<128x384xf32> -> vector<128x384xf32>
    %42 = arith.addf %36, %41 : vector<128x384xf32>
    %c0_38 = arith.constant 0 : index
    %c0_39 = arith.constant 0 : index
    %c37 = arith.constant 37 : index
    %43 = vector.load %arg1[%c0_38, %c0_39, %c37] : memref<1x4x512xbf16, #tpu.memory_space<vmem>>, vector<1x4x384xbf16>
    %44 = vector.shape_cast %43 : vector<1x4x384xbf16> to vector<4x384xbf16>
    %c7 = arith.constant 7 : index
    %c0_40 = arith.constant 0 : index
    %c0_41 = arith.constant 0 : index
    %45 = vector.load %arg2[%c7, %c0_40, %c0_41] : memref<9x128x4xbf16, #tpu.memory_space<vmem>>, vector<1x128x4xbf16>
    %46 = vector.shape_cast %45 : vector<1x128x4xbf16> to vector<128x4xbf16>
    %cst_42 = arith.constant dense<0.000000e+00> : vector<128x384xf32>
    %47 = tpu.matmul %46, %44, %cst_42 {dimension_numbers = #tpu.dot_dimension_numbers<[1], [0], [0], [1], [0, 0, 1, 1], [], []>} : vector<128x4xbf16>, vector<4x384xbf16>, vector<128x384xf32> -> vector<128x384xf32>
    %48 = arith.addf %42, %47 : vector<128x384xf32>
    %c0_43 = arith.constant 0 : index
    %c0_44 = arith.constant 0 : index
    %c38 = arith.constant 38 : index
    %49 = vector.load %arg1[%c0_43, %c0_44, %c38] : memref<1x4x512xbf16, #tpu.memory_space<vmem>>, vector<1x4x384xbf16>
    %50 = vector.shape_cast %49 : vector<1x4x384xbf16> to vector<4x384xbf16>
    %c8 = arith.constant 8 : index
    %c0_45 = arith.constant 0 : index
    %c0_46 = arith.constant 0 : index
    %51 = vector.load %arg2[%c8, %c0_45, %c0_46] : memref<9x128x4xbf16, #tpu.memory_space<vmem>>, vector<1x128x4xbf16>
    %52 = vector.shape_cast %51 : vector<1x128x4xbf16> to vector<128x4xbf16>
    %cst_47 = arith.constant dense<0.000000e+00> : vector<128x384xf32>
    %53 = tpu.matmul %52, %50, %cst_47 {dimension_numbers = #tpu.dot_dimension_numbers<[1], [0], [0], [1], [0, 0, 1, 1], [], []>} : vector<128x4xbf16>, vector<4x384xbf16>, vector<128x384xf32> -> vector<128x384xf32>
    %54 = arith.addf %48, %53 : vector<128x384xf32>
    %55 = arith.truncf %54 : vector<128x384xf32> to vector<128x384xbf16>
    %c0_48 = arith.constant 0 : index
    %c0_49 = arith.constant 0 : index
    %c0_50 = arith.constant 0 : index
    %56 = vector.load %arg5[%c0_48, %c0_49, %c0_50] : memref<1x128x384xbf16, #tpu.memory_space<vmem>>, vector<1x128x384xbf16>
    %57 = vector.shape_cast %56 : vector<1x128x384xbf16> to vector<128x384xbf16>
    %58 = vector.shape_cast %55 : vector<128x384xbf16> to vector<1x128x384xbf16>
    tpu.vector_store %arg5[%c0_48, %c0_49, %c0_50], %58 {strides = array<i32>} : memref<1x128x384xbf16, #tpu.memory_space<vmem>>, vector<1x128x384xbf16>,
    %c0_51 = arith.constant 0 : index
    %c0_52 = arith.constant 0 : index
    %59 = vector.load %arg3[%c0_51, %c0_52] : memref<1x384xf32, #tpu.memory_space<vmem>>, vector<1x384xf32>
    %60 = vector.broadcast %59 : vector<1x384xf32> to vector<128x384xf32>
    %61 = arith.mulf %54, %60 : vector<128x384xf32>
    %cst_53 = arith.constant dense<0.000000e+00> : vector<128xf32>
    %62 = vector.multi_reduction <add>, %61, %cst_53 [1] : vector<128x384xf32> to vector<128xf32>
    %63 = vector.shape_cast %62 : vector<128xf32> to vector<128x1xf32>
    %c0_54 = arith.constant 0 : index
    %c0_55 = arith.constant 0 : index
    %c0_56 = arith.constant 0 : index
    %64 = vector.load %arg7[%c0_54, %c0_55, %c0_56] : memref<1x128x1xf32, #tpu.memory_space<vmem>>, vector<1x128x1xf32>
    %65 = vector.shape_cast %64 : vector<1x128x1xf32> to vector<128x1xf32>
    %66 = vector.shape_cast %63 : vector<128x1xf32> to vector<1x128x1xf32>
    tpu.vector_store %arg7[%c0_54, %c0_55, %c0_56], %66 {strides = array<i32>} : memref<1x128x1xf32, #tpu.memory_space<vmem>>, vector<1x128x1xf32>,
    %67 = arith.mulf %61, %54 : vector<128x384xf32>
    %cst_57 = arith.constant dense<0.000000e+00> : vector<128xf32>
    %68 = vector.multi_reduction <add>, %67, %cst_57 [1] : vector<128x384xf32> to vector<128xf32>
    %69 = vector.shape_cast %68 : vector<128xf32> to vector<128x1xf32>
    %c0_58 = arith.constant 0 : index
    %c0_59 = arith.constant 0 : index
    %c0_60 = arith.constant 0 : index
    %70 = vector.load %arg8[%c0_58, %c0_59, %c0_60] : memref<1x128x1xf32, #tpu.memory_space<vmem>>, vector<1x128x1xf32>
    %71 = vector.shape_cast %70 : vector<1x128x1xf32> to vector<128x1xf32>
    %72 = vector.shape_cast %69 : vector<128x1xf32> to vector<1x128x1xf32>
    tpu.vector_store %arg8[%c0_58, %c0_59, %c0_60], %72 {strides = array<i32>} : memref<1x128x1xf32, #tpu.memory_space<vmem>>, vector<1x128x1xf32>,
    %c0_61 = arith.constant 0 : index
    %c0_62 = arith.constant 0 : index
    %c19_63 = arith.constant 19 : index
    %73 = vector.load %arg1[%c0_61, %c0_62, %c19_63] : memref<1x4x512xbf16, #tpu.memory_space<vmem>>, vector<1x4x384xbf16>
    %74 = vector.shape_cast %73 : vector<1x4x384xbf16> to vector<4x384xbf16>
    %c0_64 = arith.constant 0 : index
    %c0_65 = arith.constant 0 : index
    %75 = vector.load %arg4[%c0_64, %c0_65] : memref<128x4xbf16, #tpu.memory_space<vmem>>, vector<128x4xbf16>
    %cst_66 = arith.constant dense<0.000000e+00> : vector<128x384xf32>
    %76 = tpu.matmul %75, %74, %cst_66 {dimension_numbers = #tpu.dot_dimension_numbers<[1], [0], [0], [1], [0, 0, 1, 1], [], []>} : vector<128x4xbf16>, vector<4x384xbf16>, vector<128x384xf32> -> vector<128x384xf32>
    %77 = arith.truncf %76 : vector<128x384xf32> to vector<128x384xbf16>
    %c0_67 = arith.constant 0 : index
    %c0_68 = arith.constant 0 : index
    %c0_69 = arith.constant 0 : index
    %78 = vector.load %arg6[%c0_67, %c0_68, %c0_69] : memref<1x128x384xbf16, #tpu.memory_space<vmem>>, vector<1x128x384xbf16>
    %79 = vector.shape_cast %78 : vector<1x128x384xbf16> to vector<128x384xbf16>
    %80 = vector.shape_cast %77 : vector<128x384xbf16> to vector<1x128x384xbf16>
    tpu.vector_store %arg6[%c0_67, %c0_68, %c0_69], %80 {strides = array<i32>} : memref<1x128x384xbf16, #tpu.memory_space<vmem>>, vector<1x128x384xbf16>,
    %81 = vector.broadcast %59 : vector<1x384xf32> to vector<128x384xf32>
    %82 = arith.mulf %76, %81 : vector<128x384xf32>
    %cst_70 = arith.constant dense<0.000000e+00> : vector<128xf32>
    %83 = vector.multi_reduction <add>, %82, %cst_70 [1] : vector<128x384xf32> to vector<128xf32>
    %84 = vector.shape_cast %83 : vector<128xf32> to vector<128x1xf32>
    %c0_71 = arith.constant 0 : index
    %c0_72 = arith.constant 0 : index
    %c0_73 = arith.constant 0 : index
    %85 = vector.load %arg9[%c0_71, %c0_72, %c0_73] : memref<1x128x1xf32, #tpu.memory_space<vmem>>, vector<1x128x1xf32>
    %86 = vector.shape_cast %85 : vector<1x128x1xf32> to vector<128x1xf32>
    %87 = vector.shape_cast %84 : vector<128x1xf32> to vector<1x128x1xf32>
    tpu.vector_store %arg9[%c0_71, %c0_72, %c0_73], %87 {strides = array<i32>} : memref<1x128x1xf32, #tpu.memory_space<vmem>>, vector<1x128x1xf32>,
    %88 = arith.mulf %82, %76 : vector<128x384xf32>
    %cst_74 = arith.constant dense<0.000000e+00> : vector<128xf32>
    %89 = vector.multi_reduction <add>, %88, %cst_74 [1] : vector<128x384xf32> to vector<128xf32>
    %90 = vector.shape_cast %89 : vector<128xf32> to vector<128x1xf32>
    %c0_75 = arith.constant 0 : index
    %c0_76 = arith.constant 0 : index
    %c0_77 = arith.constant 0 : index
    %91 = vector.load %arg10[%c0_75, %c0_76, %c0_77] : memref<1x128x1xf32, #tpu.memory_space<vmem>>, vector<1x128x1xf32>
    %92 = vector.shape_cast %91 : vector<1x128x1xf32> to vector<128x1xf32>
    %93 = vector.shape_cast %90 : vector<128x1xf32> to vector<1x128x1xf32>
    tpu.vector_store %arg10[%c0_75, %c0_76, %c0_77], %93 {strides = array<i32>} : memref<1x128x1xf32, #tpu.memory_space<vmem>>, vector<1x128x1xf32>,
    return
  }
  func.func @transform_0(%arg0: i32) -> (i32, i32, i32) {
    %c0_i32 = arith.constant 0 : i32
    %c0_i32_0 = arith.constant 0 : i32
    %c0_i32_1 = arith.constant 0 : i32
    return %arg0, %c0_i32, %c0_i32_0 : i32, i32, i32
  }
  func.func @transform_1(%arg0: i32) -> (i32, i32, i32) {
    %c0_i32 = arith.constant 0 : i32
    %c0_i32_0 = arith.constant 0 : i32
    %c0_i32_1 = arith.constant 0 : i32
    %c0_i32_2 = arith.constant 0 : i32
    return %c0_i32, %c0_i32_0, %c0_i32_1 : i32, i32, i32
  }
  func.func @transform_2(%arg0: i32) -> (i32, i32) {
    %c0_i32 = arith.constant 0 : i32
    %c0_i32_0 = arith.constant 0 : i32
    %c0_i32_1 = arith.constant 0 : i32
    return %c0_i32, %c0_i32_0 : i32, i32
  }
  func.func @transform_3(%arg0: i32) -> (i32, i32) {
    %c0_i32 = arith.constant 0 : i32
    %c0_i32_0 = arith.constant 0 : i32
    %c0_i32_1 = arith.constant 0 : i32
    return %c0_i32, %c0_i32_0 : i32, i32
  }
  func.func @transform_4(%arg0: i32) -> (i32, i32, i32) {
    %c0_i32 = arith.constant 0 : i32
    %c0_i32_0 = arith.constant 0 : i32
    %c0_i32_1 = arith.constant 0 : i32
    return %arg0, %c0_i32, %c0_i32_0 : i32, i32, i32
  }
  func.func @transform_5(%arg0: i32) -> (i32, i32, i32) {
    %c0_i32 = arith.constant 0 : i32
    %c0_i32_0 = arith.constant 0 : i32
    %c0_i32_1 = arith.constant 0 : i32
    return %arg0, %c0_i32, %c0_i32_0 : i32, i32, i32
  }
  func.func @transform_6(%arg0: i32) -> (i32, i32, i32) {
    %c0_i32 = arith.constant 0 : i32
    %c0_i32_0 = arith.constant 0 : i32
    %c0_i32_1 = arith.constant 0 : i32
    return %arg0, %c0_i32, %c0_i32_0 : i32, i32, i32
  }
  func.func @transform_7(%arg0: i32) -> (i32, i32, i32) {
    %c0_i32 = arith.constant 0 : i32
    %c0_i32_0 = arith.constant 0 : i32
    %c0_i32_1 = arith.constant 0 : i32
    return %arg0, %c0_i32, %c0_i32_0 : i32, i32, i32
  }
  func.func @transform_8(%arg0: i32) -> (i32, i32, i32) {
    %c0_i32 = arith.constant 0 : i32
    %c0_i32_0 = arith.constant 0 : i32
    %c0_i32_1 = arith.constant 0 : i32
    return %arg0, %c0_i32, %c0_i32_0 : i32, i32, i32
  }
  func.func @transform_9(%arg0: i32) -> (i32, i32, i32) {
    %c0_i32 = arith.constant 0 : i32
    %c0_i32_0 = arith.constant 0 : i32
    %c0_i32_1 = arith.constant 0 : i32
    return %arg0, %c0_i32, %c0_i32_0 : i32, i32, i32
  }
}

</mosaic_0001>

<llo_original>
// kernel: tpu_custom_call.1
$region0: #{tpu_custom_call.1}
  #allocation0 [shape = 'u32[]', space=smem, size = 0x4, offset = 0x4, fixed_abs, tag = 'smem constant byte address 0x4 - core index']
  #allocation1 [shape = 'u32[144,128]{1,0:T(1,128)}', space=vmem, size = 0x12000, scoped, tag = 'internal scratch']
  %s0 = inlined_call_operand.vmem [shape: bf16[2,4,512], index: 0, kind: input, shape index: {}]
  %s1 = inlined_call_operand.vmem [shape: bf16[9,128,4], index: 1, kind: input, shape index: {}]
  %s2 = inlined_call_operand.vmem [shape: f32[1,384], index: 2, kind: input, shape index: {}]
  %s3 = inlined_call_operand.vmem [shape: bf16[128,4], index: 3, kind: input, shape index: {}]
  %s4 = inlined_call_operand.hbm [shape: bf16[2,128,384], index: 4, kind: output, shape index: {0}]
  %s5 = inlined_call_operand.hbm [shape: bf16[2,128,384], index: 5, kind: output, shape index: {1}]
  %s6 = inlined_call_operand.vmem [shape: f32[2,128,1], index: 6, kind: output, shape index: {2}]
  %s7 = inlined_call_operand.vmem [shape: f32[2,128,1], index: 7, kind: output, shape index: {3}]
  %s8 = inlined_call_operand.vmem [shape: f32[2,128,1], index: 8, kind: output, shape index: {4}]
  %s9 = inlined_call_operand.vmem [shape: f32[2,128,1], index: 9, kind: output, shape index: {5}]
  %10 = xla_tuple %s4, %s5, %s6, %s7, %s8, %s9
  %s11 = sld [smem:[#allocation0]]
  $region89: #{tpu_custom_call.1} parent=0
    _
  %s13 = ssub.s32 1, %s11
  %s14 = scalar_select 0, %s13, %s11
  $region1: #{tpu_custom_call.1} parent=0
    #allocation2 [shape = 'u8[196608]{0}', space=vmem, size = 0x30000, scoped, tag = 'output window, operand 0']
    #allocation3 [shape = 's32[2]{0}', space=sflag, size = 0x8, scoped, tag = 'scoped memory for tpu_custom_call.1']
    #allocation4 [shape = 'u8[196608]{0}', space=vmem, size = 0x30000, scoped, tag = 'output window, operand 1']
    #allocation5 [shape = 's32[2]{0}', space=sflag, size = 0x8, scoped, tag = 'scoped memory for tpu_custom_call.1']
    %15 = vsyncpa [#allocation3], 0
    %s16 = scalar_lea.sflag [#allocation3], 1
    %17 = vsyncpa %s16, 0
    %18 = vsyncpa [#allocation5], 0
    %s19 = scalar_lea.sflag [#allocation5], 1
    %20 = vsyncpa %s19, 0
    loop: start=0, step=1, limit=4
    $region2: #{tpu_custom_call.1} parent=1 // loop_pre_header
      _
    $region3: #{tpu_custom_call.1} parent=1 // loop_header
      %s22 = sphi 0, %s26
      %p23 = scmp.ge.s32.totalorder %s22, 4
      %s32 = sphi 0, %s34
      %s35 = sphi 0, %s32
      %s36 = sphi 0, %s35
      %s52 = sphi 0, %s36
      %s56 = sphi 0, %s56
      %s58 = sphi 0, %s56
      %s59 = sphi 0, %s58
      %s73 = sphi 0, %s59
      %s77 = sphi 0, %s77
      %s79 = sphi 0, %s77
      %s80 = sphi 0, %s79
      %s94 = sphi 0, %s80
      %s98 = sphi 0, %s98
      %s100 = sphi 0, %s98
      %s101 = sphi 0, %s100
      %s115 = sphi 0, %s101
      %s121 = sphi 0, %s123
      %s124 = sphi 0, %s121
      %s125 = sphi 0, %s124
      %s141 = sphi 0, %s125
      %s147 = sphi 0, %s149
      %s150 = sphi 0, %s147
      %s151 = sphi 0, %s150
      %s167 = sphi 0, %s151
      %s173 = sphi 0, %s175
      %s176 = sphi 0, %s173
      %s177 = sphi 0, %s176
      %s193 = sphi 0, %s177
      %s199 = sphi 0, %s201
      %s202 = sphi 0, %s199
      %s203 = sphi 0, %s202
      %s219 = sphi 0, %s203
      %s225 = sphi 0, %s227
      %s228 = sphi 0, %s225
      %s229 = sphi 0, %s228
      %s245 = sphi 0, %s229
      %s251 = sphi 0, %s253
      %s254 = sphi 0, %s251
      %s255 = sphi 0, %s254
      %s271 = sphi 0, %s255
    $region4: #{tpu_custom_call.1} parent=1 // loop_header_branch
      %25 = sbr.rel (%p23) target = $region8
    $region5: #{tpu_custom_call.1} parent=1 // loop_body
      %s27 = ssub.s32 %s22, 1
      %s28 = ssub.s32 %s22, 2
      %s29 = sadd.s32 %s22, 1
      %s30 = ssub.s32 %s22, %s29
      %p31 = scmp.eq.s32.totalorder %s30, 0
      %s33 = sadd.s32 %s32, 1
      %s34 = scalar_select %p31, %s32, %s33
      %p37 = pneg %p31
      %p38 = scmp.eq.s32.totalorder %s22, 1
      %p39 = por %p37, %p38
      %p40 = scmp.ne.s32.totalorder %s32, %s35
      %p41 = scmp.eq.s32.totalorder %s22, 0
      %p42 = por %p40, %p41
      %p43 = scmp.ne.s32.totalorder %s32, %s35
      %p44 = scmp.eq.s32.totalorder %s27, 1
      %p45 = por %p43, %p44
      %p46 = scmp.ne.s32.totalorder %s35, %s36
      %p47 = scmp.eq.s32.totalorder %s27, 0
      %p48 = por %p46, %p47
      %p49 = scmp.ne.s32.totalorder %s35, %s36
      %p50 = scmp.eq.s32.totalorder %s28, 1
      %p51 = por %p49, %p50
      %p53 = scmp.ne.s32.totalorder %s36, %s52
      %p54 = scmp.eq.s32.totalorder %s28, 0
      %p55 = por %p53, %p54
      %s57 = sadd.s32 %s56, 1
      %p60 = scmp.eq.s32.totalorder %s22, 1
      %p61 = scmp.ne.s32.totalorder %s56, %s58
      %p62 = scmp.eq.s32.totalorder %s22, 0
      %p63 = por %p61, %p62
      %p64 = scmp.ne.s32.totalorder %s56, %s58
      %p65 = scmp.eq.s32.totalorder %s27, 1
      %p66 = por %p64, %p65
      %p67 = scmp.ne.s32.totalorder %s58, %s59
      %p68 = scmp.eq.s32.totalorder %s27, 0
      %p69 = por %p67, %p68
      %p70 = scmp.ne.s32.totalorder %s58, %s59
      %p71 = scmp.eq.s32.totalorder %s28, 1
      %p72 = por %p70, %p71
      %p74 = scmp.ne.s32.totalorder %s59, %s73
      %p75 = scmp.eq.s32.totalorder %s28, 0
      %p76 = por %p74, %p75
      %s78 = sadd.s32 %s77, 1
      %p81 = scmp.eq.s32.totalorder %s22, 1
      %p82 = scmp.ne.s32.totalorder %s77, %s79
      %p83 = scmp.eq.s32.totalorder %s22, 0
      %p84 = por %p82, %p83
      %p85 = scmp.ne.s32.totalorder %s77, %s79
      %p86 = scmp.eq.s32.totalorder %s27, 1
      %p87 = por %p85, %p86
      %p88 = scmp.ne.s32.totalorder %s79, %s80
      %p89 = scmp.eq.s32.totalorder %s27, 0
      %p90 = por %p88, %p89
      %p91 = scmp.ne.s32.totalorder %s79, %s80
      %p92 = scmp.eq.s32.totalorder %s28, 1
      %p93 = por %p91, %p92
      %p95 = scmp.ne.s32.totalorder %s80, %s94
      %p96 = scmp.eq.s32.totalorder %s28, 0
      %p97 = por %p95, %p96
      %s99 = sadd.s32 %s98, 1
      %p102 = scmp.eq.s32.totalorder %s22, 1
      %p103 = scmp.ne.s32.totalorder %s98, %s100
      %p104 = scmp.eq.s32.totalorder %s22, 0
      %p105 = por %p103, %p104
      %p106 = scmp.ne.s32.totalorder %s98, %s100
      %p107 = scmp.eq.s32.totalorder %s27, 1
      %p108 = por %p106, %p107
      %p109 = scmp.ne.s32.totalorder %s100, %s101
      %p110 = scmp.eq.s32.totalorder %s27, 0
      %p111 = por %p109, %p110
      %p112 = scmp.ne.s32.totalorder %s100, %s101
      %p113 = scmp.eq.s32.totalorder %s28, 1
      %p114 = por %p112, %p113
      %p116 = scmp.ne.s32.totalorder %s101, %s115
      %p117 = scmp.eq.s32.totalorder %s28, 0
      %p118 = por %p116, %p117
      %s119 = ssub.s32 %s22, %s29
      %p120 = scmp.eq.s32.totalorder %s119, 0
      %s122 = sadd.s32 %s121, 1
      %s123 = scalar_select %p120, %s121, %s122
      %p126 = pneg %p120
      %p127 = scmp.eq.s32.totalorder %s22, 1
      %p128 = por %p126, %p127
      %p129 = scmp.ne.s32.totalorder %s121, %s124
      %p130 = scmp.eq.s32.totalorder %s22, 0
      %p131 = por %p129, %p130
      %p132 = scmp.ne.s32.totalorder %s121, %s124
      %p133 = scmp.eq.s32.totalorder %s27, 1
      %p134 = por %p132, %p133
      %p135 = scmp.ne.s32.totalorder %s124, %s125
      %p136 = scmp.eq.s32.totalorder %s27, 0
      %p137 = por %p135, %p136
      %p138 = scmp.ne.s32.totalorder %s124, %s125
      %p139 = scmp.eq.s32.totalorder %s28, 1
      %p140 = por %p138, %p139
      %p142 = scmp.ne.s32.totalorder %s125, %s141
      %p143 = scmp.eq.s32.totalorder %s28, 0
      %p144 = por %p142, %p143
      %s145 = ssub.s32 %s22, %s29
      %p146 = scmp.eq.s32.totalorder %s145, 0
      %s148 = sadd.s32 %s147, 1
      %s149 = scalar_select %p146, %s147, %s148
      %p152 = pneg %p146
      %p153 = scmp.eq.s32.totalorder %s22, 1
      %p154 = por %p152, %p153
      %p155 = scmp.ne.s32.totalorder %s147, %s150
      %p156 = scmp.eq.s32.totalorder %s22, 0
      %p157 = por %p155, %p156
      %p158 = scmp.ne.s32.totalorder %s147, %s150
      %p159 = scmp.eq.s32.totalorder %s27, 1
      %p160 = por %p158, %p159
      %p161 = scmp.ne.s32.totalorder %s150, %s151
      %p162 = scmp.eq.s32.totalorder %s27, 0
      %p163 = por %p161, %p162
      %p164 = scmp.ne.s32.totalorder %s150, %s151
      %p165 = scmp.eq.s32.totalorder %s28, 1
      %p166 = por %p164, %p165
      %p168 = scmp.ne.s32.totalorder %s151, %s167
      %p169 = scmp.eq.s32.totalorder %s28, 0
      %p170 = por %p168, %p169
      %s171 = ssub.s32 %s22, %s29
      %p172 = scmp.eq.s32.totalorder %s171, 0
      %s174 = sadd.s32 %s173, 1
      %s175 = scalar_select %p172, %s173, %s174
      %p178 = pneg %p172
      %p179 = scmp.eq.s32.totalorder %s22, 1
      %p180 = por %p178, %p179
      %p181 = scmp.ne.s32.totalorder %s173, %s176
      %p182 = scmp.eq.s32.totalorder %s22, 0
      %p183 = por %p181, %p182
      %p184 = scmp.ne.s32.totalorder %s173, %s176
      %p185 = scmp.eq.s32.totalorder %s27, 1
      %p186 = por %p184, %p185
      %p187 = scmp.ne.s32.totalorder %s176, %s177
      %p188 = scmp.eq.s32.totalorder %s27, 0
      %p189 = por %p187, %p188
      %p190 = scmp.ne.s32.totalorder %s176, %s177
      %p191 = scmp.eq.s32.totalorder %s28, 1
      %p192 = por %p190, %p191
      %p194 = scmp.ne.s32.totalorder %s177, %s193
      %p195 = scmp.eq.s32.totalorder %s28, 0
      %p196 = por %p194, %p195
      %s197 = ssub.s32 %s22, %s29
      %p198 = scmp.eq.s32.totalorder %s197, 0
      %s200 = sadd.s32 %s199, 1
      %s201 = scalar_select %p198, %s199, %s200
      %p204 = pneg %p198
      %p205 = scmp.eq.s32.totalorder %s22, 1
      %p206 = por %p204, %p205
      %p207 = scmp.ne.s32.totalorder %s199, %s202
      %p208 = scmp.eq.s32.totalorder %s22, 0
      %p209 = por %p207, %p208
      %p210 = scmp.ne.s32.totalorder %s199, %s202
      %p211 = scmp.eq.s32.totalorder %s27, 1
      %p212 = por %p210, %p211
      %p213 = scmp.ne.s32.totalorder %s202, %s203
      %p214 = scmp.eq.s32.totalorder %s27, 0
      %p215 = por %p213, %p214
      %p216 = scmp.ne.s32.totalorder %s202, %s203
      %p217 = scmp.eq.s32.totalorder %s28, 1
      %p218 = por %p216, %p217
      %p220 = scmp.ne.s32.totalorder %s203, %s219
      %p221 = scmp.eq.s32.totalorder %s28, 0
      %p222 = por %p220, %p221
      %s223 = ssub.s32 %s22, %s29
      %p224 = scmp.eq.s32.totalorder %s223, 0
      %s226 = sadd.s32 %s225, 1
      %s227 = scalar_select %p224, %s225, %s226
      %p230 = pneg %p224
      %p231 = scmp.eq.s32.totalorder %s22, 1
      %p232 = por %p230, %p231
      %p233 = scmp.ne.s32.totalorder %s225, %s228
      %p234 = scmp.eq.s32.totalorder %s22, 0
      %p235 = por %p233, %p234
      %p236 = scmp.ne.s32.totalorder %s225, %s228
      %p237 = scmp.eq.s32.totalorder %s27, 1
      %p238 = por %p236, %p237
      %p239 = scmp.ne.s32.totalorder %s228, %s229
      %p240 = scmp.eq.s32.totalorder %s27, 0
      %p241 = por %p239, %p240
      %p242 = scmp.ne.s32.totalorder %s228, %s229
      %p243 = scmp.eq.s32.totalorder %s28, 1
      %p244 = por %p242, %p243
      %p246 = scmp.ne.s32.totalorder %s229, %s245
      %p247 = scmp.eq.s32.totalorder %s28, 0
      %p248 = por %p246, %p247
      %s249 = ssub.s32 %s22, %s29
      %p250 = scmp.eq.s32.totalorder %s249, 0
      %s252 = sadd.s32 %s251, 1
      %s253 = scalar_select %p250, %s251, %s252
      %p256 = pneg %p250
      %p257 = scmp.eq.s32.totalorder %s22, 1
      %p258 = por %p256, %p257
      %p259 = scmp.ne.s32.totalorder %s251, %s254
      %p260 = scmp.eq.s32.totalorder %s22, 0
      %p261 = por %p259, %p260
      %p262 = scmp.ne.s32.totalorder %s251, %s254
      %p263 = scmp.eq.s32.totalorder %s27, 1
      %p264 = por %p262, %p263
      %p265 = scmp.ne.s32.totalorder %s254, %s255
      %p266 = scmp.eq.s32.totalorder %s27, 0
      %p267 = por %p265, %p266
      %p268 = scmp.ne.s32.totalorder %s254, %s255
      %p269 = scmp.eq.s32.totalorder %s28, 1
      %p270 = por %p268, %p269
      %p272 = scmp.ne.s32.totalorder %s255, %s271
      %p273 = scmp.eq.s32.totalorder %s28, 0
      %p274 = por %p272, %p273
      %p275 = scmp.le.s32.totalorder 1, %s22
      %p276 = scmp.lt.s32.totalorder %s22, 3
      %p277 = pnand %p275, %p276
      %p278 = pneg %p277
      // Predicated region
      $region9: #{tpu_custom_call.1} parent=5 // pred_check
        _
      $region10: #{tpu_custom_call.1} parent=5 // pred_check_branch
        %280 = sbr.rel (%p277) target = $region12
      $region11: #{tpu_custom_call.1} parent=5 // pred_region
        %s281 = ssub.s32 %s22, 1
        // Predicated region
        $region13: #{tpu_custom_call.1} parent=11 // pred_check
          %p282 = pneg %p69
        $region14: #{tpu_custom_call.1} parent=11 // pred_check_branch
          %284 = sbr.rel (%p282) target = $region16
        $region15: #{tpu_custom_call.1} parent=11 // pred_region
          _
        $region16: #{tpu_custom_call.1} parent=11 // pred_fallthru
          _
        // Predicated region
        $region17: #{tpu_custom_call.1} parent=11 // pred_check
          %p285 = pneg %p90
        $region18: #{tpu_custom_call.1} parent=11 // pred_check_branch
          %287 = sbr.rel (%p285) target = $region20
        $region19: #{tpu_custom_call.1} parent=11 // pred_region
          _
        $region20: #{tpu_custom_call.1} parent=11 // pred_fallthru
          _
        // Predicated region
        $region21: #{tpu_custom_call.1} parent=11 // pred_check
          %p288 = pneg %p111
        $region22: #{tpu_custom_call.1} parent=11 // pred_check_branch
          %290 = sbr.rel (%p288) target = $region24
        $region23: #{tpu_custom_call.1} parent=11 // pred_region
          _
        $region24: #{tpu_custom_call.1} parent=11 // pred_fallthru
          _
      $region12: #{tpu_custom_call.1} parent=5 // pred_fallthru
        _
      %p291 = scmp.lt.s32.totalorder %s22, 2
      // Predicated region
      $region25: #{tpu_custom_call.1} parent=5 // pred_check
        %p292 = pneg %p291
      $region26: #{tpu_custom_call.1} parent=5 // pred_check_branch
        %294 = sbr.rel (%p292) target = $region28
      $region27: #{tpu_custom_call.1} parent=5 // pred_region
        // Predicated region
        $region29: #{tpu_custom_call.1} parent=27 // pred_check
          %p295 = pneg %p42
        $region30: #{tpu_custom_call.1} parent=27 // pred_check_branch
          %297 = sbr.rel (%p295) target = $region32
        $region31: #{tpu_custom_call.1} parent=27 // pred_region
          %p298 = scmp.lt.s32.totalorder %s22, 1
          %s299 = scalar_select %p298, %s22, 1
          %s300 = smul.addr %s299, 4
          %s301 = smul.addr %s300, 2
          %s302 = scalar_lea.vmem %s0, %s301
        $region32: #{tpu_custom_call.1} parent=27 // pred_fallthru
          _
      $region28: #{tpu_custom_call.1} parent=5 // pred_fallthru
        _
      %p303 = scmp.le.s32.totalorder 1, %s22
      %p304 = scmp.lt.s32.totalorder %s22, 3
      %p305 = pnand %p303, %p304
      %p306 = pneg %p305
      // Predicated region
      $region33: #{tpu_custom_call.1} parent=5 // pred_check
        _
      $region34: #{tpu_custom_call.1} parent=5 // pred_check_branch
        %308 = sbr.rel (%p305) target = $region36
      $region35: #{tpu_custom_call.1} parent=5 // pred_region
        %s309 = ssub.s32 %s22, 1
        %p310 = scmp.lt.s32.totalorder %s27, 1
        %s311 = scalar_select %p310, %s27, 1
        %s312 = smul.addr %s311, 4
        %s313 = smul.addr %s312, 2
        %s314 = scalar_lea.vmem %s0, %s313
        %p315 = pneg %p48
        %p316 = pneg %p45
        %p317 = pneg %p69
        %p318 = pneg %p66
        %p319 = pneg %p90
        %p320 = pneg %p87
        %p321 = pneg %p111
        %p322 = pneg %p108
        %p323 = pneg %p137
        %p324 = pneg %p134
        %s325 = sand.u32 %s124, 1
        %s326 = scalar_lea.sflag [#allocation3], %s325
        %s327 = sand.u32 %s124, 1
        %s328 = smul.addr %s327, 192
        %s329 = scalar_lea.vmem [#allocation2], %s328
        %p330 = pneg %p163
        %p331 = pneg %p160
        %s332 = sand.u32 %s150, 1
        %s333 = scalar_lea.sflag [#allocation5], %s332
        %s334 = sand.u32 %s150, 1
        %s335 = smul.addr %s334, 192
        %s336 = scalar_lea.vmem [#allocation4], %s335
        %p337 = pneg %p189
        %p338 = pneg %p186
        %p339 = scmp.lt.s32.totalorder %s27, 1
        %s340 = scalar_select %p339, %s27, 1
        %s341 = smul.addr %s340, 16
        %s342 = smul.addr %s341, 8
        %s343 = scalar_lea.vmem %s6, %s342
        %p344 = pneg %p215
        %p345 = pneg %p212
        %p346 = scmp.lt.s32.totalorder %s27, 1
        %s347 = scalar_select %p346, %s27, 1
        %s348 = smul.addr %s347, 16
        %s349 = smul.addr %s348, 8
        %s350 = scalar_lea.vmem %s7, %s349
        %p351 = pneg %p241
        %p352 = pneg %p238
        %p353 = scmp.lt.s32.totalorder %s27, 1
        %s354 = scalar_select %p353, %s27, 1
        %s355 = smul.addr %s354, 16
        %s356 = smul.addr %s355, 8
        %s357 = scalar_lea.vmem %s8, %s356
        %p358 = pneg %p267
        %p359 = pneg %p264
        %p360 = scmp.lt.s32.totalorder %s27, 1
        %s361 = scalar_select %p360, %s27, 1
        %s362 = smul.addr %s361, 16
        %s363 = smul.addr %s362, 8
        %s364 = scalar_lea.vmem %s9, %s363
        %p365 = scmp.lt.s32.totalorder %s27, 1
        %s366 = scalar_select %p365, %s27, 1
        %s367 = smul.addr %s366, 4
        %s368 = smul.addr %s367, 2
        %s369 = scalar_lea.vmem %s0, %s368
        %p370 = scmp.lt.s32.totalorder %s27, 1
        %s371 = scalar_select %p370, %s27, 1
        %s372 = smul.addr %s371, 16
        %s373 = smul.addr %s372, 8
        %s374 = scalar_lea.vmem %s6, %s373
        %p375 = scmp.lt.s32.totalorder %s27, 1
        %s376 = scalar_select %p375, %s27, 1
        %s377 = smul.addr %s376, 16
        %s378 = smul.addr %s377, 8
        %s379 = scalar_lea.vmem %s7, %s378
        %p380 = scmp.lt.s32.totalorder %s27, 1
        %s381 = scalar_select %p380, %s27, 1
        %s382 = smul.addr %s381, 16
        %s383 = smul.addr %s382, 8
        %s384 = scalar_lea.vmem %s8, %s383
        %p385 = scmp.lt.s32.totalorder %s27, 1
        %s386 = scalar_select %p385, %s27, 1
        %s387 = smul.addr %s386, 16
        %s388 = smul.addr %s387, 8
        %s389 = scalar_lea.vmem %s9, %s388
        %v391 = vld [vmem:[%s369] sm:$0x3f]
        %v392 = vld [vmem:[%s1] sm:$0xf]
        %v393 = vld [vmem:[%s1 + $0x4] sm:$0xf]
        %v394 = vld [vmem:[%s1 + $0x8] sm:$0xf]
        %v395 = vld [vmem:[%s1 + $0xc] sm:$0xf]
        %v396 = vld [vmem:[%s1 + $0x10] sm:$0xf]
        %v397 = vld [vmem:[%s1 + $0x14] sm:$0xf]
        %v398 = vld [vmem:[%s1 + $0x18] sm:$0xf]
        %v399 = vld [vmem:[%s1 + $0x1c] sm:$0xf]
        %v400 = vld [vmem:[%s1 + $0x20] sm:$0xf]
        %v401 = vld [vmem:[%s1 + $0x24] sm:$0xf]
        %v402 = vld [vmem:[%s1 + $0x28] sm:$0xf]
        %v403 = vld [vmem:[%s1 + $0x2c] sm:$0xf]
        %v404 = vld [vmem:[%s1 + $0x30] sm:$0xf]
        %v405 = vld [vmem:[%s1 + $0x34] sm:$0xf]
        %v406 = vld [vmem:[%s1 + $0x38] sm:$0xf]
        %v407 = vld [vmem:[%s1 + $0x3c] sm:$0xf]
        %v408 = vld [vmem:[%s369] sm:$0xff]
        %s409 = scalar_lea.vmem %s1, 64
        %v410 = vld [vmem:[%s409] sm:$0xf]
        %v411 = vld [vmem:[%s409 + $0x4] sm:$0xf]
        %v412 = vld [vmem:[%s409 + $0x8] sm:$0xf]
        %v413 = vld [vmem:[%s409 + $0xc] sm:$0xf]
        %v414 = vld [vmem:[%s409 + $0x10] sm:$0xf]
        %v415 = vld [vmem:[%s409 + $0x14] sm:$0xf]
        %v416 = vld [vmem:[%s409 + $0x18] sm:$0xf]
        %v417 = vld [vmem:[%s409 + $0x1c] sm:$0xf]
        %v418 = vld [vmem:[%s409 + $0x20] sm:$0xf]
        %v419 = vld [vmem:[%s409 + $0x24] sm:$0xf]
        %v420 = vld [vmem:[%s409 + $0x28] sm:$0xf]
        %v421 = vld [vmem:[%s409 + $0x2c] sm:$0xf]
        %v422 = vld [vmem:[%s409 + $0x30] sm:$0xf]
        %v423 = vld [vmem:[%s409 + $0x34] sm:$0xf]
        %v424 = vld [vmem:[%s409 + $0x38] sm:$0xf]
        %v425 = vld [vmem:[%s409 + $0x3c] sm:$0xf]
        %v442 = vunpack.c.l.b16 %v410
        %v443 = vunpack.c.l.b16 %v411
        %v444 = vunpack.c.l.b16 %v412
        %v445 = vunpack.c.l.b16 %v413
        %v446 = vunpack.c.l.b16 %v414
        %v447 = vunpack.c.l.b16 %v415
        %v448 = vunpack.c.l.b16 %v416
        %v449 = vunpack.c.l.b16 %v417
        %v450 = vunpack.c.l.b16 %v418
        %v451 = vunpack.c.l.b16 %v419
        %v452 = vunpack.c.l.b16 %v420
        %v453 = vunpack.c.l.b16 %v421
        %v454 = vunpack.c.l.b16 %v422
        %v455 = vunpack.c.l.b16 %v423
        %v456 = vunpack.c.l.b16 %v424
        %v457 = vunpack.c.l.b16 %v425
        %v458 = vpack.c.b16 %v443, %v442
        %v459 = vpack.c.b16 %v445, %v444
        %v460 = vpack.c.b16 %v447, %v446
        %v461 = vpack.c.b16 %v449, %v448
        %v462 = vpack.c.b16 %v451, %v450
        %v463 = vpack.c.b16 %v453, %v452
        %v464 = vpack.c.b16 %v455, %v454
        %v465 = vpack.c.b16 %v457, %v456
        %v467 = vcombine.high %v408, %v408
        %v469 = vunpack.c.l.s4 1983009808
        %v470 = vunpack.c.0.s8 %v469
        %v471 = vlaneseq
        %v472 = vshrl.u32 %v471, 7
        %v473 = vsub.s32 %v470, %v472
        %v474 = vrot.slane %v408, %v473
        %v476 = vunpack.c.l.s4 1983009808
        %v477 = vunpack.c.0.s8 %v476
        %v478 = vlaneseq
        %v479 = vshrl.u32 %v478, 7
        %v480 = vsub.s32 %v477, %v479
        %v481 = vrot.slane %v467, %v480
        %v482 = vcombine.high %v474, %v474
        %v483 = vcombine.high %v481, %v481
        %484 = vrot.lane.b32.xlu0 %v474, 127
        %v485 = vpop.permute.xlu0 %484
        %486 = vrot.lane.b32.xlu0 %v482, 127
        %v487 = vpop.permute.xlu0 %486
        %488 = vrot.lane.b32.xlu0 %v481, 127
        %v489 = vpop.permute.xlu0 %488
        %490 = vrot.lane.b32.xlu0 %v483, 127
        %v491 = vpop.permute.xlu0 %490
        %vm492 = vcmask 1039360
        %v493 = vsel %vm492, %v485, %v487
        %v494 = vsel %vm492, %v487, %v489
        %v495 = vsel %vm492, %v489, %v491
        %vm496 = vcmask 31744
        %v498 = vsel %vm496, %v458, 0
        %v501 = vsel %vm496, %v459, 0
        %v504 = vsel %vm496, %v460, 0
        %v507 = vsel %vm496, %v461, 0
        %v510 = vsel %vm496, %v462, 0
        %v513 = vsel %vm496, %v463, 0
        %v516 = vsel %vm496, %v464, 0
        %v519 = vsel %vm496, %v465, 0
        %vm521 = vcmask 1041408
        %v523 = vsel %vm521, %v493, 0
        %v526 = vsel %vm521, %v494, 0
        %v529 = vsel %vm521, %v495, 0
        %531 = vmatprep.subr.bf16.mxu0 %v526
        %532 = vmatpush1.bf16.msra.mxu0 %v523
        %533 = vmatprep.subr.bf16.mxu0 0
        %534 = vmatpush1.bf16.msra.mxu0 0
        %535 = vmatprep.subr.bf16.mxu0 0
        %536 = vmatpush1.bf16.msra.mxu0 0
        %537 = vmatprep.subr.bf16.mxu0 0
        %538 = vmatpush1.bf16.msra.mxu0 0
        %539 = vmatprep.subr.bf16.mxu0 0
        %540 = vmatpush1.bf16.msra.mxu0 0
        %541 = vmatprep.subr.bf16.mxu0 0
        %542 = vmatpush1.bf16.msra.mxu0 0
        %543 = vmatprep.subr.bf16.mxu0 0
        %544 = vmatpush1.bf16.msra.mxu0 0
        %545 = vmatprep.subr.bf16.mxu0 0
        %546 = vmatpush1.bf16.msra.mxu0 0
        %547 = vmatprep.subr.bf16.mxu0 0
        %548 = vmatpush1.bf16.msra.mxu0 0
        %549 = vmatprep.subr.bf16.mxu0 0
        %550 = vmatpush1.bf16.msra.mxu0 0
        %551 = vmatprep.subr.bf16.mxu0 0
        %552 = vmatpush1.bf16.msra.mxu0 0
        %553 = vmatprep.subr.bf16.mxu0 0
        %554 = vmatpush1.bf16.msra.mxu0 0
        %555 = vmatprep.subr.bf16.mxu0 0
        %556 = vmatpush1.bf16.msra.mxu0 0
        %557 = vmatprep.subr.bf16.mxu0 0
        %558 = vmatpush1.bf16.msra.mxu0 0
        %559 = vmatprep.subr.bf16.mxu0 0
        %560 = vmatpush1.bf16.msra.mxu0 0
        %561 = vmatprep.subr.bf16.mxu0 0
        %562 = vmatpush1.bf16.msra.mxu0 0
        %563 = vmatprep.mubr.bf16.mxu0 0
        %564 = vmatmul.mubr.bf16.gmra.mrb[0].mxu0 %v498
        %v565 = vpop.f32.mrb[0].mxu0
        %v566 = vadd.f32 0.0, %v565
        %v567 = vpop.f32.mrb[0].mxu0
        %v568 = vadd.f32 0.0, %v567
        %v569 = vpop.f32.mrb[0].mxu0
        %v570 = vadd.f32 0.0, %v569
        %v571 = vpop.f32.mrb[0].mxu0
        %v572 = vadd.f32 0.0, %v571
        %573 = vmatprep.mubr.bf16.mxu0 0
        %574 = vmatmul.mubr.bf16.gmra.mrb[0].mxu0 %v501
        %v575 = vpop.f32.mrb[0].mxu0
        %v576 = vadd.f32 0.0, %v575
        %v577 = vpop.f32.mrb[0].mxu0
        %v578 = vadd.f32 0.0, %v577
        %v579 = vpop.f32.mrb[0].mxu0
        %v580 = vadd.f32 0.0, %v579
        %v581 = vpop.f32.mrb[0].mxu0
        %v582 = vadd.f32 0.0, %v581
        %583 = vmatprep.mubr.bf16.mxu0 0
        %584 = vmatmul.mubr.bf16.gmra.mrb[0].mxu0 %v504
        %v585 = vpop.f32.mrb[0].mxu0
        %v586 = vadd.f32 0.0, %v585
        %v587 = vpop.f32.mrb[0].mxu0
        %v588 = vadd.f32 0.0, %v587
        %v589 = vpop.f32.mrb[0].mxu0
        %v590 = vadd.f32 0.0, %v589
        %v591 = vpop.f32.mrb[0].mxu0
        %v592 = vadd.f32 0.0, %v591
        %593 = vmatprep.mubr.bf16.mxu0 0
        %594 = vmatmul.mubr.bf16.gmra.mrb[0].mxu0 %v507
        %v595 = vpop.f32.mrb[0].mxu0
        %v596 = vadd.f32 0.0, %v595
        %v597 = vpop.f32.mrb[0].mxu0
        %v598 = vadd.f32 0.0, %v597
        %v599 = vpop.f32.mrb[0].mxu0
        %v600 = vadd.f32 0.0, %v599
        %v601 = vpop.f32.mrb[0].mxu0
        %v602 = vadd.f32 0.0, %v601
        %603 = vmatprep.mubr.bf16.mxu0 0
        %604 = vmatmul.mubr.bf16.gmra.mrb[0].mxu0 %v510
        %v605 = vpop.f32.mrb[0].mxu0
        %v606 = vadd.f32 0.0, %v605
        %v607 = vpop.f32.mrb[0].mxu0
        %v608 = vadd.f32 0.0, %v607
        %v609 = vpop.f32.mrb[0].mxu0
        %v610 = vadd.f32 0.0, %v609
        %v611 = vpop.f32.mrb[0].mxu0
        %v612 = vadd.f32 0.0, %v611
        %613 = vmatprep.mubr.bf16.mxu0 0
        %614 = vmatmul.mubr.bf16.gmra.mrb[0].mxu0 %v513
        %v615 = vpop.f32.mrb[0].mxu0
        %v616 = vadd.f32 0.0, %v615
        %v617 = vpop.f32.mrb[0].mxu0
        %v618 = vadd.f32 0.0, %v617
        %v619 = vpop.f32.mrb[0].mxu0
        %v620 = vadd.f32 0.0, %v619
        %v621 = vpop.f32.mrb[0].mxu0
        %v622 = vadd.f32 0.0, %v621
        %623 = vmatprep.mubr.bf16.mxu0 0
        %624 = vmatmul.mubr.bf16.gmra.mrb[0].mxu0 %v516
        %v625 = vpop.f32.mrb[0].mxu0
        %v626 = vadd.f32 0.0, %v625
        %v627 = vpop.f32.mrb[0].mxu0
        %v628 = vadd.f32 0.0, %v627
        %v629 = vpop.f32.mrb[0].mxu0
        %v630 = vadd.f32 0.0, %v629
        %v631 = vpop.f32.mrb[0].mxu0
        %v632 = vadd.f32 0.0, %v631
        %633 = vmatprep.mubr.bf16.mxu0 0
        %634 = vmatmul.mubr.bf16.gmra.mrb[0].mxu0 %v519
        %v635 = vpop.f32.mrb[0].mxu0
        %v636 = vadd.f32 0.0, %v635
        %v637 = vpop.f32.mrb[0].mxu0
        %v638 = vadd.f32 0.0, %v637
        %v639 = vpop.f32.mrb[0].mxu0
        %v640 = vadd.f32 0.0, %v639
        %v641 = vpop.f32.mrb[0].mxu0
        %v642 = vadd.f32 0.0, %v641
        %643 = vdwg.mxu0
        %644 = vmatprep.subr.bf16.mxu0 0
        %645 = vmatpush1.bf16.msra.mxu0 %v529
        %646 = vmatprep.subr.bf16.mxu0 0
        %647 = vmatpush1.bf16.msra.mxu0 0
        %648 = vmatprep.subr.bf16.mxu0 0
        %649 = vmatpush1.bf16.msra.mxu0 0
        %650 = vmatprep.subr.bf16.mxu0 0
        %651 = vmatpush1.bf16.msra.mxu0 0
        %652 = vmatprep.subr.bf16.mxu0 0
        %653 = vmatpush1.bf16.msra.mxu0 0
        %654 = vmatprep.subr.bf16.mxu0 0
        %655 = vmatpush1.bf16.msra.mxu0 0
        %656 = vmatprep.subr.bf16.mxu0 0
        %657 = vmatpush1.bf16.msra.mxu0 0
        %658 = vmatprep.subr.bf16.mxu0 0
        %659 = vmatpush1.bf16.msra.mxu0 0
        %660 = vmatprep.subr.bf16.mxu0 0
        %661 = vmatpush1.bf16.msra.mxu0 0
        %662 = vmatprep.subr.bf16.mxu0 0
        %663 = vmatpush1.bf16.msra.mxu0 0
        %664 = vmatprep.subr.bf16.mxu0 0
        %665 = vmatpush1.bf16.msra.mxu0 0
        %666 = vmatprep.subr.bf16.mxu0 0
        %667 = vmatpush1.bf16.msra.mxu0 0
        %668 = vmatprep.subr.bf16.mxu0 0
        %669 = vmatpush1.bf16.msra.mxu0 0
        %670 = vmatprep.subr.bf16.mxu0 0
        %671 = vmatpush1.bf16.msra.mxu0 0
        %672 = vmatprep.subr.bf16.mxu0 0
        %673 = vmatpush1.bf16.msra.mxu0 0
        %674 = vmatprep.subr.bf16.mxu0 0
        %675 = vmatpush1.bf16.msra.mxu0 0
        %676 = vmatprep.mubr.bf16.mxu0 0
        %677 = vmatmul.mubr.bf16.gmra.mrb[0].mxu0 %v498
        %v678 = vpop.f32.mrb[0].mxu0
        %v679 = vadd.f32 0.0, %v678
        %v680 = vpop.f32.mrb[0].mxu0
        %v681 = vpop.f32.mrb[0].mxu0
        %v682 = vadd.f32 0.0, %v681
        %v683 = vpop.f32.mrb[0].mxu0
        %684 = vmatprep.mubr.bf16.mxu0 0
        %685 = vmatmul.mubr.bf16.gmra.mrb[0].mxu0 %v501
        %v686 = vpop.f32.mrb[0].mxu0
        %v687 = vadd.f32 0.0, %v686
        %v688 = vpop.f32.mrb[0].mxu0
        %v689 = vpop.f32.mrb[0].mxu0
        %v690 = vadd.f32 0.0, %v689
        %v691 = vpop.f32.mrb[0].mxu0
        %692 = vmatprep.mubr.bf16.mxu0 0
        %693 = vmatmul.mubr.bf16.gmra.mrb[0].mxu0 %v504
        %v694 = vpop.f32.mrb[0].mxu0
        %v695 = vadd.f32 0.0, %v694
        %v696 = vpop.f32.mrb[0].mxu0
        %v697 = vpop.f32.mrb[0].mxu0
        %v698 = vadd.f32 0.0, %v697
        %v699 = vpop.f32.mrb[0].mxu0
        %700 = vmatprep.mubr.bf16.mxu0 0
        %701 = vmatmul.mubr.bf16.gmra.mrb[0].mxu0 %v507
        %v702 = vpop.f32.mrb[0].mxu0
        %v703 = vadd.f32 0.0, %v702
        %v704 = vpop.f32.mrb[0].mxu0
        %v705 = vpop.f32.mrb[0].mxu0
        %v706 = vadd.f32 0.0, %v705
        %v707 = vpop.f32.mrb[0].mxu0
        %708 = vmatprep.mubr.bf16.mxu0 0
        %709 = vmatmul.mubr.bf16.gmra.mrb[0].mxu0 %v510
        %v710 = vpop.f32.mrb[0].mxu0
        %v711 = vadd.f32 0.0, %v710
        %v712 = vpop.f32.mrb[0].mxu0
        %v713 = vpop.f32.mrb[0].mxu0
        %v714 = vadd.f32 0.0, %v713
        %v715 = vpop.f32.mrb[0].mxu0
        %716 = vmatprep.mubr.bf16.mxu0 0
        %717 = vmatmul.mubr.bf16.gmra.mrb[0].mxu0 %v513
        %v718 = vpop.f32.mrb[0].mxu0
        %v719 = vadd.f32 0.0, %v718
        %v720 = vpop.f32.mrb[0].mxu0
        %v721 = vpop.f32.mrb[0].mxu0
        %v722 = vadd.f32 0.0, %v721
        %v723 = vpop.f32.mrb[0].mxu0
        %724 = vmatprep.mubr.bf16.mxu0 0
        %725 = vmatmul.mubr.bf16.gmra.mrb[0].mxu0 %v516
        %v726 = vpop.f32.mrb[0].mxu0
        %v727 = vadd.f32 0.0, %v726
        %v728 = vpop.f32.mrb[0].mxu0
        %v729 = vpop.f32.mrb[0].mxu0
        %v730 = vadd.f32 0.0, %v729
        %v731 = vpop.f32.mrb[0].mxu0
        %732 = vmatprep.mubr.bf16.mxu0 0
        %733 = vmatmul.mubr.bf16.gmra.mrb[0].mxu0 %v519
        %v734 = vpop.f32.mrb[0].mxu0
        %v735 = vadd.f32 0.0, %v734
        %v736 = vpop.f32.mrb[0].mxu0
        %v737 = vpop.f32.mrb[0].mxu0
        %v738 = vadd.f32 0.0, %v737
        %v739 = vpop.f32.mrb[0].mxu0
        %740 = vdwg.mxu0
        %v757 = vunpack.c.l.b16 %v392
        %v758 = vunpack.c.l.b16 %v393
        %v759 = vunpack.c.l.b16 %v394
        %v760 = vunpack.c.l.b16 %v395
        %v761 = vunpack.c.l.b16 %v396
        %v762 = vunpack.c.l.b16 %v397
        %v763 = vunpack.c.l.b16 %v398
        %v764 = vunpack.c.l.b16 %v399
        %v765 = vunpack.c.l.b16 %v400
        %v766 = vunpack.c.l.b16 %v401
        %v767 = vunpack.c.l.b16 %v402
        %v768 = vunpack.c.l.b16 %v403
        %v769 = vunpack.c.l.b16 %v404
        %v770 = vunpack.c.l.b16 %v405
        %v771 = vunpack.c.l.b16 %v406
        %v772 = vunpack.c.l.b16 %v407
        %v773 = vpack.c.b16 %v758, %v757
        %v774 = vpack.c.b16 %v760, %v759
        %v775 = vpack.c.b16 %v762, %v761
        %v776 = vpack.c.b16 %v764, %v763
        %v777 = vpack.c.b16 %v766, %v765
        %v778 = vpack.c.b16 %v768, %v767
        %v779 = vpack.c.b16 %v770, %v769
        %v780 = vpack.c.b16 %v772, %v771
        %v782 = vcombine.high %v391, %v391
        %v784 = vunpack.c.l.s4 1983009808
        %v785 = vunpack.c.0.s8 %v784
        %v786 = vlaneseq
        %v787 = vshrl.u32 %v786, 7
        %v788 = vsub.s32 %v785, %v787
        %v789 = vrot.slane %v391, %v788
        %v791 = vunpack.c.l.s4 1983009808
        %v792 = vunpack.c.0.s8 %v791
        %v793 = vlaneseq
        %v794 = vshrl.u32 %v793, 7
        %v795 = vsub.s32 %v792, %v794
        %v796 = vrot.slane %v782, %v795
        %v797 = vcombine.high %v789, %v789
        %v799 = vsel %vm496, %v773, 0
        %v802 = vsel %vm496, %v774, 0
        %v805 = vsel %vm496, %v775, 0
        %v808 = vsel %vm496, %v776, 0
        %v811 = vsel %vm496, %v777, 0
        %v814 = vsel %vm496, %v778, 0
        %v817 = vsel %vm496, %v779, 0
        %v820 = vsel %vm496, %v780, 0
        %v823 = vsel %vm521, %v789, 0
        %v826 = vsel %vm521, %v797, 0
        %v829 = vsel %vm521, %v796, 0
        %831 = vmatprep.subr.bf16.mxu0 %v826
        %832 = vmatpush1.bf16.msra.mxu0 %v823
        %833 = vmatprep.subr.bf16.mxu0 0
        %834 = vmatpush1.bf16.msra.mxu0 0
        %835 = vmatprep.subr.bf16.mxu0 0
        %836 = vmatpush1.bf16.msra.mxu0 0
        %837 = vmatprep.subr.bf16.mxu0 0
        %838 = vmatpush1.bf16.msra.mxu0 0
        %839 = vmatprep.subr.bf16.mxu0 0
        %840 = vmatpush1.bf16.msra.mxu0 0
        %841 = vmatprep.subr.bf16.mxu0 0
        %842 = vmatpush1.bf16.msra.mxu0 0
        %843 = vmatprep.subr.bf16.mxu0 0
        %844 = vmatpush1.bf16.msra.mxu0 0
        %845 = vmatprep.subr.bf16.mxu0 0
        %846 = vmatpush1.bf16.msra.mxu0 0
        %847 = vmatprep.subr.bf16.mxu0 0
        %848 = vmatpush1.bf16.msra.mxu0 0
        %849 = vmatprep.subr.bf16.mxu0 0
        %850 = vmatpush1.bf16.msra.mxu0 0
        %851 = vmatprep.subr.bf16.mxu0 0
        %852 = vmatpush1.bf16.msra.mxu0 0
        %853 = vmatprep.subr.bf16.mxu0 0
        %854 = vmatpush1.bf16.msra.mxu0 0
        %855 = vmatprep.subr.bf16.mxu0 0
        %856 = vmatpush1.bf16.msra.mxu0 0
        %857 = vmatprep.subr.bf16.mxu0 0
        %858 = vmatpush1.bf16.msra.mxu0 0
        %859 = vmatprep.subr.bf16.mxu0 0
        %860 = vmatpush1.bf16.msra.mxu0 0
        %861 = vmatprep.subr.bf16.mxu0 0
        %862 = vmatpush1.bf16.msra.mxu0 0
        %863 = vmatprep.mubr.bf16.mxu0 0
        %864 = vmatmul.mubr.bf16.gmra.mrb[0].mxu0 %v799
        %v865 = vpop.f32.mrb[0].mxu0
        %v866 = vadd.f32 %v566, %v865
        %v867 = vpop.f32.mrb[0].mxu0
        %v868 = vadd.f32 %v568, %v867
        %v869 = vpop.f32.mrb[0].mxu0
        %v870 = vadd.f32 %v570, %v869
        %v871 = vpop.f32.mrb[0].mxu0
        %v872 = vadd.f32 %v572, %v871
        %873 = vmatprep.mubr.bf16.mxu0 0
        %874 = vmatmul.mubr.bf16.gmra.mrb[0].mxu0 %v802
        %v875 = vpop.f32.mrb[0].mxu0
        %v876 = vadd.f32 %v576, %v875
        %v877 = vpop.f32.mrb[0].mxu0
        %v878 = vadd.f32 %v578, %v877
        %v879 = vpop.f32.mrb[0].mxu0
        %v880 = vadd.f32 %v580, %v879
        %v881 = vpop.f32.mrb[0].mxu0
        %v882 = vadd.f32 %v582, %v881
        %883 = vmatprep.mubr.bf16.mxu0 0
        %884 = vmatmul.mubr.bf16.gmra.mrb[0].mxu0 %v805
        %v885 = vpop.f32.mrb[0].mxu0
        %v886 = vadd.f32 %v586, %v885
        %v887 = vpop.f32.mrb[0].mxu0
        %v888 = vadd.f32 %v588, %v887
        %v889 = vpop.f32.mrb[0].mxu0
        %v890 = vadd.f32 %v590, %v889
        %v891 = vpop.f32.mrb[0].mxu0
        %v892 = vadd.f32 %v592, %v891
        %893 = vmatprep.mubr.bf16.mxu0 0
        %894 = vmatmul.mubr.bf16.gmra.mrb[0].mxu0 %v808
        %v895 = vpop.f32.mrb[0].mxu0
        %v896 = vadd.f32 %v596, %v895
        %v897 = vpop.f32.mrb[0].mxu0
        %v898 = vadd.f32 %v598, %v897
        %v899 = vpop.f32.mrb[0].mxu0
        %v900 = vadd.f32 %v600, %v899
        %v901 = vpop.f32.mrb[0].mxu0
        %v902 = vadd.f32 %v602, %v901
        %903 = vmatprep.mubr.bf16.mxu0 0
        %904 = vmatmul.mubr.bf16.gmra.mrb[0].mxu0 %v811
        %v905 = vpop.f32.mrb[0].mxu0
        %v906 = vadd.f32 %v606, %v905
        %v907 = vpop.f32.mrb[0].mxu0
        %v908 = vadd.f32 %v608, %v907
        %v909 = vpop.f32.mrb[0].mxu0
        %v910 = vadd.f32 %v610, %v909
        %v911 = vpop.f32.mrb[0].mxu0
        %v912 = vadd.f32 %v612, %v911
        %913 = vmatprep.mubr.bf16.mxu0 0
        %914 = vmatmul.mubr.bf16.gmra.mrb[0].mxu0 %v814
        %v915 = vpop.f32.mrb[0].mxu0
        %v916 = vadd.f32 %v616, %v915
        %v917 = vpop.f32.mrb[0].mxu0
        %v918 = vadd.f32 %v618, %v917
        %v919 = vpop.f32.mrb[0].mxu0
        %v920 = vadd.f32 %v620, %v919
        %v921 = vpop.f32.mrb[0].mxu0
        %v922 = vadd.f32 %v622, %v921
        %923 = vmatprep.mubr.bf16.mxu0 0
        %924 = vmatmul.mubr.bf16.gmra.mrb[0].mxu0 %v817
        %v925 = vpop.f32.mrb[0].mxu0
        %v926 = vadd.f32 %v626, %v925
        %v927 = vpop.f32.mrb[0].mxu0
        %v928 = vadd.f32 %v628, %v927
        %v929 = vpop.f32.mrb[0].mxu0
        %v930 = vadd.f32 %v630, %v929
        %v931 = vpop.f32.mrb[0].mxu0
        %v932 = vadd.f32 %v632, %v931
        %933 = vmatprep.mubr.bf16.mxu0 0
        %934 = vmatmul.mubr.bf16.gmra.mrb[0].mxu0 %v820
        %v935 = vpop.f32.mrb[0].mxu0
        %v936 = vadd.f32 %v636, %v935
        %v937 = vpop.f32.mrb[0].mxu0
        %v938 = vadd.f32 %v638, %v937
        %v939 = vpop.f32.mrb[0].mxu0
        %v940 = vadd.f32 %v640, %v939
        %v941 = vpop.f32.mrb[0].mxu0
        %v942 = vadd.f32 %v642, %v941
        %943 = vdwg.mxu0
        %944 = vmatprep.subr.bf16.mxu0 0
        %945 = vmatpush1.bf16.msra.mxu0 %v829
        %946 = vmatprep.subr.bf16.mxu0 0
        %947 = vmatpush1.bf16.msra.mxu0 0
        %948 = vmatprep.subr.bf16.mxu0 0
        %949 = vmatpush1.bf16.msra.mxu0 0
        %950 = vmatprep.subr.bf16.mxu0 0
        %951 = vmatpush1.bf16.msra.mxu0 0
        %952 = vmatprep.subr.bf16.mxu0 0
        %953 = vmatpush1.bf16.msra.mxu0 0
        %954 = vmatprep.subr.bf16.mxu0 0
        %955 = vmatpush1.bf16.msra.mxu0 0
        %956 = vmatprep.subr.bf16.mxu0 0
        %957 = vmatpush1.bf16.msra.mxu0 0
        %958 = vmatprep.subr.bf16.mxu0 0
        %959 = vmatpush1.bf16.msra.mxu0 0
        %960 = vmatprep.subr.bf16.mxu0 0
        %961 = vmatpush1.bf16.msra.mxu0 0
        %962 = vmatprep.subr.bf16.mxu0 0
        %963 = vmatpush1.bf16.msra.mxu0 0
        %964 = vmatprep.subr.bf16.mxu0 0
        %965 = vmatpush1.bf16.msra.mxu0 0
        %966 = vmatprep.subr.bf16.mxu0 0
        %967 = vmatpush1.bf16.msra.mxu0 0
        %968 = vmatprep.subr.bf16.mxu0 0
        %969 = vmatpush1.bf16.msra.mxu0 0
        %970 = vmatprep.subr.bf16.mxu0 0
        %971 = vmatpush1.bf16.msra.mxu0 0
        %972 = vmatprep.subr.bf16.mxu0 0
        %973 = vmatpush1.bf16.msra.mxu0 0
        %974 = vmatprep.subr.bf16.mxu0 0
        %975 = vmatpush1.bf16.msra.mxu0 0
        %976 = vmatprep.mubr.bf16.mxu0 0
        %977 = vmatmul.mubr.bf16.gmra.mrb[0].mxu0 %v799
        %v978 = vpop.f32.mrb[0].mxu0
        %v979 = vadd.f32 %v679, %v978
        %v980 = vpop.f32.mrb[0].mxu0
        %v981 = vpop.f32.mrb[0].mxu0
        %v982 = vadd.f32 %v682, %v981
        %v983 = vpop.f32.mrb[0].mxu0
        %984 = vmatprep.mubr.bf16.mxu0 0
        %985 = vmatmul.mubr.bf16.gmra.mrb[0].mxu0 %v802
        %v986 = vpop.f32.mrb[0].mxu0
        %v987 = vadd.f32 %v687, %v986
        %v988 = vpop.f32.mrb[0].mxu0
        %v989 = vpop.f32.mrb[0].mxu0
        %v990 = vadd.f32 %v690, %v989
        %v991 = vpop.f32.mrb[0].mxu0
        %992 = vmatprep.mubr.bf16.mxu0 0
        %993 = vmatmul.mubr.bf16.gmra.mrb[0].mxu0 %v805
        %v994 = vpop.f32.mrb[0].mxu0
        %v995 = vadd.f32 %v695, %v994
        %v996 = vpop.f32.mrb[0].mxu0
        %v997 = vpop.f32.mrb[0].mxu0
        %v998 = vadd.f32 %v698, %v997
        %v999 = vpop.f32.mrb[0].mxu0
        %1000 = vmatprep.mubr.bf16.mxu0 0
        %1001 = vmatmul.mubr.bf16.gmra.mrb[0].mxu0 %v808
        %v1002 = vpop.f32.mrb[0].mxu0
        %v1003 = vadd.f32 %v703, %v1002
        %v1004 = vpop.f32.mrb[0].mxu0
        %v1005 = vpop.f32.mrb[0].mxu0
        %v1006 = vadd.f32 %v706, %v1005
        %v1007 = vpop.f32.mrb[0].mxu0
        %1008 = vmatprep.mubr.bf16.mxu0 0
        %1009 = vmatmul.mubr.bf16.gmra.mrb[0].mxu0 %v811
        %v1010 = vpop.f32.mrb[0].mxu0
        %v1011 = vadd.f32 %v711, %v1010
        %v1012 = vpop.f32.mrb[0].mxu0
        %v1013 = vpop.f32.mrb[0].mxu0
        %v1014 = vadd.f32 %v714, %v1013
        %v1015 = vpop.f32.mrb[0].mxu0
        %1016 = vmatprep.mubr.bf16.mxu0 0
        %1017 = vmatmul.mubr.bf16.gmra.mrb[0].mxu0 %v814
        %v1018 = vpop.f32.mrb[0].mxu0
        %v1019 = vadd.f32 %v719, %v1018
        %v1020 = vpop.f32.mrb[0].mxu0
        %v1021 = vpop.f32.mrb[0].mxu0
        %v1022 = vadd.f32 %v722, %v1021
        %v1023 = vpop.f32.mrb[0].mxu0
        %1024 = vmatprep.mubr.bf16.mxu0 0
        %1025 = vmatmul.mubr.bf16.gmra.mrb[0].mxu0 %v817
        %v1026 = vpop.f32.mrb[0].mxu0
        %v1027 = vadd.f32 %v727, %v1026
        %v1028 = vpop.f32.mrb[0].mxu0
        %v1029 = vpop.f32.mrb[0].mxu0
        %v1030 = vadd.f32 %v730, %v1029
        %v1031 = vpop.f32.mrb[0].mxu0
        %1032 = vmatprep.mubr.bf16.mxu0 0
        %1033 = vmatmul.mubr.bf16.gmra.mrb[0].mxu0 %v820
        %v1034 = vpop.f32.mrb[0].mxu0
        %v1035 = vadd.f32 %v735, %v1034
        %v1036 = vpop.f32.mrb[0].mxu0
        %v1037 = vpop.f32.mrb[0].mxu0
        %v1038 = vadd.f32 %v738, %v1037
        %v1039 = vpop.f32.mrb[0].mxu0
        %1040 = vdwg.mxu0
        %v1041 = vld [vmem:[%s369] sm:$0xff]
        %s1042 = scalar_lea.vmem %s1, 128
        %v1043 = vld [vmem:[%s1042] sm:$0xf]
        %v1044 = vld [vmem:[%s1042 + $0x4] sm:$0xf]
        %v1045 = vld [vmem:[%s1042 + $0x8] sm:$0xf]
        %v1046 = vld [vmem:[%s1042 + $0xc] sm:$0xf]
        %v1047 = vld [vmem:[%s1042 + $0x10] sm:$0xf]
        %v1048 = vld [vmem:[%s1042 + $0x14] sm:$0xf]
        %v1049 = vld [vmem:[%s1042 + $0x18] sm:$0xf]
        %v1050 = vld [vmem:[%s1042 + $0x1c] sm:$0xf]
        %v1051 = vld [vmem:[%s1042 + $0x20] sm:$0xf]
        %v1052 = vld [vmem:[%s1042 + $0x24] sm:$0xf]
        %v1053 = vld [vmem:[%s1042 + $0x28] sm:$0xf]
        %v1054 = vld [vmem:[%s1042 + $0x2c] sm:$0xf]
        %v1055 = vld [vmem:[%s1042 + $0x30] sm:$0xf]
        %v1056 = vld [vmem:[%s1042 + $0x34] sm:$0xf]
        %v1057 = vld [vmem:[%s1042 + $0x38] sm:$0xf]
        %v1058 = vld [vmem:[%s1042 + $0x3c] sm:$0xf]
        %v1075 = vunpack.c.l.b16 %v1043
        %v1076 = vunpack.c.l.b16 %v1044
        %v1077 = vunpack.c.l.b16 %v1045
        %v1078 = vunpack.c.l.b16 %v1046
        %v1079 = vunpack.c.l.b16 %v1047
        %v1080 = vunpack.c.l.b16 %v1048
        %v1081 = vunpack.c.l.b16 %v1049
        %v1082 = vunpack.c.l.b16 %v1050
        %v1083 = vunpack.c.l.b16 %v1051
        %v1084 = vunpack.c.l.b16 %v1052
        %v1085 = vunpack.c.l.b16 %v1053
        %v1086 = vunpack.c.l.b16 %v1054
        %v1087 = vunpack.c.l.b16 %v1055
        %v1088 = vunpack.c.l.b16 %v1056
        %v1089 = vunpack.c.l.b16 %v1057
        %v1090 = vunpack.c.l.b16 %v1058
        %v1091 = vpack.c.b16 %v1076, %v1075
        %v1092 = vpack.c.b16 %v1078, %v1077
        %v1093 = vpack.c.b16 %v1080, %v1079
        %v1094 = vpack.c.b16 %v1082, %v1081
        %v1095 = vpack.c.b16 %v1084, %v1083
        %v1096 = vpack.c.b16 %v1086, %v1085
        %v1097 = vpack.c.b16 %v1088, %v1087
        %v1098 = vpack.c.b16 %v1090, %v1089
        %v1100 = vcombine.high %v1041, %v1041
        %v1102 = vunpack.c.l.s4 1983009808
        %v1103 = vunpack.c.0.s8 %v1102
        %v1104 = vlaneseq
        %v1105 = vshrl.u32 %v1104, 7
        %v1106 = vsub.s32 %v1103, %v1105
        %v1107 = vrot.slane %v1041, %v1106
        %v1109 = vunpack.c.l.s4 1983009808
        %v1110 = vunpack.c.0.s8 %v1109
        %v1111 = vlaneseq
        %v1112 = vshrl.u32 %v1111, 7
        %v1113 = vsub.s32 %v1110, %v1112
        %v1114 = vrot.slane %v1100, %v1113
        %v1115 = vcombine.high %v1107, %v1107
        %v1116 = vcombine.high %v1114, %v1114
        %1117 = vrot.lane.b32.xlu0 %v1107, 126
        %v1118 = vpop.permute.xlu0 %1117
        %1119 = vrot.lane.b32.xlu0 %v1115, 126
        %v1120 = vpop.permute.xlu0 %1119
        %1121 = vrot.lane.b32.xlu0 %v1114, 126
        %v1122 = vpop.permute.xlu0 %1121
        %1123 = vrot.lane.b32.xlu0 %v1116, 126
        %v1124 = vpop.permute.xlu0 %1123
        %vm1125 = vcmask 1031168
        %v1126 = vsel %vm1125, %v1118, %v1120
        %v1127 = vsel %vm1125, %v1120, %v1122
        %v1128 = vsel %vm1125, %v1122, %v1124
        %v1130 = vsel %vm496, %v1091, 0
        %v1133 = vsel %vm496, %v1092, 0
        %v1136 = vsel %vm496, %v1093, 0
        %v1139 = vsel %vm496, %v1094, 0
        %v1142 = vsel %vm496, %v1095, 0
        %v1145 = vsel %vm496, %v1096, 0
        %v1148 = vsel %vm496, %v1097, 0
        %v1151 = vsel %vm496, %v1098, 0
        %v1154 = vsel %vm521, %v1126, 0
        %v1157 = vsel %vm521, %v1127, 0
        %v1160 = vsel %vm521, %v1128, 0
        %1162 = vmatprep.subr.bf16.mxu0 %v1157
        %1163 = vmatpush1.bf16.msra.mxu0 %v1154
        %1164 = vmatprep.subr.bf16.mxu0 0
        %1165 = vmatpush1.bf16.msra.mxu0 0
        %1166 = vmatprep.subr.bf16.mxu0 0
        %1167 = vmatpush1.bf16.msra.mxu0 0
        %1168 = vmatprep.subr.bf16.mxu0 0
        %1169 = vmatpush1.bf16.msra.mxu0 0
        %1170 = vmatprep.subr.bf16.mxu0 0
        %1171 = vmatpush1.bf16.msra.mxu0 0
        %1172 = vmatprep.subr.bf16.mxu0 0
        %1173 = vmatpush1.bf16.msra.mxu0 0
        %1174 = vmatprep.subr.bf16.mxu0 0
        %1175 = vmatpush1.bf16.msra.mxu0 0
        %1176 = vmatprep.subr.bf16.mxu0 0
        %1177 = vmatpush1.bf16.msra.mxu0 0
        %1178 = vmatprep.subr.bf16.mxu0 0
        %1179 = vmatpush1.bf16.msra.mxu0 0
        %1180 = vmatprep.subr.bf16.mxu0 0
        %1181 = vmatpush1.bf16.msra.mxu0 0
        %1182 = vmatprep.subr.bf16.mxu0 0
        %1183 = vmatpush1.bf16.msra.mxu0 0
        %1184 = vmatprep.subr.bf16.mxu0 0
        %1185 = vmatpush1.bf16.msra.mxu0 0
        %1186 = vmatprep.subr.bf16.mxu0 0
        %1187 = vmatpush1.bf16.msra.mxu0 0
        %1188 = vmatprep.subr.bf16.mxu0 0
        %1189 = vmatpush1.bf16.msra.mxu0 0
        %1190 = vmatprep.subr.bf16.mxu0 0
        %1191 = vmatpush1.bf16.msra.mxu0 0
        %1192 = vmatprep.subr.bf16.mxu0 0
        %1193 = vmatpush1.bf16.msra.mxu0 0
        %1194 = vmatprep.mubr.bf16.mxu0 0
        %1195 = vmatmul.mubr.bf16.gmra.mrb[0].mxu0 %v1130
        %v1196 = vpop.f32.mrb[0].mxu0
        %v1197 = vadd.f32 0.0, %v1196
        %v1198 = vpop.f32.mrb[0].mxu0
        %v1199 = vadd.f32 0.0, %v1198
        %v1200 = vpop.f32.mrb[0].mxu0
        %v1201 = vadd.f32 0.0, %v1200
        %v1202 = vpop.f32.mrb[0].mxu0
        %v1203 = vadd.f32 0.0, %v1202
        %1204 = vmatprep.mubr.bf16.mxu0 0
        %1205 = vmatmul.mubr.bf16.gmra.mrb[0].mxu0 %v1133
        %v1206 = vpop.f32.mrb[0].mxu0
        %v1207 = vadd.f32 0.0, %v1206
        %v1208 = vpop.f32.mrb[0].mxu0
        %v1209 = vadd.f32 0.0, %v1208
        %v1210 = vpop.f32.mrb[0].mxu0
        %v1211 = vadd.f32 0.0, %v1210
        %v1212 = vpop.f32.mrb[0].mxu0
        %v1213 = vadd.f32 0.0, %v1212
        %1214 = vmatprep.mubr.bf16.mxu0 0
        %1215 = vmatmul.mubr.bf16.gmra.mrb[0].mxu0 %v1136
        %v1216 = vpop.f32.mrb[0].mxu0
        %v1217 = vadd.f32 0.0, %v1216
        %v1218 = vpop.f32.mrb[0].mxu0
        %v1219 = vadd.f32 0.0, %v1218
        %v1220 = vpop.f32.mrb[0].mxu0
        %v1221 = vadd.f32 0.0, %v1220
        %v1222 = vpop.f32.mrb[0].mxu0
        %v1223 = vadd.f32 0.0, %v1222
        %1224 = vmatprep.mubr.bf16.mxu0 0
        %1225 = vmatmul.mubr.bf16.gmra.mrb[0].mxu0 %v1139
        %v1226 = vpop.f32.mrb[0].mxu0
        %v1227 = vadd.f32 0.0, %v1226
        %v1228 = vpop.f32.mrb[0].mxu0
        %v1229 = vadd.f32 0.0, %v1228
        %v1230 = vpop.f32.mrb[0].mxu0
        %v1231 = vadd.f32 0.0, %v1230
        %v1232 = vpop.f32.mrb[0].mxu0
        %v1233 = vadd.f32 0.0, %v1232
        %1234 = vmatprep.mubr.bf16.mxu0 0
        %1235 = vmatmul.mubr.bf16.gmra.mrb[0].mxu0 %v1142
        %v1236 = vpop.f32.mrb[0].mxu0
        %v1237 = vadd.f32 0.0, %v1236
        %v1238 = vpop.f32.mrb[0].mxu0
        %v1239 = vadd.f32 0.0, %v1238
        %v1240 = vpop.f32.mrb[0].mxu0
        %v1241 = vadd.f32 0.0, %v1240
        %v1242 = vpop.f32.mrb[0].mxu0
        %v1243 = vadd.f32 0.0, %v1242
        %1244 = vmatprep.mubr.bf16.mxu0 0
        %1245 = vmatmul.mubr.bf16.gmra.mrb[0].mxu0 %v1145
        %v1246 = vpop.f32.mrb[0].mxu0
        %v1247 = vadd.f32 0.0, %v1246
        %v1248 = vpop.f32.mrb[0].mxu0
        %v1249 = vadd.f32 0.0, %v1248
        %v1250 = vpop.f32.mrb[0].mxu0
        %v1251 = vadd.f32 0.0, %v1250
        %v1252 = vpop.f32.mrb[0].mxu0
        %v1253 = vadd.f32 0.0, %v1252
        %1254 = vmatprep.mubr.bf16.mxu0 0
        %1255 = vmatmul.mubr.bf16.gmra.mrb[0].mxu0 %v1148
        %v1256 = vpop.f32.mrb[0].mxu0
        %v1257 = vadd.f32 0.0, %v1256
        %v1258 = vpop.f32.mrb[0].mxu0
        %v1259 = vadd.f32 0.0, %v1258
        %v1260 = vpop.f32.mrb[0].mxu0
        %v1261 = vadd.f32 0.0, %v1260
        %v1262 = vpop.f32.mrb[0].mxu0
        %v1263 = vadd.f32 0.0, %v1262
        %1264 = vmatprep.mubr.bf16.mxu0 0
        %1265 = vmatmul.mubr.bf16.gmra.mrb[0].mxu0 %v1151
        %v1266 = vpop.f32.mrb[0].mxu0
        %v1267 = vadd.f32 0.0, %v1266
        %v1268 = vpop.f32.mrb[0].mxu0
        %v1269 = vadd.f32 0.0, %v1268
        %v1270 = vpop.f32.mrb[0].mxu0
        %v1271 = vadd.f32 0.0, %v1270
        %v1272 = vpop.f32.mrb[0].mxu0
        %v1273 = vadd.f32 0.0, %v1272
        %1274 = vdwg.mxu0
        %1275 = vmatprep.subr.bf16.mxu0 0
        %1276 = vmatpush1.bf16.msra.mxu0 %v1160
        %1277 = vmatprep.subr.bf16.mxu0 0
        %1278 = vmatpush1.bf16.msra.mxu0 0
        %1279 = vmatprep.subr.bf16.mxu0 0
        %1280 = vmatpush1.bf16.msra.mxu0 0
        %1281 = vmatprep.subr.bf16.mxu0 0
        %1282 = vmatpush1.bf16.msra.mxu0 0
        %1283 = vmatprep.subr.bf16.mxu0 0
        %1284 = vmatpush1.bf16.msra.mxu0 0
        %1285 = vmatprep.subr.bf16.mxu0 0
        %1286 = vmatpush1.bf16.msra.mxu0 0
        %1287 = vmatprep.subr.bf16.mxu0 0
        %1288 = vmatpush1.bf16.msra.mxu0 0
        %1289 = vmatprep.subr.bf16.mxu0 0
        %1290 = vmatpush1.bf16.msra.mxu0 0
        %1291 = vmatprep.subr.bf16.mxu0 0
        %1292 = vmatpush1.bf16.msra.mxu0 0
        %1293 = vmatprep.subr.bf16.mxu0 0
        %1294 = vmatpush1.bf16.msra.mxu0 0
        %1295 = vmatprep.subr.bf16.mxu0 0
        %1296 = vmatpush1.bf16.msra.mxu0 0
        %1297 = vmatprep.subr.bf16.mxu0 0
        %1298 = vmatpush1.bf16.msra.mxu0 0
        %1299 = vmatprep.subr.bf16.mxu0 0
        %1300 = vmatpush1.bf16.msra.mxu0 0
        %1301 = vmatprep.subr.bf16.mxu0 0
        %1302 = vmatpush1.bf16.msra.mxu0 0
        %1303 = vmatprep.subr.bf16.mxu0 0
        %1304 = vmatpush1.bf16.msra.mxu0 0
        %1305 = vmatprep.subr.bf16.mxu0 0
        %1306 = vmatpush1.bf16.msra.mxu0 0
        %1307 = vmatprep.mubr.bf16.mxu0 0
        %1308 = vmatmul.mubr.bf16.gmra.mrb[0].mxu0 %v1130
        %v1309 = vpop.f32.mrb[0].mxu0
        %v1310 = vadd.f32 0.0, %v1309
        %v1311 = vpop.f32.mrb[0].mxu0
        %v1312 = vpop.f32.mrb[0].mxu0
        %v1313 = vadd.f32 0.0, %v1312
        %v1314 = vpop.f32.mrb[0].mxu0
        %1315 = vmatprep.mubr.bf16.mxu0 0
        %1316 = vmatmul.mubr.bf16.gmra.mrb[0].mxu0 %v1133
        %v1317 = vpop.f32.mrb[0].mxu0
        %v1318 = vadd.f32 0.0, %v1317
        %v1319 = vpop.f32.mrb[0].mxu0
        %v1320 = vpop.f32.mrb[0].mxu0
        %v1321 = vadd.f32 0.0, %v1320
        %v1322 = vpop.f32.mrb[0].mxu0
        %1323 = vmatprep.mubr.bf16.mxu0 0
        %1324 = vmatmul.mubr.bf16.gmra.mrb[0].mxu0 %v1136
        %v1325 = vpop.f32.mrb[0].mxu0
        %v1326 = vadd.f32 0.0, %v1325
        %v1327 = vpop.f32.mrb[0].mxu0
        %v1328 = vpop.f32.mrb[0].mxu0
        %v1329 = vadd.f32 0.0, %v1328
        %v1330 = vpop.f32.mrb[0].mxu0
        %1331 = vmatprep.mubr.bf16.mxu0 0
        %1332 = vmatmul.mubr.bf16.gmra.mrb[0].mxu0 %v1139
        %v1333 = vpop.f32.mrb[0].mxu0
        %v1334 = vadd.f32 0.0, %v1333
        %v1335 = vpop.f32.mrb[0].mxu0
        %v1336 = vpop.f32.mrb[0].mxu0
        %v1337 = vadd.f32 0.0, %v1336
        %v1338 = vpop.f32.mrb[0].mxu0
        %1339 = vmatprep.mubr.bf16.mxu0 0
        %1340 = vmatmul.mubr.bf16.gmra.mrb[0].mxu0 %v1142
        %v1341 = vpop.f32.mrb[0].mxu0
        %v1342 = vadd.f32 0.0, %v1341
        %v1343 = vpop.f32.mrb[0].mxu0
        %v1344 = vpop.f32.mrb[0].mxu0
        %v1345 = vadd.f32 0.0, %v1344
        %v1346 = vpop.f32.mrb[0].mxu0
        %1347 = vmatprep.mubr.bf16.mxu0 0
        %1348 = vmatmul.mubr.bf16.gmra.mrb[0].mxu0 %v1145
        %v1349 = vpop.f32.mrb[0].mxu0
        %v1350 = vadd.f32 0.0, %v1349
        %v1351 = vpop.f32.mrb[0].mxu0
        %v1352 = vpop.f32.mrb[0].mxu0
        %v1353 = vadd.f32 0.0, %v1352
        %v1354 = vpop.f32.mrb[0].mxu0
        %1355 = vmatprep.mubr.bf16.mxu0 0
        %1356 = vmatmul.mubr.bf16.gmra.mrb[0].mxu0 %v1148
        %v1357 = vpop.f32.mrb[0].mxu0
        %v1358 = vadd.f32 0.0, %v1357
        %v1359 = vpop.f32.mrb[0].mxu0
        %v1360 = vpop.f32.mrb[0].mxu0
        %v1361 = vadd.f32 0.0, %v1360
        %v1362 = vpop.f32.mrb[0].mxu0
        %1363 = vmatprep.mubr.bf16.mxu0 0
        %1364 = vmatmul.mubr.bf16.gmra.mrb[0].mxu0 %v1151
        %v1365 = vpop.f32.mrb[0].mxu0
        %v1366 = vadd.f32 0.0, %v1365
        %v1367 = vpop.f32.mrb[0].mxu0
        %v1368 = vpop.f32.mrb[0].mxu0
        %v1369 = vadd.f32 0.0, %v1368
        %v1370 = vpop.f32.mrb[0].mxu0
        %1371 = vdwg.mxu0
        %v1372 = vadd.f32 %v866, %v1197
        %v1373 = vadd.f32 %v868, %v1199
        %v1374 = vadd.f32 %v979, %v1310
        %v1375 = vadd.f32 %v870, %v1201
        %v1376 = vadd.f32 %v872, %v1203
        %v1377 = vadd.f32 %v982, %v1313
        %v1378 = vadd.f32 %v876, %v1207
        %v1379 = vadd.f32 %v878, %v1209
        %v1380 = vadd.f32 %v987, %v1318
        %v1381 = vadd.f32 %v880, %v1211
        %v1382 = vadd.f32 %v882, %v1213
        %v1383 = vadd.f32 %v990, %v1321
        %v1384 = vadd.f32 %v886, %v1217
        %v1385 = vadd.f32 %v888, %v1219
        %v1386 = vadd.f32 %v995, %v1326
        %v1387 = vadd.f32 %v890, %v1221
        %v1388 = vadd.f32 %v892, %v1223
        %v1389 = vadd.f32 %v998, %v1329
        %v1390 = vadd.f32 %v896, %v1227
        %v1391 = vadd.f32 %v898, %v1229
        %v1392 = vadd.f32 %v1003, %v1334
        %v1393 = vadd.f32 %v900, %v1231
        %v1394 = vadd.f32 %v902, %v1233
        %v1395 = vadd.f32 %v1006, %v1337
        %v1396 = vadd.f32 %v906, %v1237
        %v1397 = vadd.f32 %v908, %v1239
        %v1398 = vadd.f32 %v1011, %v1342
        %v1399 = vadd.f32 %v910, %v1241
        %v1400 = vadd.f32 %v912, %v1243
        %v1401 = vadd.f32 %v1014, %v1345
        %v1402 = vadd.f32 %v916, %v1247
        %v1403 = vadd.f32 %v918, %v1249
        %v1404 = vadd.f32 %v1019, %v1350
        %v1405 = vadd.f32 %v920, %v1251
        %v1406 = vadd.f32 %v922, %v1253
        %v1407 = vadd.f32 %v1022, %v1353
        %v1408 = vadd.f32 %v926, %v1257
        %v1409 = vadd.f32 %v928, %v1259
        %v1410 = vadd.f32 %v1027, %v1358
        %v1411 = vadd.f32 %v930, %v1261
        %v1412 = vadd.f32 %v932, %v1263
        %v1413 = vadd.f32 %v1030, %v1361
        %v1414 = vadd.f32 %v936, %v1267
        %v1415 = vadd.f32 %v938, %v1269
        %v1416 = vadd.f32 %v1035, %v1366
        %v1417 = vadd.f32 %v940, %v1271
        %v1418 = vadd.f32 %v942, %v1273
        %v1419 = vadd.f32 %v1038, %v1369
        %v1420 = vld [vmem:[%s369] sm:$0xff]
        %s1421 = scalar_lea.vmem %s1, 192
        %v1422 = vld [vmem:[%s1421] sm:$0xf]
        %v1423 = vld [vmem:[%s1421 + $0x4] sm:$0xf]
        %v1424 = vld [vmem:[%s1421 + $0x8] sm:$0xf]
        %v1425 = vld [vmem:[%s1421 + $0xc] sm:$0xf]
        %v1426 = vld [vmem:[%s1421 + $0x10] sm:$0xf]
        %v1427 = vld [vmem:[%s1421 + $0x14] sm:$0xf]
        %v1428 = vld [vmem:[%s1421 + $0x18] sm:$0xf]
        %v1429 = vld [vmem:[%s1421 + $0x1c] sm:$0xf]
        %v1430 = vld [vmem:[%s1421 + $0x20] sm:$0xf]
        %v1431 = vld [vmem:[%s1421 + $0x24] sm:$0xf]
        %v1432 = vld [vmem:[%s1421 + $0x28] sm:$0xf]
        %v1433 = vld [vmem:[%s1421 + $0x2c] sm:$0xf]
        %v1434 = vld [vmem:[%s1421 + $0x30] sm:$0xf]
        %v1435 = vld [vmem:[%s1421 + $0x34] sm:$0xf]
        %v1436 = vld [vmem:[%s1421 + $0x38] sm:$0xf]
        %v1437 = vld [vmem:[%s1421 + $0x3c] sm:$0xf]
        %v1454 = vunpack.c.l.b16 %v1422
        %v1455 = vunpack.c.l.b16 %v1423
        %v1456 = vunpack.c.l.b16 %v1424
        %v1457 = vunpack.c.l.b16 %v1425
        %v1458 = vunpack.c.l.b16 %v1426
        %v1459 = vunpack.c.l.b16 %v1427
        %v1460 = vunpack.c.l.b16 %v1428
        %v1461 = vunpack.c.l.b16 %v1429
        %v1462 = vunpack.c.l.b16 %v1430
        %v1463 = vunpack.c.l.b16 %v1431
        %v1464 = vunpack.c.l.b16 %v1432
        %v1465 = vunpack.c.l.b16 %v1433
        %v1466 = vunpack.c.l.b16 %v1434
        %v1467 = vunpack.c.l.b16 %v1435
        %v1468 = vunpack.c.l.b16 %v1436
        %v1469 = vunpack.c.l.b16 %v1437
        %v1470 = vpack.c.b16 %v1455, %v1454
        %v1471 = vpack.c.b16 %v1457, %v1456
        %v1472 = vpack.c.b16 %v1459, %v1458
        %v1473 = vpack.c.b16 %v1461, %v1460
        %v1474 = vpack.c.b16 %v1463, %v1462
        %v1475 = vpack.c.b16 %v1465, %v1464
        %v1476 = vpack.c.b16 %v1467, %v1466
        %v1477 = vpack.c.b16 %v1469, %v1468
        %v1479 = vcombine.high %v1420, %v1420
        %v1481 = vunpack.c.l.s4 1983009808
        %v1482 = vunpack.c.0.s8 %v1481
        %v1483 = vlaneseq
        %v1484 = vshrl.u32 %v1483, 7
        %v1485 = vsub.s32 %v1482, %v1484
        %v1486 = vrot.slane %v1420, %v1485
        %v1488 = vunpack.c.l.s4 1983009808
        %v1489 = vunpack.c.0.s8 %v1488
        %v1490 = vlaneseq
        %v1491 = vshrl.u32 %v1490, 7
        %v1492 = vsub.s32 %v1489, %v1491
        %v1493 = vrot.slane %v1479, %v1492
        %v1494 = vcombine.high %v1486, %v1486
        %v1495 = vcombine.high %v1493, %v1493
        %1496 = vrot.lane.b32.xlu0 %v1486, 110
        %v1497 = vpop.permute.xlu0 %1496
        %1498 = vrot.lane.b32.xlu0 %v1494, 110
        %v1499 = vpop.permute.xlu0 %1498
        %1500 = vrot.lane.b32.xlu0 %v1493, 110
        %v1501 = vpop.permute.xlu0 %1500
        %1502 = vrot.lane.b32.xlu0 %v1495, 110
        %v1503 = vpop.permute.xlu0 %1502
        %vm1504 = vcmask 900096
        %v1505 = vsel %vm1504, %v1497, %v1499
        %v1506 = vsel %vm1504, %v1499, %v1501
        %v1507 = vsel %vm1504, %v1501, %v1503
        %v1509 = vsel %vm496, %v1470, 0
        %v1512 = vsel %vm496, %v1471, 0
        %v1515 = vsel %vm496, %v1472, 0
        %v1518 = vsel %vm496, %v1473, 0
        %v1521 = vsel %vm496, %v1474, 0
        %v1524 = vsel %vm496, %v1475, 0
        %v1527 = vsel %vm496, %v1476, 0
        %v1530 = vsel %vm496, %v1477, 0
        %v1533 = vsel %vm521, %v1505, 0
        %v1536 = vsel %vm521, %v1506, 0
        %v1539 = vsel %vm521, %v1507, 0
        %1541 = vmatprep.subr.bf16.mxu0 %v1536
        %1542 = vmatpush1.bf16.msra.mxu0 %v1533
        %1543 = vmatprep.subr.bf16.mxu0 0
        %1544 = vmatpush1.bf16.msra.mxu0 0
        %1545 = vmatprep.subr.bf16.mxu0 0
        %1546 = vmatpush1.bf16.msra.mxu0 0
        %1547 = vmatprep.subr.bf16.mxu0 0
        %1548 = vmatpush1.bf16.msra.mxu0 0
        %1549 = vmatprep.subr.bf16.mxu0 0
        %1550 = vmatpush1.bf16.msra.mxu0 0
        %1551 = vmatprep.subr.bf16.mxu0 0
        %1552 = vmatpush1.bf16.msra.mxu0 0
        %1553 = vmatprep.subr.bf16.mxu0 0
        %1554 = vmatpush1.bf16.msra.mxu0 0
        %1555 = vmatprep.subr.bf16.mxu0 0
        %1556 = vmatpush1.bf16.msra.mxu0 0
        %1557 = vmatprep.subr.bf16.mxu0 0
        %1558 = vmatpush1.bf16.msra.mxu0 0
        %1559 = vmatprep.subr.bf16.mxu0 0
        %1560 = vmatpush1.bf16.msra.mxu0 0
        %1561 = vmatprep.subr.bf16.mxu0 0
        %1562 = vmatpush1.bf16.msra.mxu0 0
        %1563 = vmatprep.subr.bf16.mxu0 0
        %1564 = vmatpush1.bf16.msra.mxu0 0
        %1565 = vmatprep.subr.bf16.mxu0 0
        %1566 = vmatpush1.bf16.msra.mxu0 0
        %1567 = vmatprep.subr.bf16.mxu0 0
        %1568 = vmatpush1.bf16.msra.mxu0 0
        %1569 = vmatprep.subr.bf16.mxu0 0
        %1570 = vmatpush1.bf16.msra.mxu0 0
        %1571 = vmatprep.subr.bf16.mxu0 0
        %1572 = vmatpush1.bf16.msra.mxu0 0
        %1573 = vmatprep.mubr.bf16.mxu0 0
        %1574 = vmatmul.mubr.bf16.gmra.mrb[0].mxu0 %v1509
        %v1575 = vpop.f32.mrb[0].mxu0
        %v1576 = vadd.f32 0.0, %v1575
        %v1577 = vpop.f32.mrb[0].mxu0
        %v1578 = vadd.f32 0.0, %v1577
        %v1579 = vpop.f32.mrb[0].mxu0
        %v1580 = vadd.f32 0.0, %v1579
        %v1581 = vpop.f32.mrb[0].mxu0
        %v1582 = vadd.f32 0.0, %v1581
        %1583 = vmatprep.mubr.bf16.mxu0 0
        %1584 = vmatmul.mubr.bf16.gmra.mrb[0].mxu0 %v1512
        %v1585 = vpop.f32.mrb[0].mxu0
        %v1586 = vadd.f32 0.0, %v1585
        %v1587 = vpop.f32.mrb[0].mxu0
        %v1588 = vadd.f32 0.0, %v1587
        %v1589 = vpop.f32.mrb[0].mxu0
        %v1590 = vadd.f32 0.0, %v1589
        %v1591 = vpop.f32.mrb[0].mxu0
        %v1592 = vadd.f32 0.0, %v1591
        %1593 = vmatprep.mubr.bf16.mxu0 0
        %1594 = vmatmul.mubr.bf16.gmra.mrb[0].mxu0 %v1515
        %v1595 = vpop.f32.mrb[0].mxu0
        %v1596 = vadd.f32 0.0, %v1595
        %v1597 = vpop.f32.mrb[0].mxu0
        %v1598 = vadd.f32 0.0, %v1597
        %v1599 = vpop.f32.mrb[0].mxu0
        %v1600 = vadd.f32 0.0, %v1599
        %v1601 = vpop.f32.mrb[0].mxu0
        %v1602 = vadd.f32 0.0, %v1601
        %1603 = vmatprep.mubr.bf16.mxu0 0
        %1604 = vmatmul.mubr.bf16.gmra.mrb[0].mxu0 %v1518
        %v1605 = vpop.f32.mrb[0].mxu0
        %v1606 = vadd.f32 0.0, %v1605
        %v1607 = vpop.f32.mrb[0].mxu0
        %v1608 = vadd.f32 0.0, %v1607
        %v1609 = vpop.f32.mrb[0].mxu0
        %v1610 = vadd.f32 0.0, %v1609
        %v1611 = vpop.f32.mrb[0].mxu0
        %v1612 = vadd.f32 0.0, %v1611
        %1613 = vmatprep.mubr.bf16.mxu0 0
        %1614 = vmatmul.mubr.bf16.gmra.mrb[0].mxu0 %v1521
        %v1615 = vpop.f32.mrb[0].mxu0
        %v1616 = vadd.f32 0.0, %v1615
        %v1617 = vpop.f32.mrb[0].mxu0
        %v1618 = vadd.f32 0.0, %v1617
        %v1619 = vpop.f32.mrb[0].mxu0
        %v1620 = vadd.f32 0.0, %v1619
        %v1621 = vpop.f32.mrb[0].mxu0
        %v1622 = vadd.f32 0.0, %v1621
        %1623 = vmatprep.mubr.bf16.mxu0 0
        %1624 = vmatmul.mubr.bf16.gmra.mrb[0].mxu0 %v1524
        %v1625 = vpop.f32.mrb[0].mxu0
        %v1626 = vadd.f32 0.0, %v1625
        %v1627 = vpop.f32.mrb[0].mxu0
        %v1628 = vadd.f32 0.0, %v1627
        %v1629 = vpop.f32.mrb[0].mxu0
        %v1630 = vadd.f32 0.0, %v1629
        %v1631 = vpop.f32.mrb[0].mxu0
        %v1632 = vadd.f32 0.0, %v1631
        %1633 = vmatprep.mubr.bf16.mxu0 0
        %1634 = vmatmul.mubr.bf16.gmra.mrb[0].mxu0 %v1527
        %v1635 = vpop.f32.mrb[0].mxu0
        %v1636 = vadd.f32 0.0, %v1635
        %v1637 = vpop.f32.mrb[0].mxu0
        %v1638 = vadd.f32 0.0, %v1637
        %v1639 = vpop.f32.mrb[0].mxu0
        %v1640 = vadd.f32 0.0, %v1639
        %v1641 = vpop.f32.mrb[0].mxu0
        %v1642 = vadd.f32 0.0, %v1641
        %1643 = vmatprep.mubr.bf16.mxu0 0
        %1644 = vmatmul.mubr.bf16.gmra.mrb[0].mxu0 %v1530
        %v1645 = vpop.f32.mrb[0].mxu0
        %v1646 = vadd.f32 0.0, %v1645
        %v1647 = vpop.f32.mrb[0].mxu0
        %v1648 = vadd.f32 0.0, %v1647
        %v1649 = vpop.f32.mrb[0].mxu0
        %v1650 = vadd.f32 0.0, %v1649
        %v1651 = vpop.f32.mrb[0].mxu0
        %v1652 = vadd.f32 0.0, %v1651
        %1653 = vdwg.mxu0
        %1654 = vmatprep.subr.bf16.mxu0 0
        %1655 = vmatpush1.bf16.msra.mxu0 %v1539
        %1656 = vmatprep.subr.bf16.mxu0 0
        %1657 = vmatpush1.bf16.msra.mxu0 0
        %1658 = vmatprep.subr.bf16.mxu0 0
        %1659 = vmatpush1.bf16.msra.mxu0 0
        %1660 = vmatprep.subr.bf16.mxu0 0
        %1661 = vmatpush1.bf16.msra.mxu0 0
        %1662 = vmatprep.subr.bf16.mxu0 0
        %1663 = vmatpush1.bf16.msra.mxu0 0
        %1664 = vmatprep.subr.bf16.mxu0 0
        %1665 = vmatpush1.bf16.msra.mxu0 0
        %1666 = vmatprep.subr.bf16.mxu0 0
        %1667 = vmatpush1.bf16.msra.mxu0 0
        %1668 = vmatprep.subr.bf16.mxu0 0
        %1669 = vmatpush1.bf16.msra.mxu0 0
        %1670 = vmatprep.subr.bf16.mxu0 0
        %1671 = vmatpush1.bf16.msra.mxu0 0
        %1672 = vmatprep.subr.bf16.mxu0 0
        %1673 = vmatpush1.bf16.msra.mxu0 0
        %1674 = vmatprep.subr.bf16.mxu0 0
        %1675 = vmatpush1.bf16.msra.mxu0 0
        %1676 = vmatprep.subr.bf16.mxu0 0
        %1677 = vmatpush1.bf16.msra.mxu0 0
        %1678 = vmatprep.subr.bf16.mxu0 0
        %1679 = vmatpush1.bf16.msra.mxu0 0
        %1680 = vmatprep.subr.bf16.mxu0 0
        %1681 = vmatpush1.bf16.msra.mxu0 0
        %1682 = vmatprep.subr.bf16.mxu0 0
        %1683 = vmatpush1.bf16.msra.mxu0 0
        %1684 = vmatprep.subr.bf16.mxu0 0
        %1685 = vmatpush1.bf16.msra.mxu0 0
        %1686 = vmatprep.mubr.bf16.mxu0 0
        %1687 = vmatmul.mubr.bf16.gmra.mrb[0].mxu0 %v1509
        %v1688 = vpop.f32.mrb[0].mxu0
        %v1689 = vadd.f32 0.0, %v1688
        %v1690 = vpop.f32.mrb[0].mxu0
        %v1691 = vpop.f32.mrb[0].mxu0
        %v1692 = vadd.f32 0.0, %v1691
        %v1693 = vpop.f32.mrb[0].mxu0
        %1694 = vmatprep.mubr.bf16.mxu0 0
        %1695 = vmatmul.mubr.bf16.gmra.mrb[0].mxu0 %v1512
        %v1696 = vpop.f32.mrb[0].mxu0
        %v1697 = vadd.f32 0.0, %v1696
        %v1698 = vpop.f32.mrb[0].mxu0
        %v1699 = vpop.f32.mrb[0].mxu0
        %v1700 = vadd.f32 0.0, %v1699
        %v1701 = vpop.f32.mrb[0].mxu0
        %1702 = vmatprep.mubr.bf16.mxu0 0
        %1703 = vmatmul.mubr.bf16.gmra.mrb[0].mxu0 %v1515
        %v1704 = vpop.f32.mrb[0].mxu0
        %v1705 = vadd.f32 0.0, %v1704
        %v1706 = vpop.f32.mrb[0].mxu0
        %v1707 = vpop.f32.mrb[0].mxu0
        %v1708 = vadd.f32 0.0, %v1707
        %v1709 = vpop.f32.mrb[0].mxu0
        %1710 = vmatprep.mubr.bf16.mxu0 0
        %1711 = vmatmul.mubr.bf16.gmra.mrb[0].mxu0 %v1518
        %v1712 = vpop.f32.mrb[0].mxu0
        %v1713 = vadd.f32 0.0, %v1712
        %v1714 = vpop.f32.mrb[0].mxu0
        %v1715 = vpop.f32.mrb[0].mxu0
        %v1716 = vadd.f32 0.0, %v1715
        %v1717 = vpop.f32.mrb[0].mxu0
        %1718 = vmatprep.mubr.bf16.mxu0 0
        %1719 = vmatmul.mubr.bf16.gmra.mrb[0].mxu0 %v1521
        %v1720 = vpop.f32.mrb[0].mxu0
        %v1721 = vadd.f32 0.0, %v1720
        %v1722 = vpop.f32.mrb[0].mxu0
        %v1723 = vpop.f32.mrb[0].mxu0
        %v1724 = vadd.f32 0.0, %v1723
        %v1725 = vpop.f32.mrb[0].mxu0
        %1726 = vmatprep.mubr.bf16.mxu0 0
        %1727 = vmatmul.mubr.bf16.gmra.mrb[0].mxu0 %v1524
        %v1728 = vpop.f32.mrb[0].mxu0
        %v1729 = vadd.f32 0.0, %v1728
        %v1730 = vpop.f32.mrb[0].mxu0
        %v1731 = vpop.f32.mrb[0].mxu0
        %v1732 = vadd.f32 0.0, %v1731
        %v1733 = vpop.f32.mrb[0].mxu0
        %1734 = vmatprep.mubr.bf16.mxu0 0
        %1735 = vmatmul.mubr.bf16.gmra.mrb[0].mxu0 %v1527
        %v1736 = vpop.f32.mrb[0].mxu0
        %v1737 = vadd.f32 0.0, %v1736
        %v1738 = vpop.f32.mrb[0].mxu0
        %v1739 = vpop.f32.mrb[0].mxu0
        %v1740 = vadd.f32 0.0, %v1739
        %v1741 = vpop.f32.mrb[0].mxu0
        %1742 = vmatprep.mubr.bf16.mxu0 0
        %1743 = vmatmul.mubr.bf16.gmra.mrb[0].mxu0 %v1530
        %v1744 = vpop.f32.mrb[0].mxu0
        %v1745 = vadd.f32 0.0, %v1744
        %v1746 = vpop.f32.mrb[0].mxu0
        %v1747 = vpop.f32.mrb[0].mxu0
        %v1748 = vadd.f32 0.0, %v1747
        %v1749 = vpop.f32.mrb[0].mxu0
        %1750 = vdwg.mxu0
        %v1751 = vadd.f32 %v1372, %v1576
        %v1752 = vadd.f32 %v1373, %v1578
        %v1753 = vadd.f32 %v1374, %v1689
        %v1754 = vadd.f32 %v1375, %v1580
        %v1755 = vadd.f32 %v1376, %v1582
        %v1756 = vadd.f32 %v1377, %v1692
        %v1757 = vadd.f32 %v1378, %v1586
        %v1758 = vadd.f32 %v1379, %v1588
        %v1759 = vadd.f32 %v1380, %v1697
        %v1760 = vadd.f32 %v1381, %v1590
        %v1761 = vadd.f32 %v1382, %v1592
        %v1762 = vadd.f32 %v1383, %v1700
        %v1763 = vadd.f32 %v1384, %v1596
        %v1764 = vadd.f32 %v1385, %v1598
        %v1765 = vadd.f32 %v1386, %v1705
        %v1766 = vadd.f32 %v1387, %v1600
        %v1767 = vadd.f32 %v1388, %v1602
        %v1768 = vadd.f32 %v1389, %v1708
        %v1769 = vadd.f32 %v1390, %v1606
        %v1770 = vadd.f32 %v1391, %v1608
        %v1771 = vadd.f32 %v1392, %v1713
        %v1772 = vadd.f32 %v1393, %v1610
        %v1773 = vadd.f32 %v1394, %v1612
        %v1774 = vadd.f32 %v1395, %v1716
        %v1775 = vadd.f32 %v1396, %v1616
        %v1776 = vadd.f32 %v1397, %v1618
        %v1777 = vadd.f32 %v1398, %v1721
        %v1778 = vadd.f32 %v1399, %v1620
        %v1779 = vadd.f32 %v1400, %v1622
        %v1780 = vadd.f32 %v1401, %v1724
        %v1781 = vadd.f32 %v1402, %v1626
        %v1782 = vadd.f32 %v1403, %v1628
        %v1783 = vadd.f32 %v1404, %v1729
        %v1784 = vadd.f32 %v1405, %v1630
        %v1785 = vadd.f32 %v1406, %v1632
        %v1786 = vadd.f32 %v1407, %v1732
        %v1787 = vadd.f32 %v1408, %v1636
        %v1788 = vadd.f32 %v1409, %v1638
        %v1789 = vadd.f32 %v1410, %v1737
        %v1790 = vadd.f32 %v1411, %v1640
        %v1791 = vadd.f32 %v1412, %v1642
        %v1792 = vadd.f32 %v1413, %v1740
        %v1793 = vadd.f32 %v1414, %v1646
        %v1794 = vadd.f32 %v1415, %v1648
        %v1795 = vadd.f32 %v1416, %v1745
        %v1796 = vadd.f32 %v1417, %v1650
        %v1797 = vadd.f32 %v1418, %v1652
        %v1798 = vadd.f32 %v1419, %v1748
        %v1799 = vld [vmem:[%s369] sm:$0xff]
        %s1800 = scalar_lea.vmem %s1, 256
        %v1801 = vld [vmem:[%s1800] sm:$0xf]
        %v1802 = vld [vmem:[%s1800 + $0x4] sm:$0xf]
        %v1803 = vld [vmem:[%s1800 + $0x8] sm:$0xf]
        %v1804 = vld [vmem:[%s1800 + $0xc] sm:$0xf]
        %v1805 = vld [vmem:[%s1800 + $0x10] sm:$0xf]
        %v1806 = vld [vmem:[%s1800 + $0x14] sm:$0xf]
        %v1807 = vld [vmem:[%s1800 + $0x18] sm:$0xf]
        %v1808 = vld [vmem:[%s1800 + $0x1c] sm:$0xf]
        %v1809 = vld [vmem:[%s1800 + $0x20] sm:$0xf]
        %v1810 = vld [vmem:[%s1800 + $0x24] sm:$0xf]
        %v1811 = vld [vmem:[%s1800 + $0x28] sm:$0xf]
        %v1812 = vld [vmem:[%s1800 + $0x2c] sm:$0xf]
        %v1813 = vld [vmem:[%s1800 + $0x30] sm:$0xf]
        %v1814 = vld [vmem:[%s1800 + $0x34] sm:$0xf]
        %v1815 = vld [vmem:[%s1800 + $0x38] sm:$0xf]
        %v1816 = vld [vmem:[%s1800 + $0x3c] sm:$0xf]
        %v1833 = vunpack.c.l.b16 %v1801
        %v1834 = vunpack.c.l.b16 %v1802
        %v1835 = vunpack.c.l.b16 %v1803
        %v1836 = vunpack.c.l.b16 %v1804
        %v1837 = vunpack.c.l.b16 %v1805
        %v1838 = vunpack.c.l.b16 %v1806
        %v1839 = vunpack.c.l.b16 %v1807
        %v1840 = vunpack.c.l.b16 %v1808
        %v1841 = vunpack.c.l.b16 %v1809
        %v1842 = vunpack.c.l.b16 %v1810
        %v1843 = vunpack.c.l.b16 %v1811
        %v1844 = vunpack.c.l.b16 %v1812
        %v1845 = vunpack.c.l.b16 %v1813
        %v1846 = vunpack.c.l.b16 %v1814
        %v1847 = vunpack.c.l.b16 %v1815
        %v1848 = vunpack.c.l.b16 %v1816
        %v1849 = vpack.c.b16 %v1834, %v1833
        %v1850 = vpack.c.b16 %v1836, %v1835
        %v1851 = vpack.c.b16 %v1838, %v1837
        %v1852 = vpack.c.b16 %v1840, %v1839
        %v1853 = vpack.c.b16 %v1842, %v1841
        %v1854 = vpack.c.b16 %v1844, %v1843
        %v1855 = vpack.c.b16 %v1846, %v1845
        %v1856 = vpack.c.b16 %v1848, %v1847
        %v1858 = vcombine.high %v1799, %v1799
        %v1860 = vunpack.c.l.s4 1983009808
        %v1861 = vunpack.c.0.s8 %v1860
        %v1862 = vlaneseq
        %v1863 = vshrl.u32 %v1862, 7
        %v1864 = vsub.s32 %v1861, %v1863
        %v1865 = vrot.slane %v1799, %v1864
        %v1867 = vunpack.c.l.s4 1983009808
        %v1868 = vunpack.c.0.s8 %v1867
        %v1869 = vlaneseq
        %v1870 = vshrl.u32 %v1869, 7
        %v1871 = vsub.s32 %v1868, %v1870
        %v1872 = vrot.slane %v1858, %v1871
        %v1873 = vcombine.high %v1865, %v1865
        %v1874 = vcombine.high %v1872, %v1872
        %1875 = vrot.lane.b32.xlu0 %v1865, 109
        %v1876 = vpop.permute.xlu0 %1875
        %1877 = vrot.lane.b32.xlu0 %v1873, 109
        %v1878 = vpop.permute.xlu0 %1877
        %1879 = vrot.lane.b32.xlu0 %v1872, 109
        %v1880 = vpop.permute.xlu0 %1879
        %1881 = vrot.lane.b32.xlu0 %v1874, 109
        %v1882 = vpop.permute.xlu0 %1881
        %vm1883 = vcmask 891904
        %v1884 = vsel %vm1883, %v1876, %v1878
        %v1885 = vsel %vm1883, %v1878, %v1880
        %v1886 = vsel %vm1883, %v1880, %v1882
        %v1888 = vsel %vm496, %v1849, 0
        %v1891 = vsel %vm496, %v1850, 0
        %v1894 = vsel %vm496, %v1851, 0
        %v1897 = vsel %vm496, %v1852, 0
        %v1900 = vsel %vm496, %v1853, 0
        %v1903 = vsel %vm496, %v1854, 0
        %v1906 = vsel %vm496, %v1855, 0
        %v1909 = vsel %vm496, %v1856, 0
        %v1912 = vsel %vm521, %v1884, 0
        %v1915 = vsel %vm521, %v1885, 0
        %v1918 = vsel %vm521, %v1886, 0
        %1920 = vmatprep.subr.bf16.mxu0 %v1915
        %1921 = vmatpush1.bf16.msra.mxu0 %v1912
        %1922 = vmatprep.subr.bf16.mxu0 0
        %1923 = vmatpush1.bf16.msra.mxu0 0
        %1924 = vmatprep.subr.bf16.mxu0 0
        %1925 = vmatpush1.bf16.msra.mxu0 0
        %1926 = vmatprep.subr.bf16.mxu0 0
        %1927 = vmatpush1.bf16.msra.mxu0 0
        %1928 = vmatprep.subr.bf16.mxu0 0
        %1929 = vmatpush1.bf16.msra.mxu0 0
        %1930 = vmatprep.subr.bf16.mxu0 0
        %1931 = vmatpush1.bf16.msra.mxu0 0
        %1932 = vmatprep.subr.bf16.mxu0 0
        %1933 = vmatpush1.bf16.msra.mxu0 0
        %1934 = vmatprep.subr.bf16.mxu0 0
        %1935 = vmatpush1.bf16.msra.mxu0 0
        %1936 = vmatprep.subr.bf16.mxu0 0
        %1937 = vmatpush1.bf16.msra.mxu0 0
        %1938 = vmatprep.subr.bf16.mxu0 0
        %1939 = vmatpush1.bf16.msra.mxu0 0
        %1940 = vmatprep.subr.bf16.mxu0 0
        %1941 = vmatpush1.bf16.msra.mxu0 0
        %1942 = vmatprep.subr.bf16.mxu0 0
        %1943 = vmatpush1.bf16.msra.mxu0 0
        %1944 = vmatprep.subr.bf16.mxu0 0
        %1945 = vmatpush1.bf16.msra.mxu0 0
        %1946 = vmatprep.subr.bf16.mxu0 0
        %1947 = vmatpush1.bf16.msra.mxu0 0
        %1948 = vmatprep.subr.bf16.mxu0 0
        %1949 = vmatpush1.bf16.msra.mxu0 0
        %1950 = vmatprep.subr.bf16.mxu0 0
        %1951 = vmatpush1.bf16.msra.mxu0 0
        %1952 = vmatprep.mubr.bf16.mxu0 0
        %1953 = vmatmul.mubr.bf16.gmra.mrb[0].mxu0 %v1888
        %v1954 = vpop.f32.mrb[0].mxu0
        %v1955 = vadd.f32 0.0, %v1954
        %v1956 = vpop.f32.mrb[0].mxu0
        %v1957 = vadd.f32 0.0, %v1956
        %v1958 = vpop.f32.mrb[0].mxu0
        %v1959 = vadd.f32 0.0, %v1958
        %v1960 = vpop.f32.mrb[0].mxu0
        %v1961 = vadd.f32 0.0, %v1960
        %1962 = vmatprep.mubr.bf16.mxu0 0
        %1963 = vmatmul.mubr.bf16.gmra.mrb[0].mxu0 %v1891
        %v1964 = vpop.f32.mrb[0].mxu0
        %v1965 = vadd.f32 0.0, %v1964
        %v1966 = vpop.f32.mrb[0].mxu0
        %v1967 = vadd.f32 0.0, %v1966
        %v1968 = vpop.f32.mrb[0].mxu0
        %v1969 = vadd.f32 0.0, %v1968
        %v1970 = vpop.f32.mrb[0].mxu0
        %v1971 = vadd.f32 0.0, %v1970
        %1972 = vmatprep.mubr.bf16.mxu0 0
        %1973 = vmatmul.mubr.bf16.gmra.mrb[0].mxu0 %v1894
        %v1974 = vpop.f32.mrb[0].mxu0
        %v1975 = vadd.f32 0.0, %v1974
        %v1976 = vpop.f32.mrb[0].mxu0
        %v1977 = vadd.f32 0.0, %v1976
        %v1978 = vpop.f32.mrb[0].mxu0
        %v1979 = vadd.f32 0.0, %v1978
        %v1980 = vpop.f32.mrb[0].mxu0
        %v1981 = vadd.f32 0.0, %v1980
        %1982 = vmatprep.mubr.bf16.mxu0 0
        %1983 = vmatmul.mubr.bf16.gmra.mrb[0].mxu0 %v1897
        %v1984 = vpop.f32.mrb[0].mxu0
        %v1985 = vadd.f32 0.0, %v1984
        %v1986 = vpop.f32.mrb[0].mxu0
        %v1987 = vadd.f32 0.0, %v1986
        %v1988 = vpop.f32.mrb[0].mxu0
        %v1989 = vadd.f32 0.0, %v1988
        %v1990 = vpop.f32.mrb[0].mxu0
        %v1991 = vadd.f32 0.0, %v1990
        %1992 = vmatprep.mubr.bf16.mxu0 0
        %1993 = vmatmul.mubr.bf16.gmra.mrb[0].mxu0 %v1900
        %v1994 = vpop.f32.mrb[0].mxu0
        %v1995 = vadd.f32 0.0, %v1994
        %v1996 = vpop.f32.mrb[0].mxu0
        %v1997 = vadd.f32 0.0, %v1996
        %v1998 = vpop.f32.mrb[0].mxu0
        %v1999 = vadd.f32 0.0, %v1998
        %v2000 = vpop.f32.mrb[0].mxu0
        %v2001 = vadd.f32 0.0, %v2000
        %2002 = vmatprep.mubr.bf16.mxu0 0
        %2003 = vmatmul.mubr.bf16.gmra.mrb[0].mxu0 %v1903
        %v2004 = vpop.f32.mrb[0].mxu0
        %v2005 = vadd.f32 0.0, %v2004
        %v2006 = vpop.f32.mrb[0].mxu0
        %v2007 = vadd.f32 0.0, %v2006
        %v2008 = vpop.f32.mrb[0].mxu0
        %v2009 = vadd.f32 0.0, %v2008
        %v2010 = vpop.f32.mrb[0].mxu0
        %v2011 = vadd.f32 0.0, %v2010
        %2012 = vmatprep.mubr.bf16.mxu0 0
        %2013 = vmatmul.mubr.bf16.gmra.mrb[0].mxu0 %v1906
        %v2014 = vpop.f32.mrb[0].mxu0
        %v2015 = vadd.f32 0.0, %v2014
        %v2016 = vpop.f32.mrb[0].mxu0
        %v2017 = vadd.f32 0.0, %v2016
        %v2018 = vpop.f32.mrb[0].mxu0
        %v2019 = vadd.f32 0.0, %v2018
        %v2020 = vpop.f32.mrb[0].mxu0
        %v2021 = vadd.f32 0.0, %v2020
        %2022 = vmatprep.mubr.bf16.mxu0 0
        %2023 = vmatmul.mubr.bf16.gmra.mrb[0].mxu0 %v1909
        %v2024 = vpop.f32.mrb[0].mxu0
        %v2025 = vadd.f32 0.0, %v2024
        %v2026 = vpop.f32.mrb[0].mxu0
        %v2027 = vadd.f32 0.0, %v2026
        %v2028 = vpop.f32.mrb[0].mxu0
        %v2029 = vadd.f32 0.0, %v2028
        %v2030 = vpop.f32.mrb[0].mxu0
        %v2031 = vadd.f32 0.0, %v2030
        %2032 = vdwg.mxu0
        %2033 = vmatprep.subr.bf16.mxu0 0
        %2034 = vmatpush1.bf16.msra.mxu0 %v1918
        %2035 = vmatprep.subr.bf16.mxu0 0
        %2036 = vmatpush1.bf16.msra.mxu0 0
        %2037 = vmatprep.subr.bf16.mxu0 0
        %2038 = vmatpush1.bf16.msra.mxu0 0
        %2039 = vmatprep.subr.bf16.mxu0 0
        %2040 = vmatpush1.bf16.msra.mxu0 0
        %2041 = vmatprep.subr.bf16.mxu0 0
        %2042 = vmatpush1.bf16.msra.mxu0 0
        %2043 = vmatprep.subr.bf16.mxu0 0
        %2044 = vmatpush1.bf16.msra.mxu0 0
        %2045 = vmatprep.subr.bf16.mxu0 0
        %2046 = vmatpush1.bf16.msra.mxu0 0
        %2047 = vmatprep.subr.bf16.mxu0 0
        %2048 = vmatpush1.bf16.msra.mxu0 0
        %2049 = vmatprep.subr.bf16.mxu0 0
        %2050 = vmatpush1.bf16.msra.mxu0 0
        %2051 = vmatprep.subr.bf16.mxu0 0
        %2052 = vmatpush1.bf16.msra.mxu0 0
        %2053 = vmatprep.subr.bf16.mxu0 0
        %2054 = vmatpush1.bf16.msra.mxu0 0
        %2055 = vmatprep.subr.bf16.mxu0 0
        %2056 = vmatpush1.bf16.msra.mxu0 0
        %2057 = vmatprep.subr.bf16.mxu0 0
        %2058 = vmatpush1.bf16.msra.mxu0 0
        %2059 = vmatprep.subr.bf16.mxu0 0
        %2060 = vmatpush1.bf16.msra.mxu0 0
        %2061 = vmatprep.subr.bf16.mxu0 0
        %2062 = vmatpush1.bf16.msra.mxu0 0
        %2063 = vmatprep.subr.bf16.mxu0 0
        %2064 = vmatpush1.bf16.msra.mxu0 0
        %2065 = vmatprep.mubr.bf16.mxu0 0
        %2066 = vmatmul.mubr.bf16.gmra.mrb[0].mxu0 %v1888
        %v2067 = vpop.f32.mrb[0].mxu0
        %v2068 = vadd.f32 0.0, %v2067
        %v2069 = vpop.f32.mrb[0].mxu0
        %v2070 = vpop.f32.mrb[0].mxu0
        %v2071 = vadd.f32 0.0, %v2070
        %v2072 = vpop.f32.mrb[0].mxu0
        %2073 = vmatprep.mubr.bf16.mxu0 0
        %2074 = vmatmul.mubr.bf16.gmra.mrb[0].mxu0 %v1891
        %v2075 = vpop.f32.mrb[0].mxu0
        %v2076 = vadd.f32 0.0, %v2075
        %v2077 = vpop.f32.mrb[0].mxu0
        %v2078 = vpop.f32.mrb[0].mxu0
        %v2079 = vadd.f32 0.0, %v2078
        %v2080 = vpop.f32.mrb[0].mxu0
        %2081 = vmatprep.mubr.bf16.mxu0 0
        %2082 = vmatmul.mubr.bf16.gmra.mrb[0].mxu0 %v1894
        %v2083 = vpop.f32.mrb[0].mxu0
        %v2084 = vadd.f32 0.0, %v2083
        %v2085 = vpop.f32.mrb[0].mxu0
        %v2086 = vpop.f32.mrb[0].mxu0
        %v2087 = vadd.f32 0.0, %v2086
        %v2088 = vpop.f32.mrb[0].mxu0
        %2089 = vmatprep.mubr.bf16.mxu0 0
        %2090 = vmatmul.mubr.bf16.gmra.mrb[0].mxu0 %v1897
        %v2091 = vpop.f32.mrb[0].mxu0
        %v2092 = vadd.f32 0.0, %v2091
        %v2093 = vpop.f32.mrb[0].mxu0
        %v2094 = vpop.f32.mrb[0].mxu0
        %v2095 = vadd.f32 0.0, %v2094
        %v2096 = vpop.f32.mrb[0].mxu0
        %2097 = vmatprep.mubr.bf16.mxu0 0
        %2098 = vmatmul.mubr.bf16.gmra.mrb[0].mxu0 %v1900
        %v2099 = vpop.f32.mrb[0].mxu0
        %v2100 = vadd.f32 0.0, %v2099
        %v2101 = vpop.f32.mrb[0].mxu0
        %v2102 = vpop.f32.mrb[0].mxu0
        %v2103 = vadd.f32 0.0, %v2102
        %v2104 = vpop.f32.mrb[0].mxu0
        %2105 = vmatprep.mubr.bf16.mxu0 0
        %2106 = vmatmul.mubr.bf16.gmra.mrb[0].mxu0 %v1903
        %v2107 = vpop.f32.mrb[0].mxu0
        %v2108 = vadd.f32 0.0, %v2107
        %v2109 = vpop.f32.mrb[0].mxu0
        %v2110 = vpop.f32.mrb[0].mxu0
        %v2111 = vadd.f32 0.0, %v2110
        %v2112 = vpop.f32.mrb[0].mxu0
        %2113 = vmatprep.mubr.bf16.mxu0 0
        %2114 = vmatmul.mubr.bf16.gmra.mrb[0].mxu0 %v1906
        %v2115 = vpop.f32.mrb[0].mxu0
        %v2116 = vadd.f32 0.0, %v2115
        %v2117 = vpop.f32.mrb[0].mxu0
        %v2118 = vpop.f32.mrb[0].mxu0
        %v2119 = vadd.f32 0.0, %v2118
        %v2120 = vpop.f32.mrb[0].mxu0
        %2121 = vmatprep.mubr.bf16.mxu0 0
        %2122 = vmatmul.mubr.bf16.gmra.mrb[0].mxu0 %v1909
        %v2123 = vpop.f32.mrb[0].mxu0
        %v2124 = vadd.f32 0.0, %v2123
        %v2125 = vpop.f32.mrb[0].mxu0
        %v2126 = vpop.f32.mrb[0].mxu0
        %v2127 = vadd.f32 0.0, %v2126
        %v2128 = vpop.f32.mrb[0].mxu0
        %2129 = vdwg.mxu0
        %v2130 = vadd.f32 %v1751, %v1955
        %v2131 = vadd.f32 %v1752, %v1957
        %v2132 = vadd.f32 %v1753, %v2068
        %v2133 = vadd.f32 %v1754, %v1959
        %v2134 = vadd.f32 %v1755, %v1961
        %v2135 = vadd.f32 %v1756, %v2071
        %v2136 = vadd.f32 %v1757, %v1965
        %v2137 = vadd.f32 %v1758, %v1967
        %v2138 = vadd.f32 %v1759, %v2076
        %v2139 = vadd.f32 %v1760, %v1969
        %v2140 = vadd.f32 %v1761, %v1971
        %v2141 = vadd.f32 %v1762, %v2079
        %v2142 = vadd.f32 %v1763, %v1975
        %v2143 = vadd.f32 %v1764, %v1977
        %v2144 = vadd.f32 %v1765, %v2084
        %v2145 = vadd.f32 %v1766, %v1979
        %v2146 = vadd.f32 %v1767, %v1981
        %v2147 = vadd.f32 %v1768, %v2087
        %v2148 = vadd.f32 %v1769, %v1985
        %v2149 = vadd.f32 %v1770, %v1987
        %v2150 = vadd.f32 %v1771, %v2092
        %v2151 = vadd.f32 %v1772, %v1989
        %v2152 = vadd.f32 %v1773, %v1991
        %v2153 = vadd.f32 %v1774, %v2095
        %v2154 = vadd.f32 %v1775, %v1995
        %v2155 = vadd.f32 %v1776, %v1997
        %v2156 = vadd.f32 %v1777, %v2100
        %v2157 = vadd.f32 %v1778, %v1999
        %v2158 = vadd.f32 %v1779, %v2001
        %v2159 = vadd.f32 %v1780, %v2103
        %v2160 = vadd.f32 %v1781, %v2005
        %v2161 = vadd.f32 %v1782, %v2007
        %v2162 = vadd.f32 %v1783, %v2108
        %v2163 = vadd.f32 %v1784, %v2009
        %v2164 = vadd.f32 %v1785, %v2011
        %v2165 = vadd.f32 %v1786, %v2111
        %v2166 = vadd.f32 %v1787, %v2015
        %v2167 = vadd.f32 %v1788, %v2017
        %v2168 = vadd.f32 %v1789, %v2116
        %v2169 = vadd.f32 %v1790, %v2019
        %v2170 = vadd.f32 %v1791, %v2021
        %v2171 = vadd.f32 %v1792, %v2119
        %v2172 = vadd.f32 %v1793, %v2025
        %v2173 = vadd.f32 %v1794, %v2027
        %v2174 = vadd.f32 %v1795, %v2124
        %v2175 = vadd.f32 %v1796, %v2029
        %v2176 = vadd.f32 %v1797, %v2031
        %v2177 = vadd.f32 %v1798, %v2127
        %v2178 = vld [vmem:[%s369] sm:$0xff]
        %s2179 = scalar_lea.vmem %s1, 320
        %v2180 = vld [vmem:[%s2179] sm:$0xf]
        %v2181 = vld [vmem:[%s2179 + $0x4] sm:$0xf]
        %v2182 = vld [vmem:[%s2179 + $0x8] sm:$0xf]
        %v2183 = vld [vmem:[%s2179 + $0xc] sm:$0xf]
        %v2184 = vld [vmem:[%s2179 + $0x10] sm:$0xf]
        %v2185 = vld [vmem:[%s2179 + $0x14] sm:$0xf]
        %v2186 = vld [vmem:[%s2179 + $0x18] sm:$0xf]
        %v2187 = vld [vmem:[%s2179 + $0x1c] sm:$0xf]
        %v2188 = vld [vmem:[%s2179 + $0x20] sm:$0xf]
        %v2189 = vld [vmem:[%s2179 + $0x24] sm:$0xf]
        %v2190 = vld [vmem:[%s2179 + $0x28] sm:$0xf]
        %v2191 = vld [vmem:[%s2179 + $0x2c] sm:$0xf]
        %v2192 = vld [vmem:[%s2179 + $0x30] sm:$0xf]
        %v2193 = vld [vmem:[%s2179 + $0x34] sm:$0xf]
        %v2194 = vld [vmem:[%s2179 + $0x38] sm:$0xf]
        %v2195 = vld [vmem:[%s2179 + $0x3c] sm:$0xf]
        %v2212 = vunpack.c.l.b16 %v2180
        %v2213 = vunpack.c.l.b16 %v2181
        %v2214 = vunpack.c.l.b16 %v2182
        %v2215 = vunpack.c.l.b16 %v2183
        %v2216 = vunpack.c.l.b16 %v2184
        %v2217 = vunpack.c.l.b16 %v2185
        %v2218 = vunpack.c.l.b16 %v2186
        %v2219 = vunpack.c.l.b16 %v2187
        %v2220 = vunpack.c.l.b16 %v2188
        %v2221 = vunpack.c.l.b16 %v2189
        %v2222 = vunpack.c.l.b16 %v2190
        %v2223 = vunpack.c.l.b16 %v2191
        %v2224 = vunpack.c.l.b16 %v2192
        %v2225 = vunpack.c.l.b16 %v2193
        %v2226 = vunpack.c.l.b16 %v2194
        %v2227 = vunpack.c.l.b16 %v2195
        %v2228 = vpack.c.b16 %v2213, %v2212
        %v2229 = vpack.c.b16 %v2215, %v2214
        %v2230 = vpack.c.b16 %v2217, %v2216
        %v2231 = vpack.c.b16 %v2219, %v2218
        %v2232 = vpack.c.b16 %v2221, %v2220
        %v2233 = vpack.c.b16 %v2223, %v2222
        %v2234 = vpack.c.b16 %v2225, %v2224
        %v2235 = vpack.c.b16 %v2227, %v2226
        %v2237 = vcombine.high %v2178, %v2178
        %v2239 = vunpack.c.l.s4 1983009808
        %v2240 = vunpack.c.0.s8 %v2239
        %v2241 = vlaneseq
        %v2242 = vshrl.u32 %v2241, 7
        %v2243 = vsub.s32 %v2240, %v2242
        %v2244 = vrot.slane %v2178, %v2243
        %v2246 = vunpack.c.l.s4 1983009808
        %v2247 = vunpack.c.0.s8 %v2246
        %v2248 = vlaneseq
        %v2249 = vshrl.u32 %v2248, 7
        %v2250 = vsub.s32 %v2247, %v2249
        %v2251 = vrot.slane %v2237, %v2250
        %v2252 = vcombine.high %v2244, %v2244
        %v2253 = vcombine.high %v2251, %v2251
        %2254 = vrot.lane.b32.xlu0 %v2244, 108
        %v2255 = vpop.permute.xlu0 %2254
        %2256 = vrot.lane.b32.xlu0 %v2252, 108
        %v2257 = vpop.permute.xlu0 %2256
        %2258 = vrot.lane.b32.xlu0 %v2251, 108
        %v2259 = vpop.permute.xlu0 %2258
        %2260 = vrot.lane.b32.xlu0 %v2253, 108
        %v2261 = vpop.permute.xlu0 %2260
        %vm2262 = vcmask 883712
        %v2263 = vsel %vm2262, %v2255, %v2257
        %v2264 = vsel %vm2262, %v2257, %v2259
        %v2265 = vsel %vm2262, %v2259, %v2261
        %v2267 = vsel %vm496, %v2228, 0
        %v2270 = vsel %vm496, %v2229, 0
        %v2273 = vsel %vm496, %v2230, 0
        %v2276 = vsel %vm496, %v2231, 0
        %v2279 = vsel %vm496, %v2232, 0
        %v2282 = vsel %vm496, %v2233, 0
        %v2285 = vsel %vm496, %v2234, 0
        %v2288 = vsel %vm496, %v2235, 0
        %v2291 = vsel %vm521, %v2263, 0
        %v2294 = vsel %vm521, %v2264, 0
        %v2297 = vsel %vm521, %v2265, 0
        %2299 = vmatprep.subr.bf16.mxu0 %v2294
        %2300 = vmatpush1.bf16.msra.mxu0 %v2291
        %2301 = vmatprep.subr.bf16.mxu0 0
        %2302 = vmatpush1.bf16.msra.mxu0 0
        %2303 = vmatprep.subr.bf16.mxu0 0
        %2304 = vmatpush1.bf16.msra.mxu0 0
        %2305 = vmatprep.subr.bf16.mxu0 0
        %2306 = vmatpush1.bf16.msra.mxu0 0
        %2307 = vmatprep.subr.bf16.mxu0 0
        %2308 = vmatpush1.bf16.msra.mxu0 0
        %2309 = vmatprep.subr.bf16.mxu0 0
        %2310 = vmatpush1.bf16.msra.mxu0 0
        %2311 = vmatprep.subr.bf16.mxu0 0
        %2312 = vmatpush1.bf16.msra.mxu0 0
        %2313 = vmatprep.subr.bf16.mxu0 0
        %2314 = vmatpush1.bf16.msra.mxu0 0
        %2315 = vmatprep.subr.bf16.mxu0 0
        %2316 = vmatpush1.bf16.msra.mxu0 0
        %2317 = vmatprep.subr.bf16.mxu0 0
        %2318 = vmatpush1.bf16.msra.mxu0 0
        %2319 = vmatprep.subr.bf16.mxu0 0
        %2320 = vmatpush1.bf16.msra.mxu0 0
        %2321 = vmatprep.subr.bf16.mxu0 0
        %2322 = vmatpush1.bf16.msra.mxu0 0
        %2323 = vmatprep.subr.bf16.mxu0 0
        %2324 = vmatpush1.bf16.msra.mxu0 0
        %2325 = vmatprep.subr.bf16.mxu0 0
        %2326 = vmatpush1.bf16.msra.mxu0 0
        %2327 = vmatprep.subr.bf16.mxu0 0
        %2328 = vmatpush1.bf16.msra.mxu0 0
        %2329 = vmatprep.subr.bf16.mxu0 0
        %2330 = vmatpush1.bf16.msra.mxu0 0
        %2331 = vmatprep.mubr.bf16.mxu0 0
        %2332 = vmatmul.mubr.bf16.gmra.mrb[0].mxu0 %v2267
        %v2333 = vpop.f32.mrb[0].mxu0
        %v2334 = vadd.f32 0.0, %v2333
        %v2335 = vpop.f32.mrb[0].mxu0
        %v2336 = vadd.f32 0.0, %v2335
        %v2337 = vpop.f32.mrb[0].mxu0
        %v2338 = vadd.f32 0.0, %v2337
        %v2339 = vpop.f32.mrb[0].mxu0
        %v2340 = vadd.f32 0.0, %v2339
        %2341 = vmatprep.mubr.bf16.mxu0 0
        %2342 = vmatmul.mubr.bf16.gmra.mrb[0].mxu0 %v2270
        %v2343 = vpop.f32.mrb[0].mxu0
        %v2344 = vadd.f32 0.0, %v2343
        %v2345 = vpop.f32.mrb[0].mxu0
        %v2346 = vadd.f32 0.0, %v2345
        %v2347 = vpop.f32.mrb[0].mxu0
        %v2348 = vadd.f32 0.0, %v2347
        %v2349 = vpop.f32.mrb[0].mxu0
        %v2350 = vadd.f32 0.0, %v2349
        %2351 = vmatprep.mubr.bf16.mxu0 0
        %2352 = vmatmul.mubr.bf16.gmra.mrb[0].mxu0 %v2273
        %v2353 = vpop.f32.mrb[0].mxu0
        %v2354 = vadd.f32 0.0, %v2353
        %v2355 = vpop.f32.mrb[0].mxu0
        %v2356 = vadd.f32 0.0, %v2355
        %v2357 = vpop.f32.mrb[0].mxu0
        %v2358 = vadd.f32 0.0, %v2357
        %v2359 = vpop.f32.mrb[0].mxu0
        %v2360 = vadd.f32 0.0, %v2359
        %2361 = vmatprep.mubr.bf16.mxu0 0
        %2362 = vmatmul.mubr.bf16.gmra.mrb[0].mxu0 %v2276
        %v2363 = vpop.f32.mrb[0].mxu0
        %v2364 = vadd.f32 0.0, %v2363
        %v2365 = vpop.f32.mrb[0].mxu0
        %v2366 = vadd.f32 0.0, %v2365
        %v2367 = vpop.f32.mrb[0].mxu0
        %v2368 = vadd.f32 0.0, %v2367
        %v2369 = vpop.f32.mrb[0].mxu0
        %v2370 = vadd.f32 0.0, %v2369
        %2371 = vmatprep.mubr.bf16.mxu0 0
        %2372 = vmatmul.mubr.bf16.gmra.mrb[0].mxu0 %v2279
        %v2373 = vpop.f32.mrb[0].mxu0
        %v2374 = vadd.f32 0.0, %v2373
        %v2375 = vpop.f32.mrb[0].mxu0
        %v2376 = vadd.f32 0.0, %v2375
        %v2377 = vpop.f32.mrb[0].mxu0
        %v2378 = vadd.f32 0.0, %v2377
        %v2379 = vpop.f32.mrb[0].mxu0
        %v2380 = vadd.f32 0.0, %v2379
        %2381 = vmatprep.mubr.bf16.mxu0 0
        %2382 = vmatmul.mubr.bf16.gmra.mrb[0].mxu0 %v2282
        %v2383 = vpop.f32.mrb[0].mxu0
        %v2384 = vadd.f32 0.0, %v2383
        %v2385 = vpop.f32.mrb[0].mxu0
        %v2386 = vadd.f32 0.0, %v2385
        %v2387 = vpop.f32.mrb[0].mxu0
        %v2388 = vadd.f32 0.0, %v2387
        %v2389 = vpop.f32.mrb[0].mxu0
        %v2390 = vadd.f32 0.0, %v2389
        %2391 = vmatprep.mubr.bf16.mxu0 0
        %2392 = vmatmul.mubr.bf16.gmra.mrb[0].mxu0 %v2285
        %v2393 = vpop.f32.mrb[0].mxu0
        %v2394 = vadd.f32 0.0, %v2393
        %v2395 = vpop.f32.mrb[0].mxu0
        %v2396 = vadd.f32 0.0, %v2395
        %v2397 = vpop.f32.mrb[0].mxu0
        %v2398 = vadd.f32 0.0, %v2397
        %v2399 = vpop.f32.mrb[0].mxu0
        %v2400 = vadd.f32 0.0, %v2399
        %2401 = vmatprep.mubr.bf16.mxu0 0
        %2402 = vmatmul.mubr.bf16.gmra.mrb[0].mxu0 %v2288
        %v2403 = vpop.f32.mrb[0].mxu0
        %v2404 = vadd.f32 0.0, %v2403
        %v2405 = vpop.f32.mrb[0].mxu0
        %v2406 = vadd.f32 0.0, %v2405
        %v2407 = vpop.f32.mrb[0].mxu0
        %v2408 = vadd.f32 0.0, %v2407
        %v2409 = vpop.f32.mrb[0].mxu0
        %v2410 = vadd.f32 0.0, %v2409
        %2411 = vdwg.mxu0
        %2412 = vmatprep.subr.bf16.mxu0 0
        %2413 = vmatpush1.bf16.msra.mxu0 %v2297
        %2414 = vmatprep.subr.bf16.mxu0 0
        %2415 = vmatpush1.bf16.msra.mxu0 0
        %2416 = vmatprep.subr.bf16.mxu0 0
        %2417 = vmatpush1.bf16.msra.mxu0 0
        %2418 = vmatprep.subr.bf16.mxu0 0
        %2419 = vmatpush1.bf16.msra.mxu0 0
        %2420 = vmatprep.subr.bf16.mxu0 0
        %2421 = vmatpush1.bf16.msra.mxu0 0
        %2422 = vmatprep.subr.bf16.mxu0 0
        %2423 = vmatpush1.bf16.msra.mxu0 0
        %2424 = vmatprep.subr.bf16.mxu0 0
        %2425 = vmatpush1.bf16.msra.mxu0 0
        %2426 = vmatprep.subr.bf16.mxu0 0
        %2427 = vmatpush1.bf16.msra.mxu0 0
        %2428 = vmatprep.subr.bf16.mxu0 0
        %2429 = vmatpush1.bf16.msra.mxu0 0
        %2430 = vmatprep.subr.bf16.mxu0 0
        %2431 = vmatpush1.bf16.msra.mxu0 0
        %2432 = vmatprep.subr.bf16.mxu0 0
        %2433 = vmatpush1.bf16.msra.mxu0 0
        %2434 = vmatprep.subr.bf16.mxu0 0
        %2435 = vmatpush1.bf16.msra.mxu0 0
        %2436 = vmatprep.subr.bf16.mxu0 0
        %2437 = vmatpush1.bf16.msra.mxu0 0
        %2438 = vmatprep.subr.bf16.mxu0 0
        %2439 = vmatpush1.bf16.msra.mxu0 0
        %2440 = vmatprep.subr.bf16.mxu0 0
        %2441 = vmatpush1.bf16.msra.mxu0 0
        %2442 = vmatprep.subr.bf16.mxu0 0
        %2443 = vmatpush1.bf16.msra.mxu0 0
        %2444 = vmatprep.mubr.bf16.mxu0 0
        %2445 = vmatmul.mubr.bf16.gmra.mrb[0].mxu0 %v2267
        %v2446 = vpop.f32.mrb[0].mxu0
        %v2447 = vadd.f32 0.0, %v2446
        %v2448 = vpop.f32.mrb[0].mxu0
        %v2449 = vpop.f32.mrb[0].mxu0
        %v2450 = vadd.f32 0.0, %v2449
        %v2451 = vpop.f32.mrb[0].mxu0
        %2452 = vmatprep.mubr.bf16.mxu0 0
        %2453 = vmatmul.mubr.bf16.gmra.mrb[0].mxu0 %v2270
        %v2454 = vpop.f32.mrb[0].mxu0
        %v2455 = vadd.f32 0.0, %v2454
        %v2456 = vpop.f32.mrb[0].mxu0
        %v2457 = vpop.f32.mrb[0].mxu0
        %v2458 = vadd.f32 0.0, %v2457
        %v2459 = vpop.f32.mrb[0].mxu0
        %2460 = vmatprep.mubr.bf16.mxu0 0
        %2461 = vmatmul.mubr.bf16.gmra.mrb[0].mxu0 %v2273
        %v2462 = vpop.f32.mrb[0].mxu0
        %v2463 = vadd.f32 0.0, %v2462
        %v2464 = vpop.f32.mrb[0].mxu0
        %v2465 = vpop.f32.mrb[0].mxu0
        %v2466 = vadd.f32 0.0, %v2465
        %v2467 = vpop.f32.mrb[0].mxu0
        %2468 = vmatprep.mubr.bf16.mxu0 0
        %2469 = vmatmul.mubr.bf16.gmra.mrb[0].mxu0 %v2276
        %v2470 = vpop.f32.mrb[0].mxu0
        %v2471 = vadd.f32 0.0, %v2470
        %v2472 = vpop.f32.mrb[0].mxu0
        %v2473 = vpop.f32.mrb[0].mxu0
        %v2474 = vadd.f32 0.0, %v2473
        %v2475 = vpop.f32.mrb[0].mxu0
        %2476 = vmatprep.mubr.bf16.mxu0 0
        %2477 = vmatmul.mubr.bf16.gmra.mrb[0].mxu0 %v2279
        %v2478 = vpop.f32.mrb[0].mxu0
        %v2479 = vadd.f32 0.0, %v2478
        %v2480 = vpop.f32.mrb[0].mxu0
        %v2481 = vpop.f32.mrb[0].mxu0
        %v2482 = vadd.f32 0.0, %v2481
        %v2483 = vpop.f32.mrb[0].mxu0
        %2484 = vmatprep.mubr.bf16.mxu0 0
        %2485 = vmatmul.mubr.bf16.gmra.mrb[0].mxu0 %v2282
        %v2486 = vpop.f32.mrb[0].mxu0
        %v2487 = vadd.f32 0.0, %v2486
        %v2488 = vpop.f32.mrb[0].mxu0
        %v2489 = vpop.f32.mrb[0].mxu0
        %v2490 = vadd.f32 0.0, %v2489
        %v2491 = vpop.f32.mrb[0].mxu0
        %2492 = vmatprep.mubr.bf16.mxu0 0
        %2493 = vmatmul.mubr.bf16.gmra.mrb[0].mxu0 %v2285
        %v2494 = vpop.f32.mrb[0].mxu0
        %v2495 = vadd.f32 0.0, %v2494
        %v2496 = vpop.f32.mrb[0].mxu0
        %v2497 = vpop.f32.mrb[0].mxu0
        %v2498 = vadd.f32 0.0, %v2497
        %v2499 = vpop.f32.mrb[0].mxu0
        %2500 = vmatprep.mubr.bf16.mxu0 0
        %2501 = vmatmul.mubr.bf16.gmra.mrb[0].mxu0 %v2288
        %v2502 = vpop.f32.mrb[0].mxu0
        %v2503 = vadd.f32 0.0, %v2502
        %v2504 = vpop.f32.mrb[0].mxu0
        %v2505 = vpop.f32.mrb[0].mxu0
        %v2506 = vadd.f32 0.0, %v2505
        %v2507 = vpop.f32.mrb[0].mxu0
        %2508 = vdwg.mxu0
        %v2509 = vadd.f32 %v2130, %v2334
        %v2510 = vadd.f32 %v2131, %v2336
        %v2511 = vadd.f32 %v2132, %v2447
        %v2512 = vadd.f32 %v2133, %v2338
        %v2513 = vadd.f32 %v2134, %v2340
        %v2514 = vadd.f32 %v2135, %v2450
        %v2515 = vadd.f32 %v2136, %v2344
        %v2516 = vadd.f32 %v2137, %v2346
        %v2517 = vadd.f32 %v2138, %v2455
        %v2518 = vadd.f32 %v2139, %v2348
        %v2519 = vadd.f32 %v2140, %v2350
        %v2520 = vadd.f32 %v2141, %v2458
        %v2521 = vadd.f32 %v2142, %v2354
        %v2522 = vadd.f32 %v2143, %v2356
        %v2523 = vadd.f32 %v2144, %v2463
        %v2524 = vadd.f32 %v2145, %v2358
        %v2525 = vadd.f32 %v2146, %v2360
        %v2526 = vadd.f32 %v2147, %v2466
        %v2527 = vadd.f32 %v2148, %v2364
        %v2528 = vadd.f32 %v2149, %v2366
        %v2529 = vadd.f32 %v2150, %v2471
        %v2530 = vadd.f32 %v2151, %v2368
        %v2531 = vadd.f32 %v2152, %v2370
        %v2532 = vadd.f32 %v2153, %v2474
        %v2533 = vadd.f32 %v2154, %v2374
        %v2534 = vadd.f32 %v2155, %v2376
        %v2535 = vadd.f32 %v2156, %v2479
        %v2536 = vadd.f32 %v2157, %v2378
        %v2537 = vadd.f32 %v2158, %v2380
        %v2538 = vadd.f32 %v2159, %v2482
        %v2539 = vadd.f32 %v2160, %v2384
        %v2540 = vadd.f32 %v2161, %v2386
        %v2541 = vadd.f32 %v2162, %v2487
        %v2542 = vadd.f32 %v2163, %v2388
        %v2543 = vadd.f32 %v2164, %v2390
        %v2544 = vadd.f32 %v2165, %v2490
        %v2545 = vadd.f32 %v2166, %v2394
        %v2546 = vadd.f32 %v2167, %v2396
        %v2547 = vadd.f32 %v2168, %v2495
        %v2548 = vadd.f32 %v2169, %v2398
        %v2549 = vadd.f32 %v2170, %v2400
        %v2550 = vadd.f32 %v2171, %v2498
        %v2551 = vadd.f32 %v2172, %v2404
        %v2552 = vadd.f32 %v2173, %v2406
        %v2553 = vadd.f32 %v2174, %v2503
        %v2554 = vadd.f32 %v2175, %v2408
        %v2555 = vadd.f32 %v2176, %v2410
        %v2556 = vadd.f32 %v2177, %v2506
        %v2557 = vld [vmem:[%s369] sm:$0xff]
        %s2558 = scalar_lea.vmem %s1, 384
        %v2559 = vld [vmem:[%s2558] sm:$0xf]
        %v2560 = vld [vmem:[%s2558 + $0x4] sm:$0xf]
        %v2561 = vld [vmem:[%s2558 + $0x8] sm:$0xf]
        %v2562 = vld [vmem:[%s2558 + $0xc] sm:$0xf]
        %v2563 = vld [vmem:[%s2558 + $0x10] sm:$0xf]
        %v2564 = vld [vmem:[%s2558 + $0x14] sm:$0xf]
        %v2565 = vld [vmem:[%s2558 + $0x18] sm:$0xf]
        %v2566 = vld [vmem:[%s2558 + $0x1c] sm:$0xf]
        %v2567 = vld [vmem:[%s2558 + $0x20] sm:$0xf]
        %v2568 = vld [vmem:[%s2558 + $0x24] sm:$0xf]
        %v2569 = vld [vmem:[%s2558 + $0x28] sm:$0xf]
        %v2570 = vld [vmem:[%s2558 + $0x2c] sm:$0xf]
        %v2571 = vld [vmem:[%s2558 + $0x30] sm:$0xf]
        %v2572 = vld [vmem:[%s2558 + $0x34] sm:$0xf]
        %v2573 = vld [vmem:[%s2558 + $0x38] sm:$0xf]
        %v2574 = vld [vmem:[%s2558 + $0x3c] sm:$0xf]
        %v2591 = vunpack.c.l.b16 %v2559
        %v2592 = vunpack.c.l.b16 %v2560
        %v2593 = vunpack.c.l.b16 %v2561
        %v2594 = vunpack.c.l.b16 %v2562
        %v2595 = vunpack.c.l.b16 %v2563
        %v2596 = vunpack.c.l.b16 %v2564
        %v2597 = vunpack.c.l.b16 %v2565
        %v2598 = vunpack.c.l.b16 %v2566
        %v2599 = vunpack.c.l.b16 %v2567
        %v2600 = vunpack.c.l.b16 %v2568
        %v2601 = vunpack.c.l.b16 %v2569
        %v2602 = vunpack.c.l.b16 %v2570
        %v2603 = vunpack.c.l.b16 %v2571
        %v2604 = vunpack.c.l.b16 %v2572
        %v2605 = vunpack.c.l.b16 %v2573
        %v2606 = vunpack.c.l.b16 %v2574
        %v2607 = vpack.c.b16 %v2592, %v2591
        %v2608 = vpack.c.b16 %v2594, %v2593
        %v2609 = vpack.c.b16 %v2596, %v2595
        %v2610 = vpack.c.b16 %v2598, %v2597
        %v2611 = vpack.c.b16 %v2600, %v2599
        %v2612 = vpack.c.b16 %v2602, %v2601
        %v2613 = vpack.c.b16 %v2604, %v2603
        %v2614 = vpack.c.b16 %v2606, %v2605
        %v2616 = vcombine.high %v2557, %v2557
        %v2618 = vunpack.c.l.s4 1983009808
        %v2619 = vunpack.c.0.s8 %v2618
        %v2620 = vlaneseq
        %v2621 = vshrl.u32 %v2620, 7
        %v2622 = vsub.s32 %v2619, %v2621
        %v2623 = vrot.slane %v2557, %v2622
        %v2625 = vunpack.c.l.s4 1983009808
        %v2626 = vunpack.c.0.s8 %v2625
        %v2627 = vlaneseq
        %v2628 = vshrl.u32 %v2627, 7
        %v2629 = vsub.s32 %v2626, %v2628
        %v2630 = vrot.slane %v2616, %v2629
        %v2631 = vcombine.high %v2623, %v2623
        %v2632 = vcombine.high %v2630, %v2630
        %2633 = vrot.lane.b32.xlu0 %v2623, 92
        %v2634 = vpop.permute.xlu0 %2633
        %2635 = vrot.lane.b32.xlu0 %v2631, 92
        %v2636 = vpop.permute.xlu0 %2635
        %2637 = vrot.lane.b32.xlu0 %v2630, 92
        %v2638 = vpop.permute.xlu0 %2637
        %2639 = vrot.lane.b32.xlu0 %v2632, 92
        %v2640 = vpop.permute.xlu0 %2639
        %vm2641 = vcmask 752640
        %v2642 = vsel %vm2641, %v2634, %v2636
        %v2643 = vsel %vm2641, %v2636, %v2638
        %v2644 = vsel %vm2641, %v2638, %v2640
        %v2646 = vsel %vm496, %v2607, 0
        %v2649 = vsel %vm496, %v2608, 0
        %v2652 = vsel %vm496, %v2609, 0
        %v2655 = vsel %vm496, %v2610, 0
        %v2658 = vsel %vm496, %v2611, 0
        %v2661 = vsel %vm496, %v2612, 0
        %v2664 = vsel %vm496, %v2613, 0
        %v2667 = vsel %vm496, %v2614, 0
        %v2670 = vsel %vm521, %v2642, 0
        %v2673 = vsel %vm521, %v2643, 0
        %v2676 = vsel %vm521, %v2644, 0
        %2678 = vmatprep.subr.bf16.mxu0 %v2673
        %2679 = vmatpush1.bf16.msra.mxu0 %v2670
        %2680 = vmatprep.subr.bf16.mxu0 0
        %2681 = vmatpush1.bf16.msra.mxu0 0
        %2682 = vmatprep.subr.bf16.mxu0 0
        %2683 = vmatpush1.bf16.msra.mxu0 0
        %2684 = vmatprep.subr.bf16.mxu0 0
        %2685 = vmatpush1.bf16.msra.mxu0 0
        %2686 = vmatprep.subr.bf16.mxu0 0
        %2687 = vmatpush1.bf16.msra.mxu0 0
        %2688 = vmatprep.subr.bf16.mxu0 0
        %2689 = vmatpush1.bf16.msra.mxu0 0
        %2690 = vmatprep.subr.bf16.mxu0 0
        %2691 = vmatpush1.bf16.msra.mxu0 0
        %2692 = vmatprep.subr.bf16.mxu0 0
        %2693 = vmatpush1.bf16.msra.mxu0 0
        %2694 = vmatprep.subr.bf16.mxu0 0
        %2695 = vmatpush1.bf16.msra.mxu0 0
        %2696 = vmatprep.subr.bf16.mxu0 0
        %2697 = vmatpush1.bf16.msra.mxu0 0
        %2698 = vmatprep.subr.bf16.mxu0 0
        %2699 = vmatpush1.bf16.msra.mxu0 0
        %2700 = vmatprep.subr.bf16.mxu0 0
        %2701 = vmatpush1.bf16.msra.mxu0 0
        %2702 = vmatprep.subr.bf16.mxu0 0
        %2703 = vmatpush1.bf16.msra.mxu0 0
        %2704 = vmatprep.subr.bf16.mxu0 0
        %2705 = vmatpush1.bf16.msra.mxu0 0
        %2706 = vmatprep.subr.bf16.mxu0 0
        %2707 = vmatpush1.bf16.msra.mxu0 0
        %2708 = vmatprep.subr.bf16.mxu0 0
        %2709 = vmatpush1.bf16.msra.mxu0 0
        %2710 = vmatprep.mubr.bf16.mxu0 0
        %2711 = vmatmul.mubr.bf16.gmra.mrb[0].mxu0 %v2646
        %v2712 = vpop.f32.mrb[0].mxu0
        %v2713 = vadd.f32 0.0, %v2712
        %v2714 = vpop.f32.mrb[0].mxu0
        %v2715 = vadd.f32 0.0, %v2714
        %v2716 = vpop.f32.mrb[0].mxu0
        %v2717 = vadd.f32 0.0, %v2716
        %v2718 = vpop.f32.mrb[0].mxu0
        %v2719 = vadd.f32 0.0, %v2718
        %2720 = vmatprep.mubr.bf16.mxu0 0
        %2721 = vmatmul.mubr.bf16.gmra.mrb[0].mxu0 %v2649
        %v2722 = vpop.f32.mrb[0].mxu0
        %v2723 = vadd.f32 0.0, %v2722
        %v2724 = vpop.f32.mrb[0].mxu0
        %v2725 = vadd.f32 0.0, %v2724
        %v2726 = vpop.f32.mrb[0].mxu0
        %v2727 = vadd.f32 0.0, %v2726
        %v2728 = vpop.f32.mrb[0].mxu0
        %v2729 = vadd.f32 0.0, %v2728
        %2730 = vmatprep.mubr.bf16.mxu0 0
        %2731 = vmatmul.mubr.bf16.gmra.mrb[0].mxu0 %v2652
        %v2732 = vpop.f32.mrb[0].mxu0
        %v2733 = vadd.f32 0.0, %v2732
        %v2734 = vpop.f32.mrb[0].mxu0
        %v2735 = vadd.f32 0.0, %v2734
        %v2736 = vpop.f32.mrb[0].mxu0
        %v2737 = vadd.f32 0.0, %v2736
        %v2738 = vpop.f32.mrb[0].mxu0
        %v2739 = vadd.f32 0.0, %v2738
        %2740 = vmatprep.mubr.bf16.mxu0 0
        %2741 = vmatmul.mubr.bf16.gmra.mrb[0].mxu0 %v2655
        %v2742 = vpop.f32.mrb[0].mxu0
        %v2743 = vadd.f32 0.0, %v2742
        %v2744 = vpop.f32.mrb[0].mxu0
        %v2745 = vadd.f32 0.0, %v2744
        %v2746 = vpop.f32.mrb[0].mxu0
        %v2747 = vadd.f32 0.0, %v2746
        %v2748 = vpop.f32.mrb[0].mxu0
        %v2749 = vadd.f32 0.0, %v2748
        %2750 = vmatprep.mubr.bf16.mxu0 0
        %2751 = vmatmul.mubr.bf16.gmra.mrb[0].mxu0 %v2658
        %v2752 = vpop.f32.mrb[0].mxu0
        %v2753 = vadd.f32 0.0, %v2752
        %v2754 = vpop.f32.mrb[0].mxu0
        %v2755 = vadd.f32 0.0, %v2754
        %v2756 = vpop.f32.mrb[0].mxu0
        %v2757 = vadd.f32 0.0, %v2756
        %v2758 = vpop.f32.mrb[0].mxu0
        %v2759 = vadd.f32 0.0, %v2758
        %2760 = vmatprep.mubr.bf16.mxu0 0
        %2761 = vmatmul.mubr.bf16.gmra.mrb[0].mxu0 %v2661
        %v2762 = vpop.f32.mrb[0].mxu0
        %v2763 = vadd.f32 0.0, %v2762
        %v2764 = vpop.f32.mrb[0].mxu0
        %v2765 = vadd.f32 0.0, %v2764
        %v2766 = vpop.f32.mrb[0].mxu0
        %v2767 = vadd.f32 0.0, %v2766
        %v2768 = vpop.f32.mrb[0].mxu0
        %v2769 = vadd.f32 0.0, %v2768
        %2770 = vmatprep.mubr.bf16.mxu0 0
        %2771 = vmatmul.mubr.bf16.gmra.mrb[0].mxu0 %v2664
        %v2772 = vpop.f32.mrb[0].mxu0
        %v2773 = vadd.f32 0.0, %v2772
        %v2774 = vpop.f32.mrb[0].mxu0
        %v2775 = vadd.f32 0.0, %v2774
        %v2776 = vpop.f32.mrb[0].mxu0
        %v2777 = vadd.f32 0.0, %v2776
        %v2778 = vpop.f32.mrb[0].mxu0
        %v2779 = vadd.f32 0.0, %v2778
        %2780 = vmatprep.mubr.bf16.mxu0 0
        %2781 = vmatmul.mubr.bf16.gmra.mrb[0].mxu0 %v2667
        %v2782 = vpop.f32.mrb[0].mxu0
        %v2783 = vadd.f32 0.0, %v2782
        %v2784 = vpop.f32.mrb[0].mxu0
        %v2785 = vadd.f32 0.0, %v2784
        %v2786 = vpop.f32.mrb[0].mxu0
        %v2787 = vadd.f32 0.0, %v2786
        %v2788 = vpop.f32.mrb[0].mxu0
        %v2789 = vadd.f32 0.0, %v2788
        %2790 = vdwg.mxu0
        %2791 = vmatprep.subr.bf16.mxu0 0
        %2792 = vmatpush1.bf16.msra.mxu0 %v2676
        %2793 = vmatprep.subr.bf16.mxu0 0
        %2794 = vmatpush1.bf16.msra.mxu0 0
        %2795 = vmatprep.subr.bf16.mxu0 0
        %2796 = vmatpush1.bf16.msra.mxu0 0
        %2797 = vmatprep.subr.bf16.mxu0 0
        %2798 = vmatpush1.bf16.msra.mxu0 0
        %2799 = vmatprep.subr.bf16.mxu0 0
        %2800 = vmatpush1.bf16.msra.mxu0 0
        %2801 = vmatprep.subr.bf16.mxu0 0
        %2802 = vmatpush1.bf16.msra.mxu0 0
        %2803 = vmatprep.subr.bf16.mxu0 0
        %2804 = vmatpush1.bf16.msra.mxu0 0
        %2805 = vmatprep.subr.bf16.mxu0 0
        %2806 = vmatpush1.bf16.msra.mxu0 0
        %2807 = vmatprep.subr.bf16.mxu0 0
        %2808 = vmatpush1.bf16.msra.mxu0 0
        %2809 = vmatprep.subr.bf16.mxu0 0
        %2810 = vmatpush1.bf16.msra.mxu0 0
        %2811 = vmatprep.subr.bf16.mxu0 0
        %2812 = vmatpush1.bf16.msra.mxu0 0
        %2813 = vmatprep.subr.bf16.mxu0 0
        %2814 = vmatpush1.bf16.msra.mxu0 0
        %2815 = vmatprep.subr.bf16.mxu0 0
        %2816 = vmatpush1.bf16.msra.mxu0 0
        %2817 = vmatprep.subr.bf16.mxu0 0
        %2818 = vmatpush1.bf16.msra.mxu0 0
        %2819 = vmatprep.subr.bf16.mxu0 0
        %2820 = vmatpush1.bf16.msra.mxu0 0
        %2821 = vmatprep.subr.bf16.mxu0 0
        %2822 = vmatpush1.bf16.msra.mxu0 0
        %2823 = vmatprep.mubr.bf16.mxu0 0
        %2824 = vmatmul.mubr.bf16.gmra.mrb[0].mxu0 %v2646
        %v2825 = vpop.f32.mrb[0].mxu0
        %v2826 = vadd.f32 0.0, %v2825
        %v2827 = vpop.f32.mrb[0].mxu0
        %v2828 = vpop.f32.mrb[0].mxu0
        %v2829 = vadd.f32 0.0, %v2828
        %v2830 = vpop.f32.mrb[0].mxu0
        %2831 = vmatprep.mubr.bf16.mxu0 0
        %2832 = vmatmul.mubr.bf16.gmra.mrb[0].mxu0 %v2649
        %v2833 = vpop.f32.mrb[0].mxu0
        %v2834 = vadd.f32 0.0, %v2833
        %v2835 = vpop.f32.mrb[0].mxu0
        %v2836 = vpop.f32.mrb[0].mxu0
        %v2837 = vadd.f32 0.0, %v2836
        %v2838 = vpop.f32.mrb[0].mxu0
        %2839 = vmatprep.mubr.bf16.mxu0 0
        %2840 = vmatmul.mubr.bf16.gmra.mrb[0].mxu0 %v2652
        %v2841 = vpop.f32.mrb[0].mxu0
        %v2842 = vadd.f32 0.0, %v2841
        %v2843 = vpop.f32.mrb[0].mxu0
        %v2844 = vpop.f32.mrb[0].mxu0
        %v2845 = vadd.f32 0.0, %v2844
        %v2846 = vpop.f32.mrb[0].mxu0
        %2847 = vmatprep.mubr.bf16.mxu0 0
        %2848 = vmatmul.mubr.bf16.gmra.mrb[0].mxu0 %v2655
        %v2849 = vpop.f32.mrb[0].mxu0
        %v2850 = vadd.f32 0.0, %v2849
        %v2851 = vpop.f32.mrb[0].mxu0
        %v2852 = vpop.f32.mrb[0].mxu0
        %v2853 = vadd.f32 0.0, %v2852
        %v2854 = vpop.f32.mrb[0].mxu0
        %2855 = vmatprep.mubr.bf16.mxu0 0
        %2856 = vmatmul.mubr.bf16.gmra.mrb[0].mxu0 %v2658
        %v2857 = vpop.f32.mrb[0].mxu0
        %v2858 = vadd.f32 0.0, %v2857
        %v2859 = vpop.f32.mrb[0].mxu0
        %v2860 = vpop.f32.mrb[0].mxu0
        %v2861 = vadd.f32 0.0, %v2860
        %v2862 = vpop.f32.mrb[0].mxu0
        %2863 = vmatprep.mubr.bf16.mxu0 0
        %2864 = vmatmul.mubr.bf16.gmra.mrb[0].mxu0 %v2661
        %v2865 = vpop.f32.mrb[0].mxu0
        %v2866 = vadd.f32 0.0, %v2865
        %v2867 = vpop.f32.mrb[0].mxu0
        %v2868 = vpop.f32.mrb[0].mxu0
        %v2869 = vadd.f32 0.0, %v2868
        %v2870 = vpop.f32.mrb[0].mxu0
        %2871 = vmatprep.mubr.bf16.mxu0 0
        %2872 = vmatmul.mubr.bf16.gmra.mrb[0].mxu0 %v2664
        %v2873 = vpop.f32.mrb[0].mxu0
        %v2874 = vadd.f32 0.0, %v2873
        %v2875 = vpop.f32.mrb[0].mxu0
        %v2876 = vpop.f32.mrb[0].mxu0
        %v2877 = vadd.f32 0.0, %v2876
        %v2878 = vpop.f32.mrb[0].mxu0
        %2879 = vmatprep.mubr.bf16.mxu0 0
        %2880 = vmatmul.mubr.bf16.gmra.mrb[0].mxu0 %v2667
        %v2881 = vpop.f32.mrb[0].mxu0
        %v2882 = vadd.f32 0.0, %v2881
        %v2883 = vpop.f32.mrb[0].mxu0
        %v2884 = vpop.f32.mrb[0].mxu0
        %v2885 = vadd.f32 0.0, %v2884
        %v2886 = vpop.f32.mrb[0].mxu0
        %2887 = vdwg.mxu0
        %v2888 = vadd.f32 %v2509, %v2713
        %v2889 = vadd.f32 %v2510, %v2715
        %v2890 = vadd.f32 %v2511, %v2826
        %v2891 = vadd.f32 %v2512, %v2717
        %v2892 = vadd.f32 %v2513, %v2719
        %v2893 = vadd.f32 %v2514, %v2829
        %v2894 = vadd.f32 %v2515, %v2723
        %v2895 = vadd.f32 %v2516, %v2725
        %v2896 = vadd.f32 %v2517, %v2834
        %v2897 = vadd.f32 %v2518, %v2727
        %v2898 = vadd.f32 %v2519, %v2729
        %v2899 = vadd.f32 %v2520, %v2837
        %v2900 = vadd.f32 %v2521, %v2733
        %v2901 = vadd.f32 %v2522, %v2735
        %v2902 = vadd.f32 %v2523, %v2842
        %v2903 = vadd.f32 %v2524, %v2737
        %v2904 = vadd.f32 %v2525, %v2739
        %v2905 = vadd.f32 %v2526, %v2845
        %v2906 = vadd.f32 %v2527, %v2743
        %v2907 = vadd.f32 %v2528, %v2745
        %v2908 = vadd.f32 %v2529, %v2850
        %v2909 = vadd.f32 %v2530, %v2747
        %v2910 = vadd.f32 %v2531, %v2749
        %v2911 = vadd.f32 %v2532, %v2853
        %v2912 = vadd.f32 %v2533, %v2753
        %v2913 = vadd.f32 %v2534, %v2755
        %v2914 = vadd.f32 %v2535, %v2858
        %v2915 = vadd.f32 %v2536, %v2757
        %v2916 = vadd.f32 %v2537, %v2759
        %v2917 = vadd.f32 %v2538, %v2861
        %v2918 = vadd.f32 %v2539, %v2763
        %v2919 = vadd.f32 %v2540, %v2765
        %v2920 = vadd.f32 %v2541, %v2866
        %v2921 = vadd.f32 %v2542, %v2767
        %v2922 = vadd.f32 %v2543, %v2769
        %v2923 = vadd.f32 %v2544, %v2869
        %v2924 = vadd.f32 %v2545, %v2773
        %v2925 = vadd.f32 %v2546, %v2775
        %v2926 = vadd.f32 %v2547, %v2874
        %v2927 = vadd.f32 %v2548, %v2777
        %v2928 = vadd.f32 %v2549, %v2779
        %v2929 = vadd.f32 %v2550, %v2877
        %v2930 = vadd.f32 %v2551, %v2783
        %v2931 = vadd.f32 %v2552, %v2785
        %v2932 = vadd.f32 %v2553, %v2882
        %v2933 = vadd.f32 %v2554, %v2787
        %v2934 = vadd.f32 %v2555, %v2789
        %v2935 = vadd.f32 %v2556, %v2885
        %v2936 = vld [vmem:[%s369] sm:$0xff]
        %s2937 = scalar_lea.vmem %s1, 448
        %v2938 = vld [vmem:[%s2937] sm:$0xf]
        %v2939 = vld [vmem:[%s2937 + $0x4] sm:$0xf]
        %v2940 = vld [vmem:[%s2937 + $0x8] sm:$0xf]
        %v2941 = vld [vmem:[%s2937 + $0xc] sm:$0xf]
        %v2942 = vld [vmem:[%s2937 + $0x10] sm:$0xf]
        %v2943 = vld [vmem:[%s2937 + $0x14] sm:$0xf]
        %v2944 = vld [vmem:[%s2937 + $0x18] sm:$0xf]
        %v2945 = vld [vmem:[%s2937 + $0x1c] sm:$0xf]
        %v2946 = vld [vmem:[%s2937 + $0x20] sm:$0xf]
        %v2947 = vld [vmem:[%s2937 + $0x24] sm:$0xf]
        %v2948 = vld [vmem:[%s2937 + $0x28] sm:$0xf]
        %v2949 = vld [vmem:[%s2937 + $0x2c] sm:$0xf]
        %v2950 = vld [vmem:[%s2937 + $0x30] sm:$0xf]
        %v2951 = vld [vmem:[%s2937 + $0x34] sm:$0xf]
        %v2952 = vld [vmem:[%s2937 + $0x38] sm:$0xf]
        %v2953 = vld [vmem:[%s2937 + $0x3c] sm:$0xf]
        %v2970 = vunpack.c.l.b16 %v2938
        %v2971 = vunpack.c.l.b16 %v2939
        %v2972 = vunpack.c.l.b16 %v2940
        %v2973 = vunpack.c.l.b16 %v2941
        %v2974 = vunpack.c.l.b16 %v2942
        %v2975 = vunpack.c.l.b16 %v2943
        %v2976 = vunpack.c.l.b16 %v2944
        %v2977 = vunpack.c.l.b16 %v2945
        %v2978 = vunpack.c.l.b16 %v2946
        %v2979 = vunpack.c.l.b16 %v2947
        %v2980 = vunpack.c.l.b16 %v2948
        %v2981 = vunpack.c.l.b16 %v2949
        %v2982 = vunpack.c.l.b16 %v2950
        %v2983 = vunpack.c.l.b16 %v2951
        %v2984 = vunpack.c.l.b16 %v2952
        %v2985 = vunpack.c.l.b16 %v2953
        %v2986 = vpack.c.b16 %v2971, %v2970
        %v2987 = vpack.c.b16 %v2973, %v2972
        %v2988 = vpack.c.b16 %v2975, %v2974
        %v2989 = vpack.c.b16 %v2977, %v2976
        %v2990 = vpack.c.b16 %v2979, %v2978
        %v2991 = vpack.c.b16 %v2981, %v2980
        %v2992 = vpack.c.b16 %v2983, %v2982
        %v2993 = vpack.c.b16 %v2985, %v2984
        %v2995 = vcombine.high %v2936, %v2936
        %v2997 = vunpack.c.l.s4 1983009808
        %v2998 = vunpack.c.0.s8 %v2997
        %v2999 = vlaneseq
        %v3000 = vshrl.u32 %v2999, 7
        %v3001 = vsub.s32 %v2998, %v3000
        %v3002 = vrot.slane %v2936, %v3001
        %v3004 = vunpack.c.l.s4 1983009808
        %v3005 = vunpack.c.0.s8 %v3004
        %v3006 = vlaneseq
        %v3007 = vshrl.u32 %v3006, 7
        %v3008 = vsub.s32 %v3005, %v3007
        %v3009 = vrot.slane %v2995, %v3008
        %v3010 = vcombine.high %v3002, %v3002
        %v3011 = vcombine.high %v3009, %v3009
        %3012 = vrot.lane.b32.xlu0 %v3002, 91
        %v3013 = vpop.permute.xlu0 %3012
        %3014 = vrot.lane.b32.xlu0 %v3010, 91
        %v3015 = vpop.permute.xlu0 %3014
        %3016 = vrot.lane.b32.xlu0 %v3009, 91
        %v3017 = vpop.permute.xlu0 %3016
        %3018 = vrot.lane.b32.xlu0 %v3011, 91
        %v3019 = vpop.permute.xlu0 %3018
        %vm3020 = vcmask 744448
        %v3021 = vsel %vm3020, %v3013, %v3015
        %v3022 = vsel %vm3020, %v3015, %v3017
        %v3023 = vsel %vm3020, %v3017, %v3019
        %v3025 = vsel %vm496, %v2986, 0
        %v3028 = vsel %vm496, %v2987, 0
        %v3031 = vsel %vm496, %v2988, 0
        %v3034 = vsel %vm496, %v2989, 0
        %v3037 = vsel %vm496, %v2990, 0
        %v3040 = vsel %vm496, %v2991, 0
        %v3043 = vsel %vm496, %v2992, 0
        %v3046 = vsel %vm496, %v2993, 0
        %v3049 = vsel %vm521, %v3021, 0
        %v3052 = vsel %vm521, %v3022, 0
        %v3055 = vsel %vm521, %v3023, 0
        %3057 = vmatprep.subr.bf16.mxu0 %v3052
        %3058 = vmatpush1.bf16.msra.mxu0 %v3049
        %3059 = vmatprep.subr.bf16.mxu0 0
        %3060 = vmatpush1.bf16.msra.mxu0 0
        %3061 = vmatprep.subr.bf16.mxu0 0
        %3062 = vmatpush1.bf16.msra.mxu0 0
        %3063 = vmatprep.subr.bf16.mxu0 0
        %3064 = vmatpush1.bf16.msra.mxu0 0
        %3065 = vmatprep.subr.bf16.mxu0 0
        %3066 = vmatpush1.bf16.msra.mxu0 0
        %3067 = vmatprep.subr.bf16.mxu0 0
        %3068 = vmatpush1.bf16.msra.mxu0 0
        %3069 = vmatprep.subr.bf16.mxu0 0
        %3070 = vmatpush1.bf16.msra.mxu0 0
        %3071 = vmatprep.subr.bf16.mxu0 0
        %3072 = vmatpush1.bf16.msra.mxu0 0
        %3073 = vmatprep.subr.bf16.mxu0 0
        %3074 = vmatpush1.bf16.msra.mxu0 0
        %3075 = vmatprep.subr.bf16.mxu0 0
        %3076 = vmatpush1.bf16.msra.mxu0 0
        %3077 = vmatprep.subr.bf16.mxu0 0
        %3078 = vmatpush1.bf16.msra.mxu0 0
        %3079 = vmatprep.subr.bf16.mxu0 0
        %3080 = vmatpush1.bf16.msra.mxu0 0
        %3081 = vmatprep.subr.bf16.mxu0 0
        %3082 = vmatpush1.bf16.msra.mxu0 0
        %3083 = vmatprep.subr.bf16.mxu0 0
        %3084 = vmatpush1.bf16.msra.mxu0 0
        %3085 = vmatprep.subr.bf16.mxu0 0
        %3086 = vmatpush1.bf16.msra.mxu0 0
        %3087 = vmatprep.subr.bf16.mxu0 0
        %3088 = vmatpush1.bf16.msra.mxu0 0
        %3089 = vmatprep.mubr.bf16.mxu0 0
        %3090 = vmatmul.mubr.bf16.gmra.mrb[0].mxu0 %v3025
        %v3091 = vpop.f32.mrb[0].mxu0
        %v3092 = vadd.f32 0.0, %v3091
        %v3093 = vpop.f32.mrb[0].mxu0
        %v3094 = vadd.f32 0.0, %v3093
        %v3095 = vpop.f32.mrb[0].mxu0
        %v3096 = vadd.f32 0.0, %v3095
        %v3097 = vpop.f32.mrb[0].mxu0
        %v3098 = vadd.f32 0.0, %v3097
        %3099 = vmatprep.mubr.bf16.mxu0 0
        %3100 = vmatmul.mubr.bf16.gmra.mrb[0].mxu0 %v3028
        %v3101 = vpop.f32.mrb[0].mxu0
        %v3102 = vadd.f32 0.0, %v3101
        %v3103 = vpop.f32.mrb[0].mxu0
        %v3104 = vadd.f32 0.0, %v3103
        %v3105 = vpop.f32.mrb[0].mxu0
        %v3106 = vadd.f32 0.0, %v3105
        %v3107 = vpop.f32.mrb[0].mxu0
        %v3108 = vadd.f32 0.0, %v3107
        %3109 = vmatprep.mubr.bf16.mxu0 0
        %3110 = vmatmul.mubr.bf16.gmra.mrb[0].mxu0 %v3031
        %v3111 = vpop.f32.mrb[0].mxu0
        %v3112 = vadd.f32 0.0, %v3111
        %v3113 = vpop.f32.mrb[0].mxu0
        %v3114 = vadd.f32 0.0, %v3113
        %v3115 = vpop.f32.mrb[0].mxu0
        %v3116 = vadd.f32 0.0, %v3115
        %v3117 = vpop.f32.mrb[0].mxu0
        %v3118 = vadd.f32 0.0, %v3117
        %3119 = vmatprep.mubr.bf16.mxu0 0
        %3120 = vmatmul.mubr.bf16.gmra.mrb[0].mxu0 %v3034
        %v3121 = vpop.f32.mrb[0].mxu0
        %v3122 = vadd.f32 0.0, %v3121
        %v3123 = vpop.f32.mrb[0].mxu0
        %v3124 = vadd.f32 0.0, %v3123
        %v3125 = vpop.f32.mrb[0].mxu0
        %v3126 = vadd.f32 0.0, %v3125
        %v3127 = vpop.f32.mrb[0].mxu0
        %v3128 = vadd.f32 0.0, %v3127
        %3129 = vmatprep.mubr.bf16.mxu0 0
        %3130 = vmatmul.mubr.bf16.gmra.mrb[0].mxu0 %v3037
        %v3131 = vpop.f32.mrb[0].mxu0
        %v3132 = vadd.f32 0.0, %v3131
        %v3133 = vpop.f32.mrb[0].mxu0
        %v3134 = vadd.f32 0.0, %v3133
        %v3135 = vpop.f32.mrb[0].mxu0
        %v3136 = vadd.f32 0.0, %v3135
        %v3137 = vpop.f32.mrb[0].mxu0
        %v3138 = vadd.f32 0.0, %v3137
        %3139 = vmatprep.mubr.bf16.mxu0 0
        %3140 = vmatmul.mubr.bf16.gmra.mrb[0].mxu0 %v3040
        %v3141 = vpop.f32.mrb[0].mxu0
        %v3142 = vadd.f32 0.0, %v3141
        %v3143 = vpop.f32.mrb[0].mxu0
        %v3144 = vadd.f32 0.0, %v3143
        %v3145 = vpop.f32.mrb[0].mxu0
        %v3146 = vadd.f32 0.0, %v3145
        %v3147 = vpop.f32.mrb[0].mxu0
        %v3148 = vadd.f32 0.0, %v3147
        %3149 = vmatprep.mubr.bf16.mxu0 0
        %3150 = vmatmul.mubr.bf16.gmra.mrb[0].mxu0 %v3043
        %v3151 = vpop.f32.mrb[0].mxu0
        %v3152 = vadd.f32 0.0, %v3151
        %v3153 = vpop.f32.mrb[0].mxu0
        %v3154 = vadd.f32 0.0, %v3153
        %v3155 = vpop.f32.mrb[0].mxu0
        %v3156 = vadd.f32 0.0, %v3155
        %v3157 = vpop.f32.mrb[0].mxu0
        %v3158 = vadd.f32 0.0, %v3157
        %3159 = vmatprep.mubr.bf16.mxu0 0
        %3160 = vmatmul.mubr.bf16.gmra.mrb[0].mxu0 %v3046
        %v3161 = vpop.f32.mrb[0].mxu0
        %v3162 = vadd.f32 0.0, %v3161
        %v3163 = vpop.f32.mrb[0].mxu0
        %v3164 = vadd.f32 0.0, %v3163
        %v3165 = vpop.f32.mrb[0].mxu0
        %v3166 = vadd.f32 0.0, %v3165
        %v3167 = vpop.f32.mrb[0].mxu0
        %v3168 = vadd.f32 0.0, %v3167
        %3169 = vdwg.mxu0
        %3170 = vmatprep.subr.bf16.mxu0 0
        %3171 = vmatpush1.bf16.msra.mxu0 %v3055
        %3172 = vmatprep.subr.bf16.mxu0 0
        %3173 = vmatpush1.bf16.msra.mxu0 0
        %3174 = vmatprep.subr.bf16.mxu0 0
        %3175 = vmatpush1.bf16.msra.mxu0 0
        %3176 = vmatprep.subr.bf16.mxu0 0
        %3177 = vmatpush1.bf16.msra.mxu0 0
        %3178 = vmatprep.subr.bf16.mxu0 0
        %3179 = vmatpush1.bf16.msra.mxu0 0
        %3180 = vmatprep.subr.bf16.mxu0 0
        %3181 = vmatpush1.bf16.msra.mxu0 0
        %3182 = vmatprep.subr.bf16.mxu0 0
        %3183 = vmatpush1.bf16.msra.mxu0 0
        %3184 = vmatprep.subr.bf16.mxu0 0
        %3185 = vmatpush1.bf16.msra.mxu0 0
        %3186 = vmatprep.subr.bf16.mxu0 0
        %3187 = vmatpush1.bf16.msra.mxu0 0
        %3188 = vmatprep.subr.bf16.mxu0 0
        %3189 = vmatpush1.bf16.msra.mxu0 0
        %3190 = vmatprep.subr.bf16.mxu0 0
        %3191 = vmatpush1.bf16.msra.mxu0 0
        %3192 = vmatprep.subr.bf16.mxu0 0
        %3193 = vmatpush1.bf16.msra.mxu0 0
        %3194 = vmatprep.subr.bf16.mxu0 0
        %3195 = vmatpush1.bf16.msra.mxu0 0
        %3196 = vmatprep.subr.bf16.mxu0 0
        %3197 = vmatpush1.bf16.msra.mxu0 0
        %3198 = vmatprep.subr.bf16.mxu0 0
        %3199 = vmatpush1.bf16.msra.mxu0 0
        %3200 = vmatprep.subr.bf16.mxu0 0
        %3201 = vmatpush1.bf16.msra.mxu0 0
        %3202 = vmatprep.mubr.bf16.mxu0 0
        %3203 = vmatmul.mubr.bf16.gmra.mrb[0].mxu0 %v3025
        %v3204 = vpop.f32.mrb[0].mxu0
        %v3205 = vadd.f32 0.0, %v3204
        %v3206 = vpop.f32.mrb[0].mxu0
        %v3207 = vpop.f32.mrb[0].mxu0
        %v3208 = vadd.f32 0.0, %v3207
        %v3209 = vpop.f32.mrb[0].mxu0
        %3210 = vmatprep.mubr.bf16.mxu0 0
        %3211 = vmatmul.mubr.bf16.gmra.mrb[0].mxu0 %v3028
        %v3212 = vpop.f32.mrb[0].mxu0
        %v3213 = vadd.f32 0.0, %v3212
        %v3214 = vpop.f32.mrb[0].mxu0
        %v3215 = vpop.f32.mrb[0].mxu0
        %v3216 = vadd.f32 0.0, %v3215
        %v3217 = vpop.f32.mrb[0].mxu0
        %3218 = vmatprep.mubr.bf16.mxu0 0
        %3219 = vmatmul.mubr.bf16.gmra.mrb[0].mxu0 %v3031
        %v3220 = vpop.f32.mrb[0].mxu0
        %v3221 = vadd.f32 0.0, %v3220
        %v3222 = vpop.f32.mrb[0].mxu0
        %v3223 = vpop.f32.mrb[0].mxu0
        %v3224 = vadd.f32 0.0, %v3223
        %v3225 = vpop.f32.mrb[0].mxu0
        %3226 = vmatprep.mubr.bf16.mxu0 0
        %3227 = vmatmul.mubr.bf16.gmra.mrb[0].mxu0 %v3034
        %v3228 = vpop.f32.mrb[0].mxu0
        %v3229 = vadd.f32 0.0, %v3228
        %v3230 = vpop.f32.mrb[0].mxu0
        %v3231 = vpop.f32.mrb[0].mxu0
        %v3232 = vadd.f32 0.0, %v3231
        %v3233 = vpop.f32.mrb[0].mxu0
        %3234 = vmatprep.mubr.bf16.mxu0 0
        %3235 = vmatmul.mubr.bf16.gmra.mrb[0].mxu0 %v3037
        %v3236 = vpop.f32.mrb[0].mxu0
        %v3237 = vadd.f32 0.0, %v3236
        %v3238 = vpop.f32.mrb[0].mxu0
        %v3239 = vpop.f32.mrb[0].mxu0
        %v3240 = vadd.f32 0.0, %v3239
        %v3241 = vpop.f32.mrb[0].mxu0
        %3242 = vmatprep.mubr.bf16.mxu0 0
        %3243 = vmatmul.mubr.bf16.gmra.mrb[0].mxu0 %v3040
        %v3244 = vpop.f32.mrb[0].mxu0
        %v3245 = vadd.f32 0.0, %v3244
        %v3246 = vpop.f32.mrb[0].mxu0
        %v3247 = vpop.f32.mrb[0].mxu0
        %v3248 = vadd.f32 0.0, %v3247
        %v3249 = vpop.f32.mrb[0].mxu0
        %3250 = vmatprep.mubr.bf16.mxu0 0
        %3251 = vmatmul.mubr.bf16.gmra.mrb[0].mxu0 %v3043
        %v3252 = vpop.f32.mrb[0].mxu0
        %v3253 = vadd.f32 0.0, %v3252
        %v3254 = vpop.f32.mrb[0].mxu0
        %v3255 = vpop.f32.mrb[0].mxu0
        %v3256 = vadd.f32 0.0, %v3255
        %v3257 = vpop.f32.mrb[0].mxu0
        %3258 = vmatprep.mubr.bf16.mxu0 0
        %3259 = vmatmul.mubr.bf16.gmra.mrb[0].mxu0 %v3046
        %v3260 = vpop.f32.mrb[0].mxu0
        %v3261 = vadd.f32 0.0, %v3260
        %v3262 = vpop.f32.mrb[0].mxu0
        %v3263 = vpop.f32.mrb[0].mxu0
        %v3264 = vadd.f32 0.0, %v3263
        %v3265 = vpop.f32.mrb[0].mxu0
        %3266 = vdwg.mxu0
        %v3267 = vadd.f32 %v2888, %v3092
        %v3268 = vadd.f32 %v2889, %v3094
        %v3269 = vadd.f32 %v2890, %v3205
        %v3270 = vadd.f32 %v2891, %v3096
        %v3271 = vadd.f32 %v2892, %v3098
        %v3272 = vadd.f32 %v2893, %v3208
        %v3273 = vadd.f32 %v2894, %v3102
        %v3274 = vadd.f32 %v2895, %v3104
        %v3275 = vadd.f32 %v2896, %v3213
        %v3276 = vadd.f32 %v2897, %v3106
        %v3277 = vadd.f32 %v2898, %v3108
        %v3278 = vadd.f32 %v2899, %v3216
        %v3279 = vadd.f32 %v2900, %v3112
        %v3280 = vadd.f32 %v2901, %v3114
        %v3281 = vadd.f32 %v2902, %v3221
        %v3282 = vadd.f32 %v2903, %v3116
        %v3283 = vadd.f32 %v2904, %v3118
        %v3284 = vadd.f32 %v2905, %v3224
        %v3285 = vadd.f32 %v2906, %v3122
        %v3286 = vadd.f32 %v2907, %v3124
        %v3287 = vadd.f32 %v2908, %v3229
        %v3288 = vadd.f32 %v2909, %v3126
        %v3289 = vadd.f32 %v2910, %v3128
        %v3290 = vadd.f32 %v2911, %v3232
        %v3291 = vadd.f32 %v2912, %v3132
        %v3292 = vadd.f32 %v2913, %v3134
        %v3293 = vadd.f32 %v2914, %v3237
        %v3294 = vadd.f32 %v2915, %v3136
        %v3295 = vadd.f32 %v2916, %v3138
        %v3296 = vadd.f32 %v2917, %v3240
        %v3297 = vadd.f32 %v2918, %v3142
        %v3298 = vadd.f32 %v2919, %v3144
        %v3299 = vadd.f32 %v2920, %v3245
        %v3300 = vadd.f32 %v2921, %v3146
        %v3301 = vadd.f32 %v2922, %v3148
        %v3302 = vadd.f32 %v2923, %v3248
        %v3303 = vadd.f32 %v2924, %v3152
        %v3304 = vadd.f32 %v2925, %v3154
        %v3305 = vadd.f32 %v2926, %v3253
        %v3306 = vadd.f32 %v2927, %v3156
        %v3307 = vadd.f32 %v2928, %v3158
        %v3308 = vadd.f32 %v2929, %v3256
        %v3309 = vadd.f32 %v2930, %v3162
        %v3310 = vadd.f32 %v2931, %v3164
        %v3311 = vadd.f32 %v2932, %v3261
        %v3312 = vadd.f32 %v2933, %v3166
        %v3313 = vadd.f32 %v2934, %v3168
        %v3314 = vadd.f32 %v2935, %v3264
        %v3315 = vld [vmem:[%s369] sm:$0xff]
        %s3316 = scalar_lea.vmem %s1, 512
        %v3317 = vld [vmem:[%s3316] sm:$0xf]
        %v3318 = vld [vmem:[%s3316 + $0x4] sm:$0xf]
        %v3319 = vld [vmem:[%s3316 + $0x8] sm:$0xf]
        %v3320 = vld [vmem:[%s3316 + $0xc] sm:$0xf]
        %v3321 = vld [vmem:[%s3316 + $0x10] sm:$0xf]
        %v3322 = vld [vmem:[%s3316 + $0x14] sm:$0xf]
        %v3323 = vld [vmem:[%s3316 + $0x18] sm:$0xf]
        %v3324 = vld [vmem:[%s3316 + $0x1c] sm:$0xf]
        %v3325 = vld [vmem:[%s3316 + $0x20] sm:$0xf]
        %v3326 = vld [vmem:[%s3316 + $0x24] sm:$0xf]
        %v3327 = vld [vmem:[%s3316 + $0x28] sm:$0xf]
        %v3328 = vld [vmem:[%s3316 + $0x2c] sm:$0xf]
        %v3329 = vld [vmem:[%s3316 + $0x30] sm:$0xf]
        %v3330 = vld [vmem:[%s3316 + $0x34] sm:$0xf]
        %v3331 = vld [vmem:[%s3316 + $0x38] sm:$0xf]
        %v3332 = vld [vmem:[%s3316 + $0x3c] sm:$0xf]
        %v3349 = vunpack.c.l.b16 %v3317
        %v3350 = vunpack.c.l.b16 %v3318
        %v3351 = vunpack.c.l.b16 %v3319
        %v3352 = vunpack.c.l.b16 %v3320
        %v3353 = vunpack.c.l.b16 %v3321
        %v3354 = vunpack.c.l.b16 %v3322
        %v3355 = vunpack.c.l.b16 %v3323
        %v3356 = vunpack.c.l.b16 %v3324
        %v3357 = vunpack.c.l.b16 %v3325
        %v3358 = vunpack.c.l.b16 %v3326
        %v3359 = vunpack.c.l.b16 %v3327
        %v3360 = vunpack.c.l.b16 %v3328
        %v3361 = vunpack.c.l.b16 %v3329
        %v3362 = vunpack.c.l.b16 %v3330
        %v3363 = vunpack.c.l.b16 %v3331
        %v3364 = vunpack.c.l.b16 %v3332
        %v3365 = vpack.c.b16 %v3350, %v3349
        %v3366 = vpack.c.b16 %v3352, %v3351
        %v3367 = vpack.c.b16 %v3354, %v3353
        %v3368 = vpack.c.b16 %v3356, %v3355
        %v3369 = vpack.c.b16 %v3358, %v3357
        %v3370 = vpack.c.b16 %v3360, %v3359
        %v3371 = vpack.c.b16 %v3362, %v3361
        %v3372 = vpack.c.b16 %v3364, %v3363
        %v3374 = vcombine.high %v3315, %v3315
        %v3376 = vunpack.c.l.s4 1983009808
        %v3377 = vunpack.c.0.s8 %v3376
        %v3378 = vlaneseq
        %v3379 = vshrl.u32 %v3378, 7
        %v3380 = vsub.s32 %v3377, %v3379
        %v3381 = vrot.slane %v3315, %v3380
        %v3383 = vunpack.c.l.s4 1983009808
        %v3384 = vunpack.c.0.s8 %v3383
        %v3385 = vlaneseq
        %v3386 = vshrl.u32 %v3385, 7
        %v3387 = vsub.s32 %v3384, %v3386
        %v3388 = vrot.slane %v3374, %v3387
        %v3389 = vcombine.high %v3381, %v3381
        %v3390 = vcombine.high %v3388, %v3388
        %3391 = vrot.lane.b32.xlu0 %v3381, 90
        %v3392 = vpop.permute.xlu0 %3391
        %3393 = vrot.lane.b32.xlu0 %v3389, 90
        %v3394 = vpop.permute.xlu0 %3393
        %3395 = vrot.lane.b32.xlu0 %v3388, 90
        %v3396 = vpop.permute.xlu0 %3395
        %3397 = vrot.lane.b32.xlu0 %v3390, 90
        %v3398 = vpop.permute.xlu0 %3397
        %vm3399 = vcmask 736256
        %v3400 = vsel %vm3399, %v3392, %v3394
        %v3401 = vsel %vm3399, %v3394, %v3396
        %v3402 = vsel %vm3399, %v3396, %v3398
        %v3404 = vsel %vm496, %v3365, 0
        %v3407 = vsel %vm496, %v3366, 0
        %v3410 = vsel %vm496, %v3367, 0
        %v3413 = vsel %vm496, %v3368, 0
        %v3416 = vsel %vm496, %v3369, 0
        %v3419 = vsel %vm496, %v3370, 0
        %v3422 = vsel %vm496, %v3371, 0
        %v3425 = vsel %vm496, %v3372, 0
        %v3428 = vsel %vm521, %v3400, 0
        %v3431 = vsel %vm521, %v3401, 0
        %v3434 = vsel %vm521, %v3402, 0
        %3436 = vmatprep.subr.bf16.mxu0 %v3431
        %3437 = vmatpush1.bf16.msra.mxu0 %v3428
        %3438 = vmatprep.subr.bf16.mxu0 0
        %3439 = vmatpush1.bf16.msra.mxu0 0
        %3440 = vmatprep.subr.bf16.mxu0 0
        %3441 = vmatpush1.bf16.msra.mxu0 0
        %3442 = vmatprep.subr.bf16.mxu0 0
        %3443 = vmatpush1.bf16.msra.mxu0 0
        %3444 = vmatprep.subr.bf16.mxu0 0
        %3445 = vmatpush1.bf16.msra.mxu0 0
        %3446 = vmatprep.subr.bf16.mxu0 0
        %3447 = vmatpush1.bf16.msra.mxu0 0
        %3448 = vmatprep.subr.bf16.mxu0 0
        %3449 = vmatpush1.bf16.msra.mxu0 0
        %3450 = vmatprep.subr.bf16.mxu0 0
        %3451 = vmatpush1.bf16.msra.mxu0 0
        %3452 = vmatprep.subr.bf16.mxu0 0
        %3453 = vmatpush1.bf16.msra.mxu0 0
        %3454 = vmatprep.subr.bf16.mxu0 0
        %3455 = vmatpush1.bf16.msra.mxu0 0
        %3456 = vmatprep.subr.bf16.mxu0 0
        %3457 = vmatpush1.bf16.msra.mxu0 0
        %3458 = vmatprep.subr.bf16.mxu0 0
        %3459 = vmatpush1.bf16.msra.mxu0 0
        %3460 = vmatprep.subr.bf16.mxu0 0
        %3461 = vmatpush1.bf16.msra.mxu0 0
        %3462 = vmatprep.subr.bf16.mxu0 0
        %3463 = vmatpush1.bf16.msra.mxu0 0
        %3464 = vmatprep.subr.bf16.mxu0 0
        %3465 = vmatpush1.bf16.msra.mxu0 0
        %3466 = vmatprep.subr.bf16.mxu0 0
        %3467 = vmatpush1.bf16.msra.mxu0 0
        %3468 = vmatprep.mubr.bf16.mxu0 0
        %3469 = vmatmul.mubr.bf16.gmra.mrb[0].mxu0 %v3404
        %v3470 = vpop.f32.mrb[0].mxu0
        %v3471 = vadd.f32 0.0, %v3470
        %v3472 = vpop.f32.mrb[0].mxu0
        %v3473 = vadd.f32 0.0, %v3472
        %v3474 = vpop.f32.mrb[0].mxu0
        %v3475 = vadd.f32 0.0, %v3474
        %v3476 = vpop.f32.mrb[0].mxu0
        %v3477 = vadd.f32 0.0, %v3476
        %3478 = vmatprep.mubr.bf16.mxu0 0
        %3479 = vmatmul.mubr.bf16.gmra.mrb[0].mxu0 %v3407
        %v3480 = vpop.f32.mrb[0].mxu0
        %v3481 = vadd.f32 0.0, %v3480
        %v3482 = vpop.f32.mrb[0].mxu0
        %v3483 = vadd.f32 0.0, %v3482
        %v3484 = vpop.f32.mrb[0].mxu0
        %v3485 = vadd.f32 0.0, %v3484
        %v3486 = vpop.f32.mrb[0].mxu0
        %v3487 = vadd.f32 0.0, %v3486
        %3488 = vmatprep.mubr.bf16.mxu0 0
        %3489 = vmatmul.mubr.bf16.gmra.mrb[0].mxu0 %v3410
        %v3490 = vpop.f32.mrb[0].mxu0
        %v3491 = vadd.f32 0.0, %v3490
        %v3492 = vpop.f32.mrb[0].mxu0
        %v3493 = vadd.f32 0.0, %v3492
        %v3494 = vpop.f32.mrb[0].mxu0
        %v3495 = vadd.f32 0.0, %v3494
        %v3496 = vpop.f32.mrb[0].mxu0
        %v3497 = vadd.f32 0.0, %v3496
        %3498 = vmatprep.mubr.bf16.mxu0 0
        %3499 = vmatmul.mubr.bf16.gmra.mrb[0].mxu0 %v3413
        %v3500 = vpop.f32.mrb[0].mxu0
        %v3501 = vadd.f32 0.0, %v3500
        %v3502 = vpop.f32.mrb[0].mxu0
        %v3503 = vadd.f32 0.0, %v3502
        %v3504 = vpop.f32.mrb[0].mxu0
        %v3505 = vadd.f32 0.0, %v3504
        %v3506 = vpop.f32.mrb[0].mxu0
        %v3507 = vadd.f32 0.0, %v3506
        %3508 = vmatprep.mubr.bf16.mxu0 0
        %3509 = vmatmul.mubr.bf16.gmra.mrb[0].mxu0 %v3416
        %v3510 = vpop.f32.mrb[0].mxu0
        %v3511 = vadd.f32 0.0, %v3510
        %v3512 = vpop.f32.mrb[0].mxu0
        %v3513 = vadd.f32 0.0, %v3512
        %v3514 = vpop.f32.mrb[0].mxu0
        %v3515 = vadd.f32 0.0, %v3514
        %v3516 = vpop.f32.mrb[0].mxu0
        %v3517 = vadd.f32 0.0, %v3516
        %3518 = vmatprep.mubr.bf16.mxu0 0
        %3519 = vmatmul.mubr.bf16.gmra.mrb[0].mxu0 %v3419
        %v3520 = vpop.f32.mrb[0].mxu0
        %v3521 = vadd.f32 0.0, %v3520
        %v3522 = vpop.f32.mrb[0].mxu0
        %v3523 = vadd.f32 0.0, %v3522
        %v3524 = vpop.f32.mrb[0].mxu0
        %v3525 = vadd.f32 0.0, %v3524
        %v3526 = vpop.f32.mrb[0].mxu0
        %v3527 = vadd.f32 0.0, %v3526
        %3528 = vmatprep.mubr.bf16.mxu0 0
        %3529 = vmatmul.mubr.bf16.gmra.mrb[0].mxu0 %v3422
        %v3530 = vpop.f32.mrb[0].mxu0
        %v3531 = vadd.f32 0.0, %v3530
        %v3532 = vpop.f32.mrb[0].mxu0
        %v3533 = vadd.f32 0.0, %v3532
        %v3534 = vpop.f32.mrb[0].mxu0
        %v3535 = vadd.f32 0.0, %v3534
        %v3536 = vpop.f32.mrb[0].mxu0
        %v3537 = vadd.f32 0.0, %v3536
        %3538 = vmatprep.mubr.bf16.mxu0 0
        %3539 = vmatmul.mubr.bf16.gmra.mrb[0].mxu0 %v3425
        %v3540 = vpop.f32.mrb[0].mxu0
        %v3541 = vadd.f32 0.0, %v3540
        %v3542 = vpop.f32.mrb[0].mxu0
        %v3543 = vadd.f32 0.0, %v3542
        %v3544 = vpop.f32.mrb[0].mxu0
        %v3545 = vadd.f32 0.0, %v3544
        %v3546 = vpop.f32.mrb[0].mxu0
        %v3547 = vadd.f32 0.0, %v3546
        %3548 = vdwg.mxu0
        %3549 = vmatprep.subr.bf16.mxu0 0
        %3550 = vmatpush1.bf16.msra.mxu0 %v3434
        %3551 = vmatprep.subr.bf16.mxu0 0
        %3552 = vmatpush1.bf16.msra.mxu0 0
        %3553 = vmatprep.subr.bf16.mxu0 0
        %3554 = vmatpush1.bf16.msra.mxu0 0
        %3555 = vmatprep.subr.bf16.mxu0 0
        %3556 = vmatpush1.bf16.msra.mxu0 0
        %3557 = vmatprep.subr.bf16.mxu0 0
        %3558 = vmatpush1.bf16.msra.mxu0 0
        %3559 = vmatprep.subr.bf16.mxu0 0
        %3560 = vmatpush1.bf16.msra.mxu0 0
        %3561 = vmatprep.subr.bf16.mxu0 0
        %3562 = vmatpush1.bf16.msra.mxu0 0
        %3563 = vmatprep.subr.bf16.mxu0 0
        %3564 = vmatpush1.bf16.msra.mxu0 0
        %3565 = vmatprep.subr.bf16.mxu0 0
        %3566 = vmatpush1.bf16.msra.mxu0 0
        %3567 = vmatprep.subr.bf16.mxu0 0
        %3568 = vmatpush1.bf16.msra.mxu0 0
        %3569 = vmatprep.subr.bf16.mxu0 0
        %3570 = vmatpush1.bf16.msra.mxu0 0
        %3571 = vmatprep.subr.bf16.mxu0 0
        %3572 = vmatpush1.bf16.msra.mxu0 0
        %3573 = vmatprep.subr.bf16.mxu0 0
        %3574 = vmatpush1.bf16.msra.mxu0 0
        %3575 = vmatprep.subr.bf16.mxu0 0
        %3576 = vmatpush1.bf16.msra.mxu0 0
        %3577 = vmatprep.subr.bf16.mxu0 0
        %3578 = vmatpush1.bf16.msra.mxu0 0
        %3579 = vmatprep.subr.bf16.mxu0 0
        %3580 = vmatpush1.bf16.msra.mxu0 0
        %3581 = vmatprep.mubr.bf16.mxu0 0
        %3582 = vmatmul.mubr.bf16.gmra.mrb[0].mxu0 %v3404
        %v3583 = vpop.f32.mrb[0].mxu0
        %v3584 = vadd.f32 0.0, %v3583
        %v3585 = vpop.f32.mrb[0].mxu0
        %v3586 = vpop.f32.mrb[0].mxu0
        %v3587 = vadd.f32 0.0, %v3586
        %v3588 = vpop.f32.mrb[0].mxu0
        %3589 = vmatprep.mubr.bf16.mxu0 0
        %3590 = vmatmul.mubr.bf16.gmra.mrb[0].mxu0 %v3407
        %v3591 = vpop.f32.mrb[0].mxu0
        %v3592 = vadd.f32 0.0, %v3591
        %v3593 = vpop.f32.mrb[0].mxu0
        %v3594 = vpop.f32.mrb[0].mxu0
        %v3595 = vadd.f32 0.0, %v3594
        %v3596 = vpop.f32.mrb[0].mxu0
        %3597 = vmatprep.mubr.bf16.mxu0 0
        %3598 = vmatmul.mubr.bf16.gmra.mrb[0].mxu0 %v3410
        %v3599 = vpop.f32.mrb[0].mxu0
        %v3600 = vadd.f32 0.0, %v3599
        %v3601 = vpop.f32.mrb[0].mxu0
        %v3602 = vpop.f32.mrb[0].mxu0
        %v3603 = vadd.f32 0.0, %v3602
        %v3604 = vpop.f32.mrb[0].mxu0
        %3605 = vmatprep.mubr.bf16.mxu0 0
        %3606 = vmatmul.mubr.bf16.gmra.mrb[0].mxu0 %v3413
        %v3607 = vpop.f32.mrb[0].mxu0
        %v3608 = vadd.f32 0.0, %v3607
        %v3609 = vpop.f32.mrb[0].mxu0
        %v3610 = vpop.f32.mrb[0].mxu0
        %v3611 = vadd.f32 0.0, %v3610
        %v3612 = vpop.f32.mrb[0].mxu0
        %3613 = vmatprep.mubr.bf16.mxu0 0
        %3614 = vmatmul.mubr.bf16.gmra.mrb[0].mxu0 %v3416
        %v3615 = vpop.f32.mrb[0].mxu0
        %v3616 = vadd.f32 0.0, %v3615
        %v3617 = vpop.f32.mrb[0].mxu0
        %v3618 = vpop.f32.mrb[0].mxu0
        %v3619 = vadd.f32 0.0, %v3618
        %v3620 = vpop.f32.mrb[0].mxu0
        %3621 = vmatprep.mubr.bf16.mxu0 0
        %3622 = vmatmul.mubr.bf16.gmra.mrb[0].mxu0 %v3419
        %v3623 = vpop.f32.mrb[0].mxu0
        %v3624 = vadd.f32 0.0, %v3623
        %v3625 = vpop.f32.mrb[0].mxu0
        %v3626 = vpop.f32.mrb[0].mxu0
        %v3627 = vadd.f32 0.0, %v3626
        %v3628 = vpop.f32.mrb[0].mxu0
        %3629 = vmatprep.mubr.bf16.mxu0 0
        %3630 = vmatmul.mubr.bf16.gmra.mrb[0].mxu0 %v3422
        %v3631 = vpop.f32.mrb[0].mxu0
        %v3632 = vadd.f32 0.0, %v3631
        %v3633 = vpop.f32.mrb[0].mxu0
        %v3634 = vpop.f32.mrb[0].mxu0
        %v3635 = vadd.f32 0.0, %v3634
        %v3636 = vpop.f32.mrb[0].mxu0
        %3637 = vmatprep.mubr.bf16.mxu0 0
        %3638 = vmatmul.mubr.bf16.gmra.mrb[0].mxu0 %v3425
        %v3639 = vpop.f32.mrb[0].mxu0
        %v3640 = vadd.f32 0.0, %v3639
        %v3641 = vpop.f32.mrb[0].mxu0
        %v3642 = vpop.f32.mrb[0].mxu0
        %v3643 = vadd.f32 0.0, %v3642
        %v3644 = vpop.f32.mrb[0].mxu0
        %3645 = vdwg.mxu0
        %v3646 = vadd.f32 %v3267, %v3471
        %v3647 = vadd.f32 %v3268, %v3473
        %v3648 = vadd.f32 %v3269, %v3584
        %v3649 = vadd.f32 %v3270, %v3475
        %v3650 = vadd.f32 %v3271, %v3477
        %v3651 = vadd.f32 %v3272, %v3587
        %v3652 = vadd.f32 %v3273, %v3481
        %v3653 = vadd.f32 %v3274, %v3483
        %v3654 = vadd.f32 %v3275, %v3592
        %v3655 = vadd.f32 %v3276, %v3485
        %v3656 = vadd.f32 %v3277, %v3487
        %v3657 = vadd.f32 %v3278, %v3595
        %v3658 = vadd.f32 %v3279, %v3491
        %v3659 = vadd.f32 %v3280, %v3493
        %v3660 = vadd.f32 %v3281, %v3600
        %v3661 = vadd.f32 %v3282, %v3495
        %v3662 = vadd.f32 %v3283, %v3497
        %v3663 = vadd.f32 %v3284, %v3603
        %v3664 = vadd.f32 %v3285, %v3501
        %v3665 = vadd.f32 %v3286, %v3503
        %v3666 = vadd.f32 %v3287, %v3608
        %v3667 = vadd.f32 %v3288, %v3505
        %v3668 = vadd.f32 %v3289, %v3507
        %v3669 = vadd.f32 %v3290, %v3611
        %v3670 = vadd.f32 %v3291, %v3511
        %v3671 = vadd.f32 %v3292, %v3513
        %v3672 = vadd.f32 %v3293, %v3616
        %v3673 = vadd.f32 %v3294, %v3515
        %v3674 = vadd.f32 %v3295, %v3517
        %v3675 = vadd.f32 %v3296, %v3619
        %v3676 = vadd.f32 %v3297, %v3521
        %v3677 = vadd.f32 %v3298, %v3523
        %v3678 = vadd.f32 %v3299, %v3624
        %v3679 = vadd.f32 %v3300, %v3525
        %v3680 = vadd.f32 %v3301, %v3527
        %v3681 = vadd.f32 %v3302, %v3627
        %v3682 = vadd.f32 %v3303, %v3531
        %v3683 = vadd.f32 %v3304, %v3533
        %v3684 = vadd.f32 %v3305, %v3632
        %v3685 = vadd.f32 %v3306, %v3535
        %v3686 = vadd.f32 %v3307, %v3537
        %v3687 = vadd.f32 %v3308, %v3635
        %v3688 = vadd.f32 %v3309, %v3541
        %v3689 = vadd.f32 %v3310, %v3543
        %v3690 = vadd.f32 %v3311, %v3640
        %v3691 = vadd.f32 %v3312, %v3545
        %v3692 = vadd.f32 %v3313, %v3547
        %v3693 = vadd.f32 %v3314, %v3643
        %v3694 = vpack.c.bf16 %v3649, %v3646
        %v3695 = vpack.c.bf16 %v3650, %v3647
        %v3696 = vpack.c.bf16 %v3651, %v3648
        %v3697 = vpack.c.bf16 %v3655, %v3652
        %v3698 = vpack.c.bf16 %v3656, %v3653
        %v3699 = vpack.c.bf16 %v3657, %v3654
        %v3700 = vpack.c.bf16 %v3661, %v3658
        %v3701 = vpack.c.bf16 %v3662, %v3659
        %v3702 = vpack.c.bf16 %v3663, %v3660
        %v3703 = vpack.c.bf16 %v3667, %v3664
        %v3704 = vpack.c.bf16 %v3668, %v3665
        %v3705 = vpack.c.bf16 %v3669, %v3666
        %v3706 = vpack.c.bf16 %v3673, %v3670
        %v3707 = vpack.c.bf16 %v3674, %v3671
        %v3708 = vpack.c.bf16 %v3675, %v3672
        %v3709 = vpack.c.bf16 %v3679, %v3676
        %v3710 = vpack.c.bf16 %v3680, %v3677
        %v3711 = vpack.c.bf16 %v3681, %v3678
        %v3712 = vpack.c.bf16 %v3685, %v3682
        %v3713 = vpack.c.bf16 %v3686, %v3683
        %v3714 = vpack.c.bf16 %v3687, %v3684
        %v3715 = vpack.c.bf16 %v3691, %v3688
        %v3716 = vpack.c.bf16 %v3692, %v3689
        %v3717 = vpack.c.bf16 %v3693, %v3690
        %v3742 = vunpack.c.l.b16 %v3694
        %v3743 = vunpack.c.l.b16 %v3695
        %v3744 = vunpack.c.l.b16 %v3696
        %v3745 = vunpack.c.h.b16 %v3694
        %v3746 = vunpack.c.h.b16 %v3695
        %v3747 = vunpack.c.h.b16 %v3696
        %v3748 = vunpack.c.l.b16 %v3697
        %v3749 = vunpack.c.l.b16 %v3698
        %v3750 = vunpack.c.l.b16 %v3699
        %v3751 = vunpack.c.h.b16 %v3697
        %v3752 = vunpack.c.h.b16 %v3698
        %v3753 = vunpack.c.h.b16 %v3699
        %v3754 = vunpack.c.l.b16 %v3700
        %v3755 = vunpack.c.l.b16 %v3701
        %v3756 = vunpack.c.l.b16 %v3702
        %v3757 = vunpack.c.h.b16 %v3700
        %v3758 = vunpack.c.h.b16 %v3701
        %v3759 = vunpack.c.h.b16 %v3702
        %v3760 = vunpack.c.l.b16 %v3703
        %v3761 = vunpack.c.l.b16 %v3704
        %v3762 = vunpack.c.l.b16 %v3705
        %v3763 = vunpack.c.h.b16 %v3703
        %v3764 = vunpack.c.h.b16 %v3704
        %v3765 = vunpack.c.h.b16 %v3705
        %v3766 = vunpack.c.l.b16 %v3706
        %v3767 = vunpack.c.l.b16 %v3707
        %v3768 = vunpack.c.l.b16 %v3708
        %v3769 = vunpack.c.h.b16 %v3706
        %v3770 = vunpack.c.h.b16 %v3707
        %v3771 = vunpack.c.h.b16 %v3708
        %v3772 = vunpack.c.l.b16 %v3709
        %v3773 = vunpack.c.l.b16 %v3710
        %v3774 = vunpack.c.l.b16 %v3711
        %v3775 = vunpack.c.h.b16 %v3709
        %v3776 = vunpack.c.h.b16 %v3710
        %v3777 = vunpack.c.h.b16 %v3711
        %v3778 = vunpack.c.l.b16 %v3712
        %v3779 = vunpack.c.l.b16 %v3713
        %v3780 = vunpack.c.l.b16 %v3714
        %v3781 = vunpack.c.h.b16 %v3712
        %v3782 = vunpack.c.h.b16 %v3713
        %v3783 = vunpack.c.h.b16 %v3714
        %v3784 = vunpack.c.l.b16 %v3715
        %v3785 = vunpack.c.l.b16 %v3716
        %v3786 = vunpack.c.l.b16 %v3717
        %v3787 = vunpack.c.h.b16 %v3715
        %v3788 = vunpack.c.h.b16 %v3716
        %v3789 = vunpack.c.h.b16 %v3717
        %v3790 = vpack.c.b16 %v3743, %v3742
        %v3791 = vpack.c.b16 %v3744, %v3744
        %v3792 = vpack.c.b16 %v3746, %v3745
        %v3793 = vpack.c.b16 %v3747, %v3747
        %v3794 = vpack.c.b16 %v3749, %v3748
        %v3795 = vpack.c.b16 %v3750, %v3750
        %v3796 = vpack.c.b16 %v3752, %v3751
        %v3797 = vpack.c.b16 %v3753, %v3753
        %v3798 = vpack.c.b16 %v3755, %v3754
        %v3799 = vpack.c.b16 %v3756, %v3756
        %v3800 = vpack.c.b16 %v3758, %v3757
        %v3801 = vpack.c.b16 %v3759, %v3759
        %v3802 = vpack.c.b16 %v3761, %v3760
        %v3803 = vpack.c.b16 %v3762, %v3762
        %v3804 = vpack.c.b16 %v3764, %v3763
        %v3805 = vpack.c.b16 %v3765, %v3765
        %v3806 = vpack.c.b16 %v3767, %v3766
        %v3807 = vpack.c.b16 %v3768, %v3768
        %v3808 = vpack.c.b16 %v3770, %v3769
        %v3809 = vpack.c.b16 %v3771, %v3771
        %v3810 = vpack.c.b16 %v3773, %v3772
        %v3811 = vpack.c.b16 %v3774, %v3774
        %v3812 = vpack.c.b16 %v3776, %v3775
        %v3813 = vpack.c.b16 %v3777, %v3777
        %v3814 = vpack.c.b16 %v3779, %v3778
        %v3815 = vpack.c.b16 %v3780, %v3780
        %v3816 = vpack.c.b16 %v3782, %v3781
        %v3817 = vpack.c.b16 %v3783, %v3783
        %v3818 = vpack.c.b16 %v3785, %v3784
        %v3819 = vpack.c.b16 %v3786, %v3786
        %v3820 = vpack.c.b16 %v3788, %v3787
        %v3821 = vpack.c.b16 %v3789, %v3789
        %3854 = vst [vmem:[%s329] sm:$0xff] %v3790
        %3855 = vst [vmem:[%s329 + $0x8] sm:$0xf] %v3791
        %3856 = vst [vmem:[%s329 + $0xc] sm:$0xff] %v3792
        %3857 = vst [vmem:[%s329 + $0x14] sm:$0xf] %v3793
        %3858 = vst [vmem:[%s329 + $0x18] sm:$0xff] %v3794
        %3859 = vst [vmem:[%s329 + $0x20] sm:$0xf] %v3795
        %3860 = vst [vmem:[%s329 + $0x24] sm:$0xff] %v3796
        %3861 = vst [vmem:[%s329 + $0x2c] sm:$0xf] %v3797
        %3862 = vst [vmem:[%s329 + $0x30] sm:$0xff] %v3798
        %3863 = vst [vmem:[%s329 + $0x38] sm:$0xf] %v3799
        %3864 = vst [vmem:[%s329 + $0x3c] sm:$0xff] %v3800
        %3865 = vst [vmem:[%s329 + $0x44] sm:$0xf] %v3801
        %3866 = vst [vmem:[%s329 + $0x48] sm:$0xff] %v3802
        %3867 = vst [vmem:[%s329 + $0x50] sm:$0xf] %v3803
        %3868 = vst [vmem:[%s329 + $0x54] sm:$0xff] %v3804
        %3869 = vst [vmem:[%s329 + $0x5c] sm:$0xf] %v3805
        %3870 = vst [vmem:[%s329 + $0x60] sm:$0xff] %v3806
        %3871 = vst [vmem:[%s329 + $0x68] sm:$0xf] %v3807
        %3872 = vst [vmem:[%s329 + $0x6c] sm:$0xff] %v3808
        %3873 = vst [vmem:[%s329 + $0x74] sm:$0xf] %v3809
        %3874 = vst [vmem:[%s329 + $0x78] sm:$0xff] %v3810
        %3875 = vst [vmem:[%s329 + $0x80] sm:$0xf] %v3811
        %3876 = vst [vmem:[%s329 + $0x84] sm:$0xff] %v3812
        %3877 = vst [vmem:[%s329 + $0x8c] sm:$0xf] %v3813
        %3878 = vst [vmem:[%s329 + $0x90] sm:$0xff] %v3814
        %3879 = vst [vmem:[%s329 + $0x98] sm:$0xf] %v3815
        %3880 = vst [vmem:[%s329 + $0x9c] sm:$0xff] %v3816
        %3881 = vst [vmem:[%s329 + $0xa4] sm:$0xf] %v3817
        %3882 = vst [vmem:[%s329 + $0xa8] sm:$0xff] %v3818
        %3883 = vst [vmem:[%s329 + $0xb0] sm:$0xf] %v3819
        %3884 = vst [vmem:[%s329 + $0xb4] sm:$0xff] %v3820
        %3885 = vst [vmem:[%s329 + $0xbc] sm:$0xf] %v3821
        %v3886 = vld [vmem:[%s2] sm:$0x7]
        %v3888 = vlaneseq
        %v3889 = vshrl.u32 %v3888, 7
        %v3890 = vsub.s32 0, %v3889
        %v3891 = vrot.slane %v3886, %v3890
        %v3892 = vlaneseq
        %v3893 = vshrl.u32 %v3892, 7
        %v3894 = vsub.s32 1, %v3893
        %v3895 = vrot.slane %v3886, %v3894
        %v3896 = vlaneseq
        %v3897 = vshrl.u32 %v3896, 7
        %v3898 = vsub.s32 2, %v3897
        %v3899 = vrot.slane %v3886, %v3898
        %v3903 = vmul.f32 %v3646, %v3891
        %v3904 = vmul.f32 %v3647, %v3895
        %v3905 = vmul.f32 %v3648, %v3899
        %v3906 = vmul.f32 %v3649, %v3891
        %v3907 = vmul.f32 %v3650, %v3895
        %v3908 = vmul.f32 %v3651, %v3899
        %v3909 = vmul.f32 %v3652, %v3891
        %v3910 = vmul.f32 %v3653, %v3895
        %v3911 = vmul.f32 %v3654, %v3899
        %v3912 = vmul.f32 %v3655, %v3891
        %v3913 = vmul.f32 %v3656, %v3895
        %v3914 = vmul.f32 %v3657, %v3899
        %v3915 = vmul.f32 %v3658, %v3891
        %v3916 = vmul.f32 %v3659, %v3895
        %v3917 = vmul.f32 %v3660, %v3899
        %v3918 = vmul.f32 %v3661, %v3891
        %v3919 = vmul.f32 %v3662, %v3895
        %v3920 = vmul.f32 %v3663, %v3899
        %v3921 = vmul.f32 %v3664, %v3891
        %v3922 = vmul.f32 %v3665, %v3895
        %v3923 = vmul.f32 %v3666, %v3899
        %v3924 = vmul.f32 %v3667, %v3891
        %v3925 = vmul.f32 %v3668, %v3895
        %v3926 = vmul.f32 %v3669, %v3899
        %v3927 = vmul.f32 %v3670, %v3891
        %v3928 = vmul.f32 %v3671, %v3895
        %v3929 = vmul.f32 %v3672, %v3899
        %v3930 = vmul.f32 %v3673, %v3891
        %v3931 = vmul.f32 %v3674, %v3895
        %v3932 = vmul.f32 %v3675, %v3899
        %v3933 = vmul.f32 %v3676, %v3891
        %v3934 = vmul.f32 %v3677, %v3895
        %v3935 = vmul.f32 %v3678, %v3899
        %v3936 = vmul.f32 %v3679, %v3891
        %v3937 = vmul.f32 %v3680, %v3895
        %v3938 = vmul.f32 %v3681, %v3899
        %v3939 = vmul.f32 %v3682, %v3891
        %v3940 = vmul.f32 %v3683, %v3895
        %v3941 = vmul.f32 %v3684, %v3899
        %v3942 = vmul.f32 %v3685, %v3891
        %v3943 = vmul.f32 %v3686, %v3895
        %v3944 = vmul.f32 %v3687, %v3899
        %v3945 = vmul.f32 %v3688, %v3891
        %v3946 = vmul.f32 %v3689, %v3895
        %v3947 = vmul.f32 %v3690, %v3899
        %v3948 = vmul.f32 %v3691, %v3891
        %v3949 = vmul.f32 %v3692, %v3895
        %v3950 = vmul.f32 %v3693, %v3899
        %v3951 = vadd.f32 %v3903, %v3904
        %v3952 = vadd.f32 %v3951, %v3905
        %3953 = vadd.xlane.f32.xlu0 %v3952
        %v3954 = vpop.xlane.xlu0 %3953
        %v3955 = vadd.f32 %v3906, %v3907
        %v3956 = vadd.f32 %v3955, %v3908
        %3957 = vadd.xlane.f32.xlu0 %v3956
        %v3958 = vpop.xlane.xlu0 %3957
        %v3959 = vadd.f32 %v3909, %v3910
        %v3960 = vadd.f32 %v3959, %v3911
        %3961 = vadd.xlane.f32.xlu0 %v3960
        %v3962 = vpop.xlane.xlu0 %3961
        %v3963 = vadd.f32 %v3912, %v3913
        %v3964 = vadd.f32 %v3963, %v3914
        %3965 = vadd.xlane.f32.xlu0 %v3964
        %v3966 = vpop.xlane.xlu0 %3965
        %v3967 = vadd.f32 %v3915, %v3916
        %v3968 = vadd.f32 %v3967, %v3917
        %3969 = vadd.xlane.f32.xlu0 %v3968
        %v3970 = vpop.xlane.xlu0 %3969
        %v3971 = vadd.f32 %v3918, %v3919
        %v3972 = vadd.f32 %v3971, %v3920
        %3973 = vadd.xlane.f32.xlu0 %v3972
        %v3974 = vpop.xlane.xlu0 %3973
        %v3975 = vadd.f32 %v3921, %v3922
        %v3976 = vadd.f32 %v3975, %v3923
        %3977 = vadd.xlane.f32.xlu0 %v3976
        %v3978 = vpop.xlane.xlu0 %3977
        %v3979 = vadd.f32 %v3924, %v3925
        %v3980 = vadd.f32 %v3979, %v3926
        %3981 = vadd.xlane.f32.xlu0 %v3980
        %v3982 = vpop.xlane.xlu0 %3981
        %v3983 = vadd.f32 %v3927, %v3928
        %v3984 = vadd.f32 %v3983, %v3929
        %3985 = vadd.xlane.f32.xlu0 %v3984
        %v3986 = vpop.xlane.xlu0 %3985
        %v3987 = vadd.f32 %v3930, %v3931
        %v3988 = vadd.f32 %v3987, %v3932
        %3989 = vadd.xlane.f32.xlu0 %v3988
        %v3990 = vpop.xlane.xlu0 %3989
        %v3991 = vadd.f32 %v3933, %v3934
        %v3992 = vadd.f32 %v3991, %v3935
        %3993 = vadd.xlane.f32.xlu0 %v3992
        %v3994 = vpop.xlane.xlu0 %3993
        %v3995 = vadd.f32 %v3936, %v3937
        %v3996 = vadd.f32 %v3995, %v3938
        %3997 = vadd.xlane.f32.xlu0 %v3996
        %v3998 = vpop.xlane.xlu0 %3997
        %v3999 = vadd.f32 %v3939, %v3940
        %v4000 = vadd.f32 %v3999, %v3941
        %4001 = vadd.xlane.f32.xlu0 %v4000
        %v4002 = vpop.xlane.xlu0 %4001
        %v4003 = vadd.f32 %v3942, %v3943
        %v4004 = vadd.f32 %v4003, %v3944
        %4005 = vadd.xlane.f32.xlu0 %v4004
        %v4006 = vpop.xlane.xlu0 %4005
        %v4007 = vadd.f32 %v3945, %v3946
        %v4008 = vadd.f32 %v4007, %v3947
        %4009 = vadd.xlane.f32.xlu0 %v4008
        %v4010 = vpop.xlane.xlu0 %4009
        %v4011 = vadd.f32 %v3948, %v3949
        %v4012 = vadd.f32 %v4011, %v3950
        %4013 = vadd.xlane.f32.xlu0 %v4012
        %v4014 = vpop.xlane.xlu0 %4013
        %vm4015 = vcmask 7168
        %4016 = vst.msk [vmem:[%s374] sm:$0xff] %vm4015, %v3954
        %4017 = vst.msk [vmem:[%s374 + $0x8] sm:$0xff] %vm4015, %v3958
        %4018 = vst.msk [vmem:[%s374 + $0x10] sm:$0xff] %vm4015, %v3962
        %4019 = vst.msk [vmem:[%s374 + $0x18] sm:$0xff] %vm4015, %v3966
        %4020 = vst.msk [vmem:[%s374 + $0x20] sm:$0xff] %vm4015, %v3970
        %4021 = vst.msk [vmem:[%s374 + $0x28] sm:$0xff] %vm4015, %v3974
        %4022 = vst.msk [vmem:[%s374 + $0x30] sm:$0xff] %vm4015, %v3978
        %4023 = vst.msk [vmem:[%s374 + $0x38] sm:$0xff] %vm4015, %v3982
        %4024 = vst.msk [vmem:[%s374 + $0x40] sm:$0xff] %vm4015, %v3986
        %4025 = vst.msk [vmem:[%s374 + $0x48] sm:$0xff] %vm4015, %v3990
        %4026 = vst.msk [vmem:[%s374 + $0x50] sm:$0xff] %vm4015, %v3994
        %4027 = vst.msk [vmem:[%s374 + $0x58] sm:$0xff] %vm4015, %v3998
        %4028 = vst.msk [vmem:[%s374 + $0x60] sm:$0xff] %vm4015, %v4002
        %4029 = vst.msk [vmem:[%s374 + $0x68] sm:$0xff] %vm4015, %v4006
        %4030 = vst.msk [vmem:[%s374 + $0x70] sm:$0xff] %vm4015, %v4010
        %4031 = vst.msk [vmem:[%s374 + $0x78] sm:$0xff] %vm4015, %v4014
        %v4032 = vmul.f32 %v3903, %v3646
        %v4033 = vmul.f32 %v3904, %v3647
        %v4034 = vmul.f32 %v3905, %v3648
        %v4035 = vmul.f32 %v3906, %v3649
        %v4036 = vmul.f32 %v3907, %v3650
        %v4037 = vmul.f32 %v3908, %v3651
        %v4038 = vmul.f32 %v3909, %v3652
        %v4039 = vmul.f32 %v3910, %v3653
        %v4040 = vmul.f32 %v3911, %v3654
        %v4041 = vmul.f32 %v3912, %v3655
        %v4042 = vmul.f32 %v3913, %v3656
        %v4043 = vmul.f32 %v3914, %v3657
        %v4044 = vmul.f32 %v3915, %v3658
        %v4045 = vmul.f32 %v3916, %v3659
        %v4046 = vmul.f32 %v3917, %v3660
        %v4047 = vmul.f32 %v3918, %v3661
        %v4048 = vmul.f32 %v3919, %v3662
        %v4049 = vmul.f32 %v3920, %v3663
        %v4050 = vmul.f32 %v3921, %v3664
        %v4051 = vmul.f32 %v3922, %v3665
        %v4052 = vmul.f32 %v3923, %v3666
        %v4053 = vmul.f32 %v3924, %v3667
        %v4054 = vmul.f32 %v3925, %v3668
        %v4055 = vmul.f32 %v3926, %v3669
        %v4056 = vmul.f32 %v3927, %v3670
        %v4057 = vmul.f32 %v3928, %v3671
        %v4058 = vmul.f32 %v3929, %v3672
        %v4059 = vmul.f32 %v3930, %v3673
        %v4060 = vmul.f32 %v3931, %v3674
        %v4061 = vmul.f32 %v3932, %v3675
        %v4062 = vmul.f32 %v3933, %v3676
        %v4063 = vmul.f32 %v3934, %v3677
        %v4064 = vmul.f32 %v3935, %v3678
        %v4065 = vmul.f32 %v3936, %v3679
        %v4066 = vmul.f32 %v3937, %v3680
        %v4067 = vmul.f32 %v3938, %v3681
        %v4068 = vmul.f32 %v3939, %v3682
        %v4069 = vmul.f32 %v3940, %v3683
        %v4070 = vmul.f32 %v3941, %v3684
        %v4071 = vmul.f32 %v3942, %v3685
        %v4072 = vmul.f32 %v3943, %v3686
        %v4073 = vmul.f32 %v3944, %v3687
        %v4074 = vmul.f32 %v3945, %v3688
        %v4075 = vmul.f32 %v3946, %v3689
        %v4076 = vmul.f32 %v3947, %v3690
        %v4077 = vmul.f32 %v3948, %v3691
        %v4078 = vmul.f32 %v3949, %v3692
        %v4079 = vmul.f32 %v3950, %v3693
        %v4080 = vadd.f32 %v4032, %v4033
        %v4081 = vadd.f32 %v4080, %v4034
        %4082 = vadd.xlane.f32.xlu0 %v4081
        %v4083 = vpop.xlane.xlu0 %4082
        %v4084 = vadd.f32 %v4035, %v4036
        %v4085 = vadd.f32 %v4084, %v4037
        %4086 = vadd.xlane.f32.xlu0 %v4085
        %v4087 = vpop.xlane.xlu0 %4086
        %v4088 = vadd.f32 %v4038, %v4039
        %v4089 = vadd.f32 %v4088, %v4040
        %4090 = vadd.xlane.f32.xlu0 %v4089
        %v4091 = vpop.xlane.xlu0 %4090
        %v4092 = vadd.f32 %v4041, %v4042
        %v4093 = vadd.f32 %v4092, %v4043
        %4094 = vadd.xlane.f32.xlu0 %v4093
        %v4095 = vpop.xlane.xlu0 %4094
        %v4096 = vadd.f32 %v4044, %v4045
        %v4097 = vadd.f32 %v4096, %v4046
        %4098 = vadd.xlane.f32.xlu0 %v4097
        %v4099 = vpop.xlane.xlu0 %4098
        %v4100 = vadd.f32 %v4047, %v4048
        %v4101 = vadd.f32 %v4100, %v4049
        %4102 = vadd.xlane.f32.xlu0 %v4101
        %v4103 = vpop.xlane.xlu0 %4102
        %v4104 = vadd.f32 %v4050, %v4051
        %v4105 = vadd.f32 %v4104, %v4052
        %4106 = vadd.xlane.f32.xlu0 %v4105
        %v4107 = vpop.xlane.xlu0 %4106
        %v4108 = vadd.f32 %v4053, %v4054
        %v4109 = vadd.f32 %v4108, %v4055
        %4110 = vadd.xlane.f32.xlu0 %v4109
        %v4111 = vpop.xlane.xlu0 %4110
        %v4112 = vadd.f32 %v4056, %v4057
        %v4113 = vadd.f32 %v4112, %v4058
        %4114 = vadd.xlane.f32.xlu0 %v4113
        %v4115 = vpop.xlane.xlu0 %4114
        %v4116 = vadd.f32 %v4059, %v4060
        %v4117 = vadd.f32 %v4116, %v4061
        %4118 = vadd.xlane.f32.xlu0 %v4117
        %v4119 = vpop.xlane.xlu0 %4118
        %v4120 = vadd.f32 %v4062, %v4063
        %v4121 = vadd.f32 %v4120, %v4064
        %4122 = vadd.xlane.f32.xlu0 %v4121
        %v4123 = vpop.xlane.xlu0 %4122
        %v4124 = vadd.f32 %v4065, %v4066
        %v4125 = vadd.f32 %v4124, %v4067
        %4126 = vadd.xlane.f32.xlu0 %v4125
        %v4127 = vpop.xlane.xlu0 %4126
        %v4128 = vadd.f32 %v4068, %v4069
        %v4129 = vadd.f32 %v4128, %v4070
        %4130 = vadd.xlane.f32.xlu0 %v4129
        %v4131 = vpop.xlane.xlu0 %4130
        %v4132 = vadd.f32 %v4071, %v4072
        %v4133 = vadd.f32 %v4132, %v4073
        %4134 = vadd.xlane.f32.xlu0 %v4133
        %v4135 = vpop.xlane.xlu0 %4134
        %v4136 = vadd.f32 %v4074, %v4075
        %v4137 = vadd.f32 %v4136, %v4076
        %4138 = vadd.xlane.f32.xlu0 %v4137
        %v4139 = vpop.xlane.xlu0 %4138
        %v4140 = vadd.f32 %v4077, %v4078
        %v4141 = vadd.f32 %v4140, %v4079
        %4142 = vadd.xlane.f32.xlu0 %v4141
        %v4143 = vpop.xlane.xlu0 %4142
        %4144 = vst.msk [vmem:[%s379] sm:$0xff] %vm4015, %v4083
        %4145 = vst.msk [vmem:[%s379 + $0x8] sm:$0xff] %vm4015, %v4087
        %4146 = vst.msk [vmem:[%s379 + $0x10] sm:$0xff] %vm4015, %v4091
        %4147 = vst.msk [vmem:[%s379 + $0x18] sm:$0xff] %vm4015, %v4095
        %4148 = vst.msk [vmem:[%s379 + $0x20] sm:$0xff] %vm4015, %v4099
        %4149 = vst.msk [vmem:[%s379 + $0x28] sm:$0xff] %vm4015, %v4103
        %4150 = vst.msk [vmem:[%s379 + $0x30] sm:$0xff] %vm4015, %v4107
        %4151 = vst.msk [vmem:[%s379 + $0x38] sm:$0xff] %vm4015, %v4111
        %4152 = vst.msk [vmem:[%s379 + $0x40] sm:$0xff] %vm4015, %v4115
        %4153 = vst.msk [vmem:[%s379 + $0x48] sm:$0xff] %vm4015, %v4119
        %4154 = vst.msk [vmem:[%s379 + $0x50] sm:$0xff] %vm4015, %v4123
        %4155 = vst.msk [vmem:[%s379 + $0x58] sm:$0xff] %vm4015, %v4127
        %4156 = vst.msk [vmem:[%s379 + $0x60] sm:$0xff] %vm4015, %v4131
        %4157 = vst.msk [vmem:[%s379 + $0x68] sm:$0xff] %vm4015, %v4135
        %4158 = vst.msk [vmem:[%s379 + $0x70] sm:$0xff] %vm4015, %v4139
        %4159 = vst.msk [vmem:[%s379 + $0x78] sm:$0xff] %vm4015, %v4143
        %v4160 = vld [vmem:[%s369] sm:$0xff]
        %v4161 = vld [vmem:[%s3] sm:$0xf]
        %v4162 = vld [vmem:[%s3 + $0x4] sm:$0xf]
        %v4163 = vld [vmem:[%s3 + $0x8] sm:$0xf]
        %v4164 = vld [vmem:[%s3 + $0xc] sm:$0xf]
        %v4165 = vld [vmem:[%s3 + $0x10] sm:$0xf]
        %v4166 = vld [vmem:[%s3 + $0x14] sm:$0xf]
        %v4167 = vld [vmem:[%s3 + $0x18] sm:$0xf]
        %v4168 = vld [vmem:[%s3 + $0x1c] sm:$0xf]
        %v4169 = vld [vmem:[%s3 + $0x20] sm:$0xf]
        %v4170 = vld [vmem:[%s3 + $0x24] sm:$0xf]
        %v4171 = vld [vmem:[%s3 + $0x28] sm:$0xf]
        %v4172 = vld [vmem:[%s3 + $0x2c] sm:$0xf]
        %v4173 = vld [vmem:[%s3 + $0x30] sm:$0xf]
        %v4174 = vld [vmem:[%s3 + $0x34] sm:$0xf]
        %v4175 = vld [vmem:[%s3 + $0x38] sm:$0xf]
        %v4176 = vld [vmem:[%s3 + $0x3c] sm:$0xf]
        %v4193 = vunpack.c.l.b16 %v4161
        %v4194 = vunpack.c.l.b16 %v4162
        %v4195 = vunpack.c.l.b16 %v4163
        %v4196 = vunpack.c.l.b16 %v4164
        %v4197 = vunpack.c.l.b16 %v4165
        %v4198 = vunpack.c.l.b16 %v4166
        %v4199 = vunpack.c.l.b16 %v4167
        %v4200 = vunpack.c.l.b16 %v4168
        %v4201 = vunpack.c.l.b16 %v4169
        %v4202 = vunpack.c.l.b16 %v4170
        %v4203 = vunpack.c.l.b16 %v4171
        %v4204 = vunpack.c.l.b16 %v4172
        %v4205 = vunpack.c.l.b16 %v4173
        %v4206 = vunpack.c.l.b16 %v4174
        %v4207 = vunpack.c.l.b16 %v4175
        %v4208 = vunpack.c.l.b16 %v4176
        %v4209 = vpack.c.b16 %v4194, %v4193
        %v4210 = vpack.c.b16 %v4196, %v4195
        %v4211 = vpack.c.b16 %v4198, %v4197
        %v4212 = vpack.c.b16 %v4200, %v4199
        %v4213 = vpack.c.b16 %v4202, %v4201
        %v4214 = vpack.c.b16 %v4204, %v4203
        %v4215 = vpack.c.b16 %v4206, %v4205
        %v4216 = vpack.c.b16 %v4208, %v4207
        %v4218 = vcombine.high %v4160, %v4160
        %v4220 = vunpack.c.l.s4 1983009808
        %v4221 = vunpack.c.0.s8 %v4220
        %v4222 = vlaneseq
        %v4223 = vshrl.u32 %v4222, 7
        %v4224 = vsub.s32 %v4221, %v4223
        %v4225 = vrot.slane %v4160, %v4224
        %v4227 = vunpack.c.l.s4 1983009808
        %v4228 = vunpack.c.0.s8 %v4227
        %v4229 = vlaneseq
        %v4230 = vshrl.u32 %v4229, 7
        %v4231 = vsub.s32 %v4228, %v4230
        %v4232 = vrot.slane %v4218, %v4231
        %v4233 = vcombine.high %v4225, %v4225
        %v4234 = vcombine.high %v4232, %v4232
        %4235 = vrot.lane.b32.xlu0 %v4225, 109
        %v4236 = vpop.permute.xlu0 %4235
        %4237 = vrot.lane.b32.xlu0 %v4233, 109
        %v4238 = vpop.permute.xlu0 %4237
        %4239 = vrot.lane.b32.xlu0 %v4232, 109
        %v4240 = vpop.permute.xlu0 %4239
        %4241 = vrot.lane.b32.xlu0 %v4234, 109
        %v4242 = vpop.permute.xlu0 %4241
        %v4243 = vsel %vm1883, %v4236, %v4238
        %v4244 = vsel %vm1883, %v4238, %v4240
        %v4245 = vsel %vm1883, %v4240, %v4242
        %v4247 = vsel %vm496, %v4209, 0
        %v4250 = vsel %vm496, %v4210, 0
        %v4253 = vsel %vm496, %v4211, 0
        %v4256 = vsel %vm496, %v4212, 0
        %v4259 = vsel %vm496, %v4213, 0
        %v4262 = vsel %vm496, %v4214, 0
        %v4265 = vsel %vm496, %v4215, 0
        %v4268 = vsel %vm496, %v4216, 0
        %v4271 = vsel %vm521, %v4243, 0
        %v4274 = vsel %vm521, %v4244, 0
        %v4277 = vsel %vm521, %v4245, 0
        %4279 = vmatprep.subr.bf16.mxu0 %v4274
        %4280 = vmatpush1.bf16.msra.mxu0 %v4271
        %4281 = vmatprep.subr.bf16.mxu0 0
        %4282 = vmatpush1.bf16.msra.mxu0 0
        %4283 = vmatprep.subr.bf16.mxu0 0
        %4284 = vmatpush1.bf16.msra.mxu0 0
        %4285 = vmatprep.subr.bf16.mxu0 0
        %4286 = vmatpush1.bf16.msra.mxu0 0
        %4287 = vmatprep.subr.bf16.mxu0 0
        %4288 = vmatpush1.bf16.msra.mxu0 0
        %4289 = vmatprep.subr.bf16.mxu0 0
        %4290 = vmatpush1.bf16.msra.mxu0 0
        %4291 = vmatprep.subr.bf16.mxu0 0
        %4292 = vmatpush1.bf16.msra.mxu0 0
        %4293 = vmatprep.subr.bf16.mxu0 0
        %4294 = vmatpush1.bf16.msra.mxu0 0
        %4295 = vmatprep.subr.bf16.mxu0 0
        %4296 = vmatpush1.bf16.msra.mxu0 0
        %4297 = vmatprep.subr.bf16.mxu0 0
        %4298 = vmatpush1.bf16.msra.mxu0 0
        %4299 = vmatprep.subr.bf16.mxu0 0
        %4300 = vmatpush1.bf16.msra.mxu0 0
        %4301 = vmatprep.subr.bf16.mxu0 0
        %4302 = vmatpush1.bf16.msra.mxu0 0
        %4303 = vmatprep.subr.bf16.mxu0 0
        %4304 = vmatpush1.bf16.msra.mxu0 0
        %4305 = vmatprep.subr.bf16.mxu0 0
        %4306 = vmatpush1.bf16.msra.mxu0 0
        %4307 = vmatprep.subr.bf16.mxu0 0
        %4308 = vmatpush1.bf16.msra.mxu0 0
        %4309 = vmatprep.subr.bf16.mxu0 0
        %4310 = vmatpush1.bf16.msra.mxu0 0
        %4311 = vmatprep.mubr.bf16.mxu0 0
        %4312 = vmatmul.mubr.bf16.gmra.mrb[0].mxu0 %v4247
        %v4313 = vpop.f32.mrb[0].mxu0
        %v4314 = vadd.f32 0.0, %v4313
        %v4315 = vpop.f32.mrb[0].mxu0
        %v4316 = vadd.f32 0.0, %v4315
        %v4317 = vpop.f32.mrb[0].mxu0
        %v4318 = vadd.f32 0.0, %v4317
        %v4319 = vpop.f32.mrb[0].mxu0
        %v4320 = vadd.f32 0.0, %v4319
        %4321 = vmatprep.mubr.bf16.mxu0 0
        %4322 = vmatmul.mubr.bf16.gmra.mrb[0].mxu0 %v4250
        %v4323 = vpop.f32.mrb[0].mxu0
        %v4324 = vadd.f32 0.0, %v4323
        %v4325 = vpop.f32.mrb[0].mxu0
        %v4326 = vadd.f32 0.0, %v4325
        %v4327 = vpop.f32.mrb[0].mxu0
        %v4328 = vadd.f32 0.0, %v4327
        %v4329 = vpop.f32.mrb[0].mxu0
        %v4330 = vadd.f32 0.0, %v4329
        %4331 = vmatprep.mubr.bf16.mxu0 0
        %4332 = vmatmul.mubr.bf16.gmra.mrb[0].mxu0 %v4253
        %v4333 = vpop.f32.mrb[0].mxu0
        %v4334 = vadd.f32 0.0, %v4333
        %v4335 = vpop.f32.mrb[0].mxu0
        %v4336 = vadd.f32 0.0, %v4335
        %v4337 = vpop.f32.mrb[0].mxu0
        %v4338 = vadd.f32 0.0, %v4337
        %v4339 = vpop.f32.mrb[0].mxu0
        %v4340 = vadd.f32 0.0, %v4339
        %4341 = vmatprep.mubr.bf16.mxu0 0
        %4342 = vmatmul.mubr.bf16.gmra.mrb[0].mxu0 %v4256
        %v4343 = vpop.f32.mrb[0].mxu0
        %v4344 = vadd.f32 0.0, %v4343
        %v4345 = vpop.f32.mrb[0].mxu0
        %v4346 = vadd.f32 0.0, %v4345
        %v4347 = vpop.f32.mrb[0].mxu0
        %v4348 = vadd.f32 0.0, %v4347
        %v4349 = vpop.f32.mrb[0].mxu0
        %v4350 = vadd.f32 0.0, %v4349
        %4351 = vmatprep.mubr.bf16.mxu0 0
        %4352 = vmatmul.mubr.bf16.gmra.mrb[0].mxu0 %v4259
        %v4353 = vpop.f32.mrb[0].mxu0
        %v4354 = vadd.f32 0.0, %v4353
        %v4355 = vpop.f32.mrb[0].mxu0
        %v4356 = vadd.f32 0.0, %v4355
        %v4357 = vpop.f32.mrb[0].mxu0
        %v4358 = vadd.f32 0.0, %v4357
        %v4359 = vpop.f32.mrb[0].mxu0
        %v4360 = vadd.f32 0.0, %v4359
        %4361 = vmatprep.mubr.bf16.mxu0 0
        %4362 = vmatmul.mubr.bf16.gmra.mrb[0].mxu0 %v4262
        %v4363 = vpop.f32.mrb[0].mxu0
        %v4364 = vadd.f32 0.0, %v4363
        %v4365 = vpop.f32.mrb[0].mxu0
        %v4366 = vadd.f32 0.0, %v4365
        %v4367 = vpop.f32.mrb[0].mxu0
        %v4368 = vadd.f32 0.0, %v4367
        %v4369 = vpop.f32.mrb[0].mxu0
        %v4370 = vadd.f32 0.0, %v4369
        %4371 = vmatprep.mubr.bf16.mxu0 0
        %4372 = vmatmul.mubr.bf16.gmra.mrb[0].mxu0 %v4265
        %v4373 = vpop.f32.mrb[0].mxu0
        %v4374 = vadd.f32 0.0, %v4373
        %v4375 = vpop.f32.mrb[0].mxu0
        %v4376 = vadd.f32 0.0, %v4375
        %v4377 = vpop.f32.mrb[0].mxu0
        %v4378 = vadd.f32 0.0, %v4377
        %v4379 = vpop.f32.mrb[0].mxu0
        %v4380 = vadd.f32 0.0, %v4379
        %4381 = vmatprep.mubr.bf16.mxu0 0
        %4382 = vmatmul.mubr.bf16.gmra.mrb[0].mxu0 %v4268
        %v4383 = vpop.f32.mrb[0].mxu0
        %v4384 = vadd.f32 0.0, %v4383
        %v4385 = vpop.f32.mrb[0].mxu0
        %v4386 = vadd.f32 0.0, %v4385
        %v4387 = vpop.f32.mrb[0].mxu0
        %v4388 = vadd.f32 0.0, %v4387
        %v4389 = vpop.f32.mrb[0].mxu0
        %v4390 = vadd.f32 0.0, %v4389
        %4391 = vdwg.mxu0
        %4392 = vmatprep.subr.bf16.mxu0 0
        %4393 = vmatpush1.bf16.msra.mxu0 %v4277
        %4394 = vmatprep.subr.bf16.mxu0 0
        %4395 = vmatpush1.bf16.msra.mxu0 0
        %4396 = vmatprep.subr.bf16.mxu0 0
        %4397 = vmatpush1.bf16.msra.mxu0 0
        %4398 = vmatprep.subr.bf16.mxu0 0
        %4399 = vmatpush1.bf16.msra.mxu0 0
        %4400 = vmatprep.subr.bf16.mxu0 0
        %4401 = vmatpush1.bf16.msra.mxu0 0
        %4402 = vmatprep.subr.bf16.mxu0 0
        %4403 = vmatpush1.bf16.msra.mxu0 0
        %4404 = vmatprep.subr.bf16.mxu0 0
        %4405 = vmatpush1.bf16.msra.mxu0 0
        %4406 = vmatprep.subr.bf16.mxu0 0
        %4407 = vmatpush1.bf16.msra.mxu0 0
        %4408 = vmatprep.subr.bf16.mxu0 0
        %4409 = vmatpush1.bf16.msra.mxu0 0
        %4410 = vmatprep.subr.bf16.mxu0 0
        %4411 = vmatpush1.bf16.msra.mxu0 0
        %4412 = vmatprep.subr.bf16.mxu0 0
        %4413 = vmatpush1.bf16.msra.mxu0 0
        %4414 = vmatprep.subr.bf16.mxu0 0
        %4415 = vmatpush1.bf16.msra.mxu0 0
        %4416 = vmatprep.subr.bf16.mxu0 0
        %4417 = vmatpush1.bf16.msra.mxu0 0
        %4418 = vmatprep.subr.bf16.mxu0 0
        %4419 = vmatpush1.bf16.msra.mxu0 0
        %4420 = vmatprep.subr.bf16.mxu0 0
        %4421 = vmatpush1.bf16.msra.mxu0 0
        %4422 = vmatprep.subr.bf16.mxu0 0
        %4423 = vmatpush1.bf16.msra.mxu0 0
        %4424 = vmatprep.mubr.bf16.mxu0 0
        %4425 = vmatmul.mubr.bf16.gmra.mrb[0].mxu0 %v4247
        %v4426 = vpop.f32.mrb[0].mxu0
        %v4427 = vadd.f32 0.0, %v4426
        %v4428 = vpop.f32.mrb[0].mxu0
        %v4429 = vpop.f32.mrb[0].mxu0
        %v4430 = vadd.f32 0.0, %v4429
        %v4431 = vpop.f32.mrb[0].mxu0
        %4432 = vmatprep.mubr.bf16.mxu0 0
        %4433 = vmatmul.mubr.bf16.gmra.mrb[0].mxu0 %v4250
        %v4434 = vpop.f32.mrb[0].mxu0
        %v4435 = vadd.f32 0.0, %v4434
        %v4436 = vpop.f32.mrb[0].mxu0
        %v4437 = vpop.f32.mrb[0].mxu0
        %v4438 = vadd.f32 0.0, %v4437
        %v4439 = vpop.f32.mrb[0].mxu0
        %4440 = vmatprep.mubr.bf16.mxu0 0
        %4441 = vmatmul.mubr.bf16.gmra.mrb[0].mxu0 %v4253
        %v4442 = vpop.f32.mrb[0].mxu0
        %v4443 = vadd.f32 0.0, %v4442
        %v4444 = vpop.f32.mrb[0].mxu0
        %v4445 = vpop.f32.mrb[0].mxu0
        %v4446 = vadd.f32 0.0, %v4445
        %v4447 = vpop.f32.mrb[0].mxu0
        %4448 = vmatprep.mubr.bf16.mxu0 0
        %4449 = vmatmul.mubr.bf16.gmra.mrb[0].mxu0 %v4256
        %v4450 = vpop.f32.mrb[0].mxu0
        %v4451 = vadd.f32 0.0, %v4450
        %v4452 = vpop.f32.mrb[0].mxu0
        %v4453 = vpop.f32.mrb[0].mxu0
        %v4454 = vadd.f32 0.0, %v4453
        %v4455 = vpop.f32.mrb[0].mxu0
        %4456 = vmatprep.mubr.bf16.mxu0 0
        %4457 = vmatmul.mubr.bf16.gmra.mrb[0].mxu0 %v4259
        %v4458 = vpop.f32.mrb[0].mxu0
        %v4459 = vadd.f32 0.0, %v4458
        %v4460 = vpop.f32.mrb[0].mxu0
        %v4461 = vpop.f32.mrb[0].mxu0
        %v4462 = vadd.f32 0.0, %v4461
        %v4463 = vpop.f32.mrb[0].mxu0
        %4464 = vmatprep.mubr.bf16.mxu0 0
        %4465 = vmatmul.mubr.bf16.gmra.mrb[0].mxu0 %v4262
        %v4466 = vpop.f32.mrb[0].mxu0
        %v4467 = vadd.f32 0.0, %v4466
        %v4468 = vpop.f32.mrb[0].mxu0
        %v4469 = vpop.f32.mrb[0].mxu0
        %v4470 = vadd.f32 0.0, %v4469
        %v4471 = vpop.f32.mrb[0].mxu0
        %4472 = vmatprep.mubr.bf16.mxu0 0
        %4473 = vmatmul.mubr.bf16.gmra.mrb[0].mxu0 %v4265
        %v4474 = vpop.f32.mrb[0].mxu0
        %v4475 = vadd.f32 0.0, %v4474
        %v4476 = vpop.f32.mrb[0].mxu0
        %v4477 = vpop.f32.mrb[0].mxu0
        %v4478 = vadd.f32 0.0, %v4477
        %v4479 = vpop.f32.mrb[0].mxu0
        %4480 = vmatprep.mubr.bf16.mxu0 0
        %4481 = vmatmul.mubr.bf16.gmra.mrb[0].mxu0 %v4268
        %v4482 = vpop.f32.mrb[0].mxu0
        %v4483 = vadd.f32 0.0, %v4482
        %v4484 = vpop.f32.mrb[0].mxu0
        %v4485 = vpop.f32.mrb[0].mxu0
        %v4486 = vadd.f32 0.0, %v4485
        %v4487 = vpop.f32.mrb[0].mxu0
        %4488 = vdwg.mxu0
        %v4489 = vpack.c.bf16 %v4318, %v4314
        %v4490 = vpack.c.bf16 %v4320, %v4316
        %v4491 = vpack.c.bf16 %v4430, %v4427
        %v4492 = vpack.c.bf16 %v4328, %v4324
        %v4493 = vpack.c.bf16 %v4330, %v4326
        %v4494 = vpack.c.bf16 %v4438, %v4435
        %v4495 = vpack.c.bf16 %v4338, %v4334
        %v4496 = vpack.c.bf16 %v4340, %v4336
        %v4497 = vpack.c.bf16 %v4446, %v4443
        %v4498 = vpack.c.bf16 %v4348, %v4344
        %v4499 = vpack.c.bf16 %v4350, %v4346
        %v4500 = vpack.c.bf16 %v4454, %v4451
        %v4501 = vpack.c.bf16 %v4358, %v4354
        %v4502 = vpack.c.bf16 %v4360, %v4356
        %v4503 = vpack.c.bf16 %v4462, %v4459
        %v4504 = vpack.c.bf16 %v4368, %v4364
        %v4505 = vpack.c.bf16 %v4370, %v4366
        %v4506 = vpack.c.bf16 %v4470, %v4467
        %v4507 = vpack.c.bf16 %v4378, %v4374
        %v4508 = vpack.c.bf16 %v4380, %v4376
        %v4509 = vpack.c.bf16 %v4478, %v4475
        %v4510 = vpack.c.bf16 %v4388, %v4384
        %v4511 = vpack.c.bf16 %v4390, %v4386
        %v4512 = vpack.c.bf16 %v4486, %v4483
        %v4537 = vunpack.c.l.b16 %v4489
        %v4538 = vunpack.c.l.b16 %v4490
        %v4539 = vunpack.c.l.b16 %v4491
        %v4540 = vunpack.c.h.b16 %v4489
        %v4541 = vunpack.c.h.b16 %v4490
        %v4542 = vunpack.c.h.b16 %v4491
        %v4543 = vunpack.c.l.b16 %v4492
        %v4544 = vunpack.c.l.b16 %v4493
        %v4545 = vunpack.c.l.b16 %v4494
        %v4546 = vunpack.c.h.b16 %v4492
        %v4547 = vunpack.c.h.b16 %v4493
        %v4548 = vunpack.c.h.b16 %v4494
        %v4549 = vunpack.c.l.b16 %v4495
        %v4550 = vunpack.c.l.b16 %v4496
        %v4551 = vunpack.c.l.b16 %v4497
        %v4552 = vunpack.c.h.b16 %v4495
        %v4553 = vunpack.c.h.b16 %v4496
        %v4554 = vunpack.c.h.b16 %v4497
        %v4555 = vunpack.c.l.b16 %v4498
        %v4556 = vunpack.c.l.b16 %v4499
        %v4557 = vunpack.c.l.b16 %v4500
        %v4558 = vunpack.c.h.b16 %v4498
        %v4559 = vunpack.c.h.b16 %v4499
        %v4560 = vunpack.c.h.b16 %v4500
        %v4561 = vunpack.c.l.b16 %v4501
        %v4562 = vunpack.c.l.b16 %v4502
        %v4563 = vunpack.c.l.b16 %v4503
        %v4564 = vunpack.c.h.b16 %v4501
        %v4565 = vunpack.c.h.b16 %v4502
        %v4566 = vunpack.c.h.b16 %v4503
        %v4567 = vunpack.c.l.b16 %v4504
        %v4568 = vunpack.c.l.b16 %v4505
        %v4569 = vunpack.c.l.b16 %v4506
        %v4570 = vunpack.c.h.b16 %v4504
        %v4571 = vunpack.c.h.b16 %v4505
        %v4572 = vunpack.c.h.b16 %v4506
        %v4573 = vunpack.c.l.b16 %v4507
        %v4574 = vunpack.c.l.b16 %v4508
        %v4575 = vunpack.c.l.b16 %v4509
        %v4576 = vunpack.c.h.b16 %v4507
        %v4577 = vunpack.c.h.b16 %v4508
        %v4578 = vunpack.c.h.b16 %v4509
        %v4579 = vunpack.c.l.b16 %v4510
        %v4580 = vunpack.c.l.b16 %v4511
        %v4581 = vunpack.c.l.b16 %v4512
        %v4582 = vunpack.c.h.b16 %v4510
        %v4583 = vunpack.c.h.b16 %v4511
        %v4584 = vunpack.c.h.b16 %v4512
        %v4585 = vpack.c.b16 %v4538, %v4537
        %v4586 = vpack.c.b16 %v4539, %v4539
        %v4587 = vpack.c.b16 %v4541, %v4540
        %v4588 = vpack.c.b16 %v4542, %v4542
        %v4589 = vpack.c.b16 %v4544, %v4543
        %v4590 = vpack.c.b16 %v4545, %v4545
        %v4591 = vpack.c.b16 %v4547, %v4546
        %v4592 = vpack.c.b16 %v4548, %v4548
        %v4593 = vpack.c.b16 %v4550, %v4549
        %v4594 = vpack.c.b16 %v4551, %v4551
        %v4595 = vpack.c.b16 %v4553, %v4552
        %v4596 = vpack.c.b16 %v4554, %v4554
        %v4597 = vpack.c.b16 %v4556, %v4555
        %v4598 = vpack.c.b16 %v4557, %v4557
        %v4599 = vpack.c.b16 %v4559, %v4558
        %v4600 = vpack.c.b16 %v4560, %v4560
        %v4601 = vpack.c.b16 %v4562, %v4561
        %v4602 = vpack.c.b16 %v4563, %v4563
        %v4603 = vpack.c.b16 %v4565, %v4564
        %v4604 = vpack.c.b16 %v4566, %v4566
        %v4605 = vpack.c.b16 %v4568, %v4567
        %v4606 = vpack.c.b16 %v4569, %v4569
        %v4607 = vpack.c.b16 %v4571, %v4570
        %v4608 = vpack.c.b16 %v4572, %v4572
        %v4609 = vpack.c.b16 %v4574, %v4573
        %v4610 = vpack.c.b16 %v4575, %v4575
        %v4611 = vpack.c.b16 %v4577, %v4576
        %v4612 = vpack.c.b16 %v4578, %v4578
        %v4613 = vpack.c.b16 %v4580, %v4579
        %v4614 = vpack.c.b16 %v4581, %v4581
        %v4615 = vpack.c.b16 %v4583, %v4582
        %v4616 = vpack.c.b16 %v4584, %v4584
        %4649 = vst [vmem:[%s336] sm:$0xff] %v4585
        %4650 = vst [vmem:[%s336 + $0x8] sm:$0xf] %v4586
        %4651 = vst [vmem:[%s336 + $0xc] sm:$0xff] %v4587
        %4652 = vst [vmem:[%s336 + $0x14] sm:$0xf] %v4588
        %4653 = vst [vmem:[%s336 + $0x18] sm:$0xff] %v4589
        %4654 = vst [vmem:[%s336 + $0x20] sm:$0xf] %v4590
        %4655 = vst [vmem:[%s336 + $0x24] sm:$0xff] %v4591
        %4656 = vst [vmem:[%s336 + $0x2c] sm:$0xf] %v4592
        %4657 = vst [vmem:[%s336 + $0x30] sm:$0xff] %v4593
        %4658 = vst [vmem:[%s336 + $0x38] sm:$0xf] %v4594
        %4659 = vst [vmem:[%s336 + $0x3c] sm:$0xff] %v4595
        %4660 = vst [vmem:[%s336 + $0x44] sm:$0xf] %v4596
        %4661 = vst [vmem:[%s336 + $0x48] sm:$0xff] %v4597
        %4662 = vst [vmem:[%s336 + $0x50] sm:$0xf] %v4598
        %4663 = vst [vmem:[%s336 + $0x54] sm:$0xff] %v4599
        %4664 = vst [vmem:[%s336 + $0x5c] sm:$0xf] %v4600
        %4665 = vst [vmem:[%s336 + $0x60] sm:$0xff] %v4601
        %4666 = vst [vmem:[%s336 + $0x68] sm:$0xf] %v4602
        %4667 = vst [vmem:[%s336 + $0x6c] sm:$0xff] %v4603
        %4668 = vst [vmem:[%s336 + $0x74] sm:$0xf] %v4604
        %4669 = vst [vmem:[%s336 + $0x78] sm:$0xff] %v4605
        %4670 = vst [vmem:[%s336 + $0x80] sm:$0xf] %v4606
        %4671 = vst [vmem:[%s336 + $0x84] sm:$0xff] %v4607
        %4672 = vst [vmem:[%s336 + $0x8c] sm:$0xf] %v4608
        %4673 = vst [vmem:[%s336 + $0x90] sm:$0xff] %v4609
        %4674 = vst [vmem:[%s336 + $0x98] sm:$0xf] %v4610
        %4675 = vst [vmem:[%s336 + $0x9c] sm:$0xff] %v4611
        %4676 = vst [vmem:[%s336 + $0xa4] sm:$0xf] %v4612
        %4677 = vst [vmem:[%s336 + $0xa8] sm:$0xff] %v4613
        %4678 = vst [vmem:[%s336 + $0xb0] sm:$0xf] %v4614
        %4679 = vst [vmem:[%s336 + $0xb4] sm:$0xff] %v4615
        %4680 = vst [vmem:[%s336 + $0xbc] sm:$0xf] %v4616
        %v4681 = vmul.f32 %v4314, %v3891
        %v4682 = vmul.f32 %v4316, %v3895
        %v4683 = vmul.f32 %v4427, %v3899
        %v4684 = vmul.f32 %v4318, %v3891
        %v4685 = vmul.f32 %v4320, %v3895
        %v4686 = vmul.f32 %v4430, %v3899
        %v4687 = vmul.f32 %v4324, %v3891
        %v4688 = vmul.f32 %v4326, %v3895
        %v4689 = vmul.f32 %v4435, %v3899
        %v4690 = vmul.f32 %v4328, %v3891
        %v4691 = vmul.f32 %v4330, %v3895
        %v4692 = vmul.f32 %v4438, %v3899
        %v4693 = vmul.f32 %v4334, %v3891
        %v4694 = vmul.f32 %v4336, %v3895
        %v4695 = vmul.f32 %v4443, %v3899
        %v4696 = vmul.f32 %v4338, %v3891
        %v4697 = vmul.f32 %v4340, %v3895
        %v4698 = vmul.f32 %v4446, %v3899
        %v4699 = vmul.f32 %v4344, %v3891
        %v4700 = vmul.f32 %v4346, %v3895
        %v4701 = vmul.f32 %v4451, %v3899
        %v4702 = vmul.f32 %v4348, %v3891
        %v4703 = vmul.f32 %v4350, %v3895
        %v4704 = vmul.f32 %v4454, %v3899
        %v4705 = vmul.f32 %v4354, %v3891
        %v4706 = vmul.f32 %v4356, %v3895
        %v4707 = vmul.f32 %v4459, %v3899
        %v4708 = vmul.f32 %v4358, %v3891
        %v4709 = vmul.f32 %v4360, %v3895
        %v4710 = vmul.f32 %v4462, %v3899
        %v4711 = vmul.f32 %v4364, %v3891
        %v4712 = vmul.f32 %v4366, %v3895
        %v4713 = vmul.f32 %v4467, %v3899
        %v4714 = vmul.f32 %v4368, %v3891
        %v4715 = vmul.f32 %v4370, %v3895
        %v4716 = vmul.f32 %v4470, %v3899
        %v4717 = vmul.f32 %v4374, %v3891
        %v4718 = vmul.f32 %v4376, %v3895
        %v4719 = vmul.f32 %v4475, %v3899
        %v4720 = vmul.f32 %v4378, %v3891
        %v4721 = vmul.f32 %v4380, %v3895
        %v4722 = vmul.f32 %v4478, %v3899
        %v4723 = vmul.f32 %v4384, %v3891
        %v4724 = vmul.f32 %v4386, %v3895
        %v4725 = vmul.f32 %v4483, %v3899
        %v4726 = vmul.f32 %v4388, %v3891
        %v4727 = vmul.f32 %v4390, %v3895
        %v4728 = vmul.f32 %v4486, %v3899
        %v4729 = vadd.f32 %v4681, %v4682
        %v4730 = vadd.f32 %v4729, %v4683
        %4731 = vadd.xlane.f32.xlu0 %v4730
        %v4732 = vpop.xlane.xlu0 %4731
        %v4733 = vadd.f32 %v4684, %v4685
        %v4734 = vadd.f32 %v4733, %v4686
        %4735 = vadd.xlane.f32.xlu0 %v4734
        %v4736 = vpop.xlane.xlu0 %4735
        %v4737 = vadd.f32 %v4687, %v4688
        %v4738 = vadd.f32 %v4737, %v4689
        %4739 = vadd.xlane.f32.xlu0 %v4738
        %v4740 = vpop.xlane.xlu0 %4739
        %v4741 = vadd.f32 %v4690, %v4691
        %v4742 = vadd.f32 %v4741, %v4692
        %4743 = vadd.xlane.f32.xlu0 %v4742
        %v4744 = vpop.xlane.xlu0 %4743
        %v4745 = vadd.f32 %v4693, %v4694
        %v4746 = vadd.f32 %v4745, %v4695
        %4747 = vadd.xlane.f32.xlu0 %v4746
        %v4748 = vpop.xlane.xlu0 %4747
        %v4749 = vadd.f32 %v4696, %v4697
        %v4750 = vadd.f32 %v4749, %v4698
        %4751 = vadd.xlane.f32.xlu0 %v4750
        %v4752 = vpop.xlane.xlu0 %4751
        %v4753 = vadd.f32 %v4699, %v4700
        %v4754 = vadd.f32 %v4753, %v4701
        %4755 = vadd.xlane.f32.xlu0 %v4754
        %v4756 = vpop.xlane.xlu0 %4755
        %v4757 = vadd.f32 %v4702, %v4703
        %v4758 = vadd.f32 %v4757, %v4704
        %4759 = vadd.xlane.f32.xlu0 %v4758
        %v4760 = vpop.xlane.xlu0 %4759
        %v4761 = vadd.f32 %v4705, %v4706
        %v4762 = vadd.f32 %v4761, %v4707
        %4763 = vadd.xlane.f32.xlu0 %v4762
        %v4764 = vpop.xlane.xlu0 %4763
        %v4765 = vadd.f32 %v4708, %v4709
        %v4766 = vadd.f32 %v4765, %v4710
        %4767 = vadd.xlane.f32.xlu0 %v4766
        %v4768 = vpop.xlane.xlu0 %4767
        %v4769 = vadd.f32 %v4711, %v4712
        %v4770 = vadd.f32 %v4769, %v4713
        %4771 = vadd.xlane.f32.xlu0 %v4770
        %v4772 = vpop.xlane.xlu0 %4771
        %v4773 = vadd.f32 %v4714, %v4715
        %v4774 = vadd.f32 %v4773, %v4716
        %4775 = vadd.xlane.f32.xlu0 %v4774
        %v4776 = vpop.xlane.xlu0 %4775
        %v4777 = vadd.f32 %v4717, %v4718
        %v4778 = vadd.f32 %v4777, %v4719
        %4779 = vadd.xlane.f32.xlu0 %v4778
        %v4780 = vpop.xlane.xlu0 %4779
        %v4781 = vadd.f32 %v4720, %v4721
        %v4782 = vadd.f32 %v4781, %v4722
        %4783 = vadd.xlane.f32.xlu0 %v4782
        %v4784 = vpop.xlane.xlu0 %4783
        %v4785 = vadd.f32 %v4723, %v4724
        %v4786 = vadd.f32 %v4785, %v4725
        %4787 = vadd.xlane.f32.xlu0 %v4786
        %v4788 = vpop.xlane.xlu0 %4787
        %v4789 = vadd.f32 %v4726, %v4727
        %v4790 = vadd.f32 %v4789, %v4728
        %4791 = vadd.xlane.f32.xlu0 %v4790
        %v4792 = vpop.xlane.xlu0 %4791
        %4793 = vst.msk [vmem:[%s384] sm:$0xff] %vm4015, %v4732
        %4794 = vst.msk [vmem:[%s384 + $0x8] sm:$0xff] %vm4015, %v4736
        %4795 = vst.msk [vmem:[%s384 + $0x10] sm:$0xff] %vm4015, %v4740
        %4796 = vst.msk [vmem:[%s384 + $0x18] sm:$0xff] %vm4015, %v4744
        %4797 = vst.msk [vmem:[%s384 + $0x20] sm:$0xff] %vm4015, %v4748
        %4798 = vst.msk [vmem:[%s384 + $0x28] sm:$0xff] %vm4015, %v4752
        %4799 = vst.msk [vmem:[%s384 + $0x30] sm:$0xff] %vm4015, %v4756
        %4800 = vst.msk [vmem:[%s384 + $0x38] sm:$0xff] %vm4015, %v4760
        %4801 = vst.msk [vmem:[%s384 + $0x40] sm:$0xff] %vm4015, %v4764
        %4802 = vst.msk [vmem:[%s384 + $0x48] sm:$0xff] %vm4015, %v4768
        %4803 = vst.msk [vmem:[%s384 + $0x50] sm:$0xff] %vm4015, %v4772
        %4804 = vst.msk [vmem:[%s384 + $0x58] sm:$0xff] %vm4015, %v4776
        %4805 = vst.msk [vmem:[%s384 + $0x60] sm:$0xff] %vm4015, %v4780
        %4806 = vst.msk [vmem:[%s384 + $0x68] sm:$0xff] %vm4015, %v4784
        %4807 = vst.msk [vmem:[%s384 + $0x70] sm:$0xff] %vm4015, %v4788
        %4808 = vst.msk [vmem:[%s384 + $0x78] sm:$0xff] %vm4015, %v4792
        %v4809 = vmul.f32 %v4681, %v4314
        %v4810 = vmul.f32 %v4682, %v4316
        %v4811 = vmul.f32 %v4683, %v4427
        %v4812 = vmul.f32 %v4684, %v4318
        %v4813 = vmul.f32 %v4685, %v4320
        %v4814 = vmul.f32 %v4686, %v4430
        %v4815 = vmul.f32 %v4687, %v4324
        %v4816 = vmul.f32 %v4688, %v4326
        %v4817 = vmul.f32 %v4689, %v4435
        %v4818 = vmul.f32 %v4690, %v4328
        %v4819 = vmul.f32 %v4691, %v4330
        %v4820 = vmul.f32 %v4692, %v4438
        %v4821 = vmul.f32 %v4693, %v4334
        %v4822 = vmul.f32 %v4694, %v4336
        %v4823 = vmul.f32 %v4695, %v4443
        %v4824 = vmul.f32 %v4696, %v4338
        %v4825 = vmul.f32 %v4697, %v4340
        %v4826 = vmul.f32 %v4698, %v4446
        %v4827 = vmul.f32 %v4699, %v4344
        %v4828 = vmul.f32 %v4700, %v4346
        %v4829 = vmul.f32 %v4701, %v4451
        %v4830 = vmul.f32 %v4702, %v4348
        %v4831 = vmul.f32 %v4703, %v4350
        %v4832 = vmul.f32 %v4704, %v4454
        %v4833 = vmul.f32 %v4705, %v4354
        %v4834 = vmul.f32 %v4706, %v4356
        %v4835 = vmul.f32 %v4707, %v4459
        %v4836 = vmul.f32 %v4708, %v4358
        %v4837 = vmul.f32 %v4709, %v4360
        %v4838 = vmul.f32 %v4710, %v4462
        %v4839 = vmul.f32 %v4711, %v4364
        %v4840 = vmul.f32 %v4712, %v4366
        %v4841 = vmul.f32 %v4713, %v4467
        %v4842 = vmul.f32 %v4714, %v4368
        %v4843 = vmul.f32 %v4715, %v4370
        %v4844 = vmul.f32 %v4716, %v4470
        %v4845 = vmul.f32 %v4717, %v4374
        %v4846 = vmul.f32 %v4718, %v4376
        %v4847 = vmul.f32 %v4719, %v4475
        %v4848 = vmul.f32 %v4720, %v4378
        %v4849 = vmul.f32 %v4721, %v4380
        %v4850 = vmul.f32 %v4722, %v4478
        %v4851 = vmul.f32 %v4723, %v4384
        %v4852 = vmul.f32 %v4724, %v4386
        %v4853 = vmul.f32 %v4725, %v4483
        %v4854 = vmul.f32 %v4726, %v4388
        %v4855 = vmul.f32 %v4727, %v4390
        %v4856 = vmul.f32 %v4728, %v4486
        %v4857 = vadd.f32 %v4809, %v4810
        %v4858 = vadd.f32 %v4857, %v4811
        %4859 = vadd.xlane.f32.xlu0 %v4858
        %v4860 = vpop.xlane.xlu0 %4859
        %v4861 = vadd.f32 %v4812, %v4813
        %v4862 = vadd.f32 %v4861, %v4814
        %4863 = vadd.xlane.f32.xlu0 %v4862
        %v4864 = vpop.xlane.xlu0 %4863
        %v4865 = vadd.f32 %v4815, %v4816
        %v4866 = vadd.f32 %v4865, %v4817
        %4867 = vadd.xlane.f32.xlu0 %v4866
        %v4868 = vpop.xlane.xlu0 %4867
        %v4869 = vadd.f32 %v4818, %v4819
        %v4870 = vadd.f32 %v4869, %v4820
        %4871 = vadd.xlane.f32.xlu0 %v4870
        %v4872 = vpop.xlane.xlu0 %4871
        %v4873 = vadd.f32 %v4821, %v4822
        %v4874 = vadd.f32 %v4873, %v4823
        %4875 = vadd.xlane.f32.xlu0 %v4874
        %v4876 = vpop.xlane.xlu0 %4875
        %v4877 = vadd.f32 %v4824, %v4825
        %v4878 = vadd.f32 %v4877, %v4826
        %4879 = vadd.xlane.f32.xlu0 %v4878
        %v4880 = vpop.xlane.xlu0 %4879
        %v4881 = vadd.f32 %v4827, %v4828
        %v4882 = vadd.f32 %v4881, %v4829
        %4883 = vadd.xlane.f32.xlu0 %v4882
        %v4884 = vpop.xlane.xlu0 %4883
        %v4885 = vadd.f32 %v4830, %v4831
        %v4886 = vadd.f32 %v4885, %v4832
        %4887 = vadd.xlane.f32.xlu0 %v4886
        %v4888 = vpop.xlane.xlu0 %4887
        %v4889 = vadd.f32 %v4833, %v4834
        %v4890 = vadd.f32 %v4889, %v4835
        %4891 = vadd.xlane.f32.xlu0 %v4890
        %v4892 = vpop.xlane.xlu0 %4891
        %v4893 = vadd.f32 %v4836, %v4837
        %v4894 = vadd.f32 %v4893, %v4838
        %4895 = vadd.xlane.f32.xlu0 %v4894
        %v4896 = vpop.xlane.xlu0 %4895
        %v4897 = vadd.f32 %v4839, %v4840
        %v4898 = vadd.f32 %v4897, %v4841
        %4899 = vadd.xlane.f32.xlu0 %v4898
        %v4900 = vpop.xlane.xlu0 %4899
        %v4901 = vadd.f32 %v4842, %v4843
        %v4902 = vadd.f32 %v4901, %v4844
        %4903 = vadd.xlane.f32.xlu0 %v4902
        %v4904 = vpop.xlane.xlu0 %4903
        %v4905 = vadd.f32 %v4845, %v4846
        %v4906 = vadd.f32 %v4905, %v4847
        %4907 = vadd.xlane.f32.xlu0 %v4906
        %v4908 = vpop.xlane.xlu0 %4907
        %v4909 = vadd.f32 %v4848, %v4849
        %v4910 = vadd.f32 %v4909, %v4850
        %4911 = vadd.xlane.f32.xlu0 %v4910
        %v4912 = vpop.xlane.xlu0 %4911
        %v4913 = vadd.f32 %v4851, %v4852
        %v4914 = vadd.f32 %v4913, %v4853
        %4915 = vadd.xlane.f32.xlu0 %v4914
        %v4916 = vpop.xlane.xlu0 %4915
        %v4917 = vadd.f32 %v4854, %v4855
        %v4918 = vadd.f32 %v4917, %v4856
        %4919 = vadd.xlane.f32.xlu0 %v4918
        %v4920 = vpop.xlane.xlu0 %4919
        %4921 = vst.msk [vmem:[%s389] sm:$0xff] %vm4015, %v4860
        %4922 = vst.msk [vmem:[%s389 + $0x8] sm:$0xff] %vm4015, %v4864
        %4923 = vst.msk [vmem:[%s389 + $0x10] sm:$0xff] %vm4015, %v4868
        %4924 = vst.msk [vmem:[%s389 + $0x18] sm:$0xff] %vm4015, %v4872
        %4925 = vst.msk [vmem:[%s389 + $0x20] sm:$0xff] %vm4015, %v4876
        %4926 = vst.msk [vmem:[%s389 + $0x28] sm:$0xff] %vm4015, %v4880
        %4927 = vst.msk [vmem:[%s389 + $0x30] sm:$0xff] %vm4015, %v4884
        %4928 = vst.msk [vmem:[%s389 + $0x38] sm:$0xff] %vm4015, %v4888
        %4929 = vst.msk [vmem:[%s389 + $0x40] sm:$0xff] %vm4015, %v4892
        %4930 = vst.msk [vmem:[%s389 + $0x48] sm:$0xff] %vm4015, %v4896
        %4931 = vst.msk [vmem:[%s389 + $0x50] sm:$0xff] %vm4015, %v4900
        %4932 = vst.msk [vmem:[%s389 + $0x58] sm:$0xff] %vm4015, %v4904
        %4933 = vst.msk [vmem:[%s389 + $0x60] sm:$0xff] %vm4015, %v4908
        %4934 = vst.msk [vmem:[%s389 + $0x68] sm:$0xff] %vm4015, %v4912
        %4935 = vst.msk [vmem:[%s389 + $0x70] sm:$0xff] %vm4015, %v4916
        %4936 = vst.msk [vmem:[%s389 + $0x78] sm:$0xff] %vm4015, %v4920
        %s4937 = sand.u32 %s124, 1
        %s4938 = scalar_lea.sflag [#allocation3], %s4937
        %s4939 = sand.u32 %s124, 1
        %s4940 = smul.addr %s4939, 192
        %s4941 = scalar_lea.vmem [#allocation2], %s4940
        %s4942 = sand.u32 %s150, 1
        %s4943 = scalar_lea.sflag [#allocation5], %s4942
        %s4944 = sand.u32 %s150, 1
        %s4945 = smul.addr %s4944, 192
        %s4946 = scalar_lea.vmem [#allocation4], %s4945
        %p4947 = scmp.lt.s32.totalorder %s27, 1
        %s4948 = scalar_select %p4947, %s27, 1
        %s4949 = smul.addr %s4948, 16
        %s4950 = smul.addr %s4949, 8
        %s4951 = scalar_lea.vmem %s6, %s4950
        %p4952 = scmp.lt.s32.totalorder %s27, 1
        %s4953 = scalar_select %p4952, %s27, 1
        %s4954 = smul.addr %s4953, 16
        %s4955 = smul.addr %s4954, 8
        %s4956 = scalar_lea.vmem %s7, %s4955
        %p4957 = scmp.lt.s32.totalorder %s27, 1
        %s4958 = scalar_select %p4957, %s27, 1
        %s4959 = smul.addr %s4958, 16
        %s4960 = smul.addr %s4959, 8
        %s4961 = scalar_lea.vmem %s8, %s4960
        %p4962 = scmp.lt.s32.totalorder %s27, 1
        %s4963 = scalar_select %p4962, %s27, 1
        %s4964 = smul.addr %s4963, 16
        %s4965 = smul.addr %s4964, 8
        %s4966 = scalar_lea.vmem %s9, %s4965
        // Predicated region
        $region37: #{tpu_custom_call.1} parent=35 // pred_check
          %p4967 = pneg %p134
        $region38: #{tpu_custom_call.1} parent=35 // pred_check_branch
          %4969 = sbr.rel (%p4967) target = $region40
        $region39: #{tpu_custom_call.1} parent=35 // pred_region
          %s4971 = ssub.s32 3072, 3072
          %4972 = vsyncadd %s4938, %s4971
          %s4973 = smul.addr %s27, 48
          %s4974 = smul.addr %s4973, 64
          %s4975 = scalar_lea.hbm %s4, %s4974
          %s4976 = sshll.u32 %s4941, 4
          %s4977 = int_to_ptr.vmem [resolvable:$true] %s4976
          %4982 = dma.vmem_to_hbm [thread:$0]  %s4977, 3072, %s4975, %s4938, 192, 192, 12
        $region40: #{tpu_custom_call.1} parent=35 // pred_fallthru
          _
        // Predicated region
        $region41: #{tpu_custom_call.1} parent=35 // pred_check
          %p4983 = pneg %p160
        $region42: #{tpu_custom_call.1} parent=35 // pred_check_branch
          %4985 = sbr.rel (%p4983) target = $region44
        $region43: #{tpu_custom_call.1} parent=35 // pred_region
          %s4987 = ssub.s32 3072, 3072
          %4988 = vsyncadd %s4943, %s4987
          %s4989 = smul.addr %s27, 48
          %s4990 = smul.addr %s4989, 64
          %s4991 = scalar_lea.hbm %s5, %s4990
          %s4992 = sshll.u32 %s4946, 4
          %s4993 = int_to_ptr.vmem [resolvable:$true] %s4992
          %4998 = dma.vmem_to_hbm [thread:$0]  %s4993, 3072, %s4991, %s4943, 192, 192, 12
        $region44: #{tpu_custom_call.1} parent=35 // pred_fallthru
          _
        // Predicated region
        $region45: #{tpu_custom_call.1} parent=35 // pred_check
          %p4999 = pneg %p186
        $region46: #{tpu_custom_call.1} parent=35 // pred_check_branch
          %5001 = sbr.rel (%p4999) target = $region48
        $region47: #{tpu_custom_call.1} parent=35 // pred_region
          _
        $region48: #{tpu_custom_call.1} parent=35 // pred_fallthru
          _
        // Predicated region
        $region49: #{tpu_custom_call.1} parent=35 // pred_check
          %p5002 = pneg %p212
        $region50: #{tpu_custom_call.1} parent=35 // pred_check_branch
          %5004 = sbr.rel (%p5002) target = $region52
        $region51: #{tpu_custom_call.1} parent=35 // pred_region
          _
        $region52: #{tpu_custom_call.1} parent=35 // pred_fallthru
          _
        // Predicated region
        $region53: #{tpu_custom_call.1} parent=35 // pred_check
          %p5005 = pneg %p238
        $region54: #{tpu_custom_call.1} parent=35 // pred_check_branch
          %5007 = sbr.rel (%p5005) target = $region56
        $region55: #{tpu_custom_call.1} parent=35 // pred_region
          _
        $region56: #{tpu_custom_call.1} parent=35 // pred_fallthru
          _
        // Predicated region
        $region57: #{tpu_custom_call.1} parent=35 // pred_check
          %p5008 = pneg %p264
        $region58: #{tpu_custom_call.1} parent=35 // pred_check_branch
          %5010 = sbr.rel (%p5008) target = $region60
        $region59: #{tpu_custom_call.1} parent=35 // pred_region
          _
        $region60: #{tpu_custom_call.1} parent=35 // pred_fallthru
          _
      $region36: #{tpu_custom_call.1} parent=5 // pred_fallthru
        _
      %p5011 = scmp.le.s32.totalorder 2, %s22
      // Predicated region
      $region61: #{tpu_custom_call.1} parent=5 // pred_check
        %p5012 = pneg %p5011
      $region62: #{tpu_custom_call.1} parent=5 // pred_check_branch
        %5014 = sbr.rel (%p5012) target = $region64
      $region63: #{tpu_custom_call.1} parent=5 // pred_region
        %s5015 = ssub.s32 %s22, 2
        // Predicated region
        $region65: #{tpu_custom_call.1} parent=63 // pred_check
          %p5016 = pneg %p140
        $region66: #{tpu_custom_call.1} parent=63 // pred_check_branch
          %5018 = sbr.rel (%p5016) target = $region68
        $region67: #{tpu_custom_call.1} parent=63 // pred_region
          %s5019 = sand.u32 %s125, 1
          %s5020 = scalar_lea.sflag [#allocation3], %s5019
          %s5021 = sand.u32 %s125, 1
          %s5022 = smul.addr %s5021, 192
          %s5023 = scalar_lea.vmem [#allocation2], %s5022
          %5024 = dma.done %s5020, 3072
        $region68: #{tpu_custom_call.1} parent=63 // pred_fallthru
          _
        // Predicated region
        $region69: #{tpu_custom_call.1} parent=63 // pred_check
          %p5025 = pneg %p166
        $region70: #{tpu_custom_call.1} parent=63 // pred_check_branch
          %5027 = sbr.rel (%p5025) target = $region72
        $region71: #{tpu_custom_call.1} parent=63 // pred_region
          %s5028 = sand.u32 %s151, 1
          %s5029 = scalar_lea.sflag [#allocation5], %s5028
          %s5030 = sand.u32 %s151, 1
          %s5031 = smul.addr %s5030, 192
          %s5032 = scalar_lea.vmem [#allocation4], %s5031
          %5033 = dma.done %s5029, 3072
        $region72: #{tpu_custom_call.1} parent=63 // pred_fallthru
          _
        // Predicated region
        $region73: #{tpu_custom_call.1} parent=63 // pred_check
          %p5034 = pneg %p192
        $region74: #{tpu_custom_call.1} parent=63 // pred_check_branch
          %5036 = sbr.rel (%p5034) target = $region76
        $region75: #{tpu_custom_call.1} parent=63 // pred_region
          %p5037 = scmp.lt.s32.totalorder %s28, 1
          %s5038 = scalar_select %p5037, %s28, 1
          %s5039 = smul.addr %s5038, 16
          %s5040 = smul.addr %s5039, 8
          %s5041 = scalar_lea.vmem %s6, %s5040
        $region76: #{tpu_custom_call.1} parent=63 // pred_fallthru
          _
        // Predicated region
        $region77: #{tpu_custom_call.1} parent=63 // pred_check
          %p5042 = pneg %p218
        $region78: #{tpu_custom_call.1} parent=63 // pred_check_branch
          %5044 = sbr.rel (%p5042) target = $region80
        $region79: #{tpu_custom_call.1} parent=63 // pred_region
          %p5045 = scmp.lt.s32.totalorder %s28, 1
          %s5046 = scalar_select %p5045, %s28, 1
          %s5047 = smul.addr %s5046, 16
          %s5048 = smul.addr %s5047, 8
          %s5049 = scalar_lea.vmem %s7, %s5048
        $region80: #{tpu_custom_call.1} parent=63 // pred_fallthru
          _
        // Predicated region
        $region81: #{tpu_custom_call.1} parent=63 // pred_check
          %p5050 = pneg %p244
        $region82: #{tpu_custom_call.1} parent=63 // pred_check_branch
          %5052 = sbr.rel (%p5050) target = $region84
        $region83: #{tpu_custom_call.1} parent=63 // pred_region
          %p5053 = scmp.lt.s32.totalorder %s28, 1
          %s5054 = scalar_select %p5053, %s28, 1
          %s5055 = smul.addr %s5054, 16
          %s5056 = smul.addr %s5055, 8
          %s5057 = scalar_lea.vmem %s8, %s5056
        $region84: #{tpu_custom_call.1} parent=63 // pred_fallthru
          _
        // Predicated region
        $region85: #{tpu_custom_call.1} parent=63 // pred_check
          %p5058 = pneg %p270
        $region86: #{tpu_custom_call.1} parent=63 // pred_check_branch
          %5060 = sbr.rel (%p5058) target = $region88
        $region87: #{tpu_custom_call.1} parent=63 // pred_region
          %p5061 = scmp.lt.s32.totalorder %s28, 1
          %s5062 = scalar_select %p5061, %s28, 1
          %s5063 = smul.addr %s5062, 16
          %s5064 = smul.addr %s5063, 8
          %s5065 = scalar_lea.vmem %s9, %s5064
        $region88: #{tpu_custom_call.1} parent=63 // pred_fallthru
          _
      $region64: #{tpu_custom_call.1} parent=5 // pred_fallthru
        _
    $region6: #{tpu_custom_call.1} parent=1 // loop_footer
      %s26 = sadd.s32 1, %s22
    $region7: #{tpu_custom_call.1} parent=1 // loop_footer_branch
      %21 = sbr.rel target = $region3
    $region8: #{tpu_custom_call.1} parent=1 // loop_exit
      _
    %5066 = vsyncpa [#allocation3], 1
    %s5067 = scalar_lea.sflag [#allocation3], 1
    %5068 = vsyncpa %s5067, 1
    %5069 = vsyncpa [#allocation5], 1
    %s5070 = scalar_lea.sflag [#allocation5], 1
    %5071 = vsyncpa %s5070, 1

</llo_original>
